<compile_context>
chip_gen: v5e
topology: v5e:2x2
jax: 0.10.0
libtpu: 0.0.40
codegen_flags: <defaults>
</compile_context>

<pallas_src>
import functools

import jax
import jax.numpy as jnp
from jax.experimental import pallas as pl
from jax.experimental.pallas import tpu as pltpu


# =============================================================================
# Kernel 1: fully fused conv stack (feature convs + fused branch convs)
# =============================================================================
def _fused_conv_kernel(*refs, n_layers, H, W):
    # refs = (x_ref, w0, b0, w1, b1, ..., o_ref, pad_ref)
    x_ref = refs[0]
    wb_refs = refs[1:1 + 2 * n_layers]
    o_ref = refs[1 + 2 * n_layers]
    pad_ref = refs[2 + 2 * n_layers]

    # Zero the padded scratch once per sample: the 1-pixel halo stays zero for
    # every layer, only the interior is overwritten below.
    pad_ref[...] = jnp.zeros_like(pad_ref)

    act = x_ref[0].astype(jnp.float32)                   # (H, W, C0)

    for l in range(n_layers):
        w_ref = wb_refs[2 * l]                           # (9, Cin, Cout)
        b_ref = wb_refs[2 * l + 1]                       # (1, Cout)
        cin = w_ref.shape[1]
        cout = w_ref.shape[2]
        assert act.shape[-1] == cin, (act.shape, cin)    # trace-time check

        # Write activation into the interior of the zero-padded scratch.
        pad_ref[1:H + 1, 1:W + 1, :cin] = act

        # In-kernel "im2col": 3x3 conv = 9 shifted-window matmuls accumulated
        # in f32 (MXU), then bias + ReLU on the VPU.
        acc = jnp.zeros((H * W, cout), jnp.float32)
        t = 0
        for dy in range(3):
            for dx in range(3):
                win = pad_ref[dy:dy + H, dx:dx + W, :cin]        # (H, W, Cin)
                acc = acc + jnp.dot(win.reshape(H * W, cin), w_ref[t],
                                    preferred_element_type=jnp.float32)
                t += 1

        act = jnp.maximum(acc + b_ref[...], 0.0).reshape(H, W, cout)

    o_ref[0] = act                                        # (H, W, C_last)


def fused_conv_stack(x_nhwc, conv_ws, conv_bs):
    """Runs the whole conv stack in one pallas_call, gridded over batch."""
    N, H, W, Cin = x_nhwc.shape
    n_layers = len(conv_ws)
    c_last = int(conv_ws[-1].shape[-1])
    c_max = max(int(w.shape[1]) for w in conv_ws)

    in_specs = [pl.BlockSpec((1, H, W, Cin), lambda b: (b, 0, 0, 0))]
    args = [x_nhwc]
    for w, bias in zip(conv_ws, conv_bs):
        in_specs.append(pl.BlockSpec(w.shape, lambda b: (0, 0, 0)))     # resident
        in_specs.append(pl.BlockSpec(bias.shape, lambda b: (0, 0)))     # resident
        args.extend([w, bias])

    kernel = functools.partial(_fused_conv_kernel, n_layers=n_layers, H=H, W=W)
    return pl.pallas_call(
        kernel,
        out_shape=jax.ShapeDtypeStruct((N, H, W, c_last), jnp.float32),
        grid_spec=pltpu.PrefetchScalarGridSpec(
            num_scalar_prefetch=0,
            grid=(N,),
            in_specs=in_specs,
            out_specs=pl.BlockSpec((1, H, W, c_last), lambda b: (b, 0, 0, 0)),
            scratch_shapes=[pltpu.VMEM((H + 2, W + 2, c_max), jnp.float32)],
        ),
        compiler_params=pltpu.CompilerParams(
            dimension_semantics=("parallel",)),   # batch axis -> both v7x TCs
    )(*args)


# =============================================================================
# Kernel 2: fused regressor+classifier heads, lane-dense (·, 128) output
# =============================================================================
def _head_kernel(x_ref, w_ref, b_ref, o_ref):
    o_ref[...] = (jnp.dot(x_ref[...], w_ref[...],
                          preferred_element_type=jnp.float32) + b_ref[...])


def head_matmul(flat, w, b):
    M, K = flat.shape
    K2, n_pad = w.shape
    assert K == K2, (K, K2)
    return pl.pallas_call(
        _head_kernel,
        out_shape=jax.ShapeDtypeStruct((M, n_pad), jnp.float32),
        grid_spec=pltpu.PrefetchScalarGridSpec(
            num_scalar_prefetch=0,
            grid=(1,),
            in_specs=[pl.BlockSpec((M, K), lambda i: (0, 0)),
                      pl.BlockSpec((K, n_pad), lambda i: (0, 0)),
                      pl.BlockSpec((1, n_pad), lambda i: (0, 0))],
            out_specs=pl.BlockSpec((M, n_pad), lambda i: (0, 0)),
        ),
        compiler_params=pltpu.CompilerParams(
            dimension_semantics=("arbitrary",)),
    )(flat, w, b)


# =============================================================================
# Parameter construction (deterministic, synthetic) — PyTorch-like layout
# =============================================================================
def _conv_param(key, cin, cout, kh=3, kw=3, scale=0.1):
    kw_key, kb_key = jax.random.split(key)
    w = scale * jax.random.normal(kw_key, (kh, kw, cin, cout), jnp.float32)
    b = scale * jax.random.normal(kb_key, (cout,), jnp.float32)
    return (w, b)


def _linear_param(key, din, dout, scale=0.1):
    kw_key, kb_key = jax.random.split(key)
    w = scale * jax.random.normal(kw_key, (din, dout), jnp.float32)
    b = scale * jax.random.normal(kb_key, (dout,), jnp.float32)
    return (w, b)


def init_eadan_params(key, in_channels, num_classes, split_layer,
                      patch_size, hidden=16, num_convs=4):
    assert 1 <= split_layer <= num_convs, "split layer must be in [1, num_convs]"
    chans = [in_channels] + [hidden] * num_convs
    keys = jax.random.split(key, 3 * num_convs + 2)
    ki = iter(range(len(keys)))

    feature = [_conv_param(keys[next(ki)], chans[i], chans[i + 1])
               for i in range(split_layer)]
    reg_convs = [_conv_param(keys[next(ki)], chans[i], chans[i + 1])
                 for i in range(split_layer, num_convs)]
    cls_convs = [_conv_param(keys[next(ki)], chans[i], chans[i + 1])
                 for i in range(split_layer, num_convs)]
    flat_dim = hidden * patch_size * patch_size
    reg_head = _linear_param(keys[next(ki)], flat_dim, 1)
    cls_head = _linear_param(keys[next(ki)], flat_dim, num_classes)
    return {
        "feature": feature,
        "reg_convs": reg_convs, "reg_head": reg_head,
        "cls_convs": cls_convs, "cls_head": cls_head,
    }


# =============================================================================
# Host-side (one-time) transformation into kernel-friendly fused parameters
# =============================================================================
def prepare_kernel_params(params, num_classes, patch_size, hidden=16):
    H = W = patch_size
    h = hidden
    taps = 9

    conv_ws, conv_bs = [], []
    # shared feature extractor
    for w, b in params["feature"]:
        kh, kw, cin, cout = w.shape
        conv_ws.append(w.reshape(taps, cin, cout))
        conv_bs.append(b.reshape(1, cout))

    n_branch = len(params["reg_convs"])
    assert n_branch == len(params["cls_convs"])
    # regressor/classifier branch convs fused along Cout
    for i, ((wr, br), (wc, bc)) in enumerate(zip(params["reg_convs"],
                                                 params["cls_convs"])):
        kh, kw, cin, cout = wr.shape
        if i == 0:
            # both branches read the shared feature -> plain Cout concat
            w_f = jnp.concatenate([wr, wc], axis=-1)                 # (3,3,h,2h)
        else:
            # each branch reads only its own channel half -> block diagonal
            w_f = jnp.zeros((kh, kw, 2 * cin, 2 * cout), jnp.float32)
            w_f = w_f.at[:, :, :cin, :cout].set(wr)
            w_f = w_f.at[:, :, cin:, cout:].set(wc)
        b_f = jnp.concatenate([br, bc], axis=-1)
        cin_f, cout_f = w_f.shape[2], w_f.shape[3]
        conv_ws.append(w_f.reshape(taps, cin_f, cout_f))
        conv_bs.append(b_f.reshape(1, cout_f))

    # ---- combined heads: fold PyTorch NCHW-flatten permutation + branch
    # ---- channel split into one (flat_dim, 128) lane-dense weight matrix.
    wr, br = params["reg_head"]              # (h*H*W, 1), (1,)
    wc, bc = params["cls_head"]              # (h*H*W, num_classes), (nc,)
    nco = 1 + num_classes
    # NCHW-ordered rows (c, y, x) -> (spatial r=y*W+x, channel c, out)
    wr3 = jnp.transpose(wr.reshape(h, H * W, 1), (1, 0, 2))            # (HW,h,1)
    wc3 = jnp.transpose(wc.reshape(h, H * W, num_classes), (1, 0, 2))  # (HW,h,nc)
    if n_branch > 0:
        # fused-kernel channels: [:h] regressor branch, [h:] classifier branch
        reg_blk = jnp.concatenate(
            [wr3, jnp.zeros((H * W, h, num_classes), jnp.float32)], axis=2)
        cls_blk = jnp.concatenate(
            [jnp.zeros((H * W, h, 1), jnp.float32), wc3], axis=2)
        w3 = jnp.concatenate([reg_blk, cls_blk], axis=1)     # (HW, 2h, 1+nc)
    else:
        # no branch convs: both heads read the same shared feature
        w3 = jnp.concatenate([wr3, wc3], axis=2)             # (HW, h, 1+nc)
    w2 = w3.reshape(-1, nco)

    n_pad = 128                       # lane-dense output (multiple of 128)
    assert nco <= n_pad
    head_w = jnp.zeros((w2.shape[0], n_pad), jnp.float32).at[:, :nco].set(w2)
    head_b = jnp.zeros((1, n_pad), jnp.float32).at[0, :nco].set(
        jnp.concatenate([br, bc]))

    return {"conv_ws": conv_ws, "conv_bs": conv_bs,
            "head_w": head_w, "head_b": head_b}


# =============================================================================
# Forward pass (mirrors EADAN.forward)
# =============================================================================
def eadan_forward(kparams, x_nchw, *, num_classes):
    x = jnp.transpose(x_nchw, (0, 2, 3, 1))                  # NCHW -> NHWC
    conv_out = fused_conv_stack(x, kparams["conv_ws"], kparams["conv_bs"])
    n = conv_out.shape[0]
    flat = conv_out.reshape(n, -1)       # NHWC flatten; permutation is in head_w
    head = head_matmul(flat, kparams["head_w"], kparams["head_b"])
    reg_out = head[:, 0:1]
    cls_out = head[:, 1:1 + num_classes]
    return reg_out, cls_out


# =============================================================================
# Pure-JAX reference (mirrors the reconstructed PyTorch module directly)
# =============================================================================
def eadan_reference(params, x_nchw):
    hi = jax.lax.Precision.HIGHEST

    def conv(x, w, b):
        N, H, W, _ = x.shape
        xp = jnp.pad(x, ((0, 0), (1, 1), (1, 1), (0, 0)))
        out = jnp.zeros((N, H, W, w.shape[-1]), jnp.float32)
        for dy in range(3):
            for dx in range(3):
                win = xp[:, dy:dy + H, dx:dx + W, :]
                out = out + jnp.einsum('nhwc,cd->nhwd', win, w[dy, dx],
                                       precision=hi)
        return jnp.maximum(out + b, 0.0)

    x = jnp.transpose(x_nchw, (0, 2, 3, 1))
    for w, b in params["feature"]:
        x = conv(x, w, b)

    def branch(feat, convs, head):
        hh = feat
        for w, b in convs:
            hh = conv(hh, w, b)
        flat = jnp.transpose(hh, (0, 3, 1, 2)).reshape(hh.shape[0], -1)  # NCHW
        hw, hb = head
        return jnp.dot(flat, hw, precision=hi) + hb

    reg = branch(x, params["reg_convs"], params["reg_head"])
    cls = branch(x, params["cls_convs"], params["cls_head"])
    return reg, cls


# =============================================================================
if __name__ == "__main__":
    batch = 2
    in_channels = 4
    num_classes = 3
    split_layer = 2
    patch_size = 8       # H = W = patch_size
    hidden = 16
    num_convs = 4

    key = jax.random.PRNGKey(0)
    pkey, xkey = jax.random.split(key)
    params = init_eadan_params(pkey, in_channels, num_classes, split_layer,
                               patch_size, hidden=hidden, num_convs=num_convs)
    kparams = prepare_kernel_params(params, num_classes, patch_size,
                                    hidden=hidden)
    x = jax.random.normal(xkey, (batch, in_channels, patch_size, patch_size),
                          jnp.float32)

    fwd = jax.jit(functools.partial(eadan_forward, num_classes=num_classes))
    reg_out, cls_out = fwd(kparams, x)
    jax.block_until_ready((reg_out, cls_out))

    assert reg_out.shape == (batch, 1), reg_out.shape
    assert cls_out.shape == (batch, num_classes), cls_out.shape

    # correctness check against a pure-JAX reference of the original structure
    reg_ref, cls_ref = eadan_reference(params, x)
    assert jnp.allclose(reg_out, reg_ref, atol=5e-3, rtol=5e-3), \
        float(jnp.max(jnp.abs(reg_out - reg_ref)))
    assert jnp.allclose(cls_out, cls_ref, atol=5e-3, rtol=5e-3), \
        float(jnp.max(jnp.abs(cls_out - cls_ref)))

    print("KERNEL_OK")
</pallas_src>

<mosaic_0001>
module attributes {stable_mosaic.version = 11 : i64} {
  func.func @_head_kernel(%arg0: i32, %arg1: memref<2x2048xf32, #tpu.memory_space<vmem>>, %arg2: memref<2048x128xf32, #tpu.memory_space<vmem>>, %arg3: memref<1x128xf32, #tpu.memory_space<vmem>>, %arg4: memref<2x128xf32, #tpu.memory_space<vmem>>) attributes {dimension_semantics = [#tpu.dimension_semantics<arbitrary>], iteration_bounds = array<i64: 1>, scalar_prefetch = 0 : i64, scratch_operands = 0 : i64, tpu.core_type = #tpu.core_type<tc>, window_params = [{pipeline_mode = #tpu.pipeline_mode<synchronous>, transform_indices = @transform_0, window_bounds = array<i64: 2, 2048>}, {pipeline_mode = #tpu.pipeline_mode<synchronous>, transform_indices = @transform_1, window_bounds = array<i64: 2048, 128>}, {pipeline_mode = #tpu.pipeline_mode<synchronous>, transform_indices = @transform_2, window_bounds = array<i64: 1, 128>}, {pipeline_mode = #tpu.pipeline_mode<synchronous>, transform_indices = @transform_3, window_bounds = array<i64: 2, 128>}]} {
    %c0 = arith.constant 0 : index
    %c0_0 = arith.constant 0 : index
    %0 = vector.load %arg1[%c0, %c0_0] : memref<2x2048xf32, #tpu.memory_space<vmem>>, vector<2x2048xf32>
    %c0_1 = arith.constant 0 : index
    %c0_2 = arith.constant 0 : index
    %1 = vector.load %arg2[%c0_1, %c0_2] : memref<2048x128xf32, #tpu.memory_space<vmem>>, vector<2048x128xf32>
    %cst = arith.constant dense<0.000000e+00> : vector<2x128xf32>
    %2 = tpu.matmul %0, %1, %cst {dimension_numbers = #tpu.dot_dimension_numbers<[1], [0], [0], [1], [0, 0, 1, 1], [], []>} : vector<2x2048xf32>, vector<2048x128xf32>, vector<2x128xf32> -> vector<2x128xf32>
    %c0_3 = arith.constant 0 : index
    %c0_4 = arith.constant 0 : index
    %3 = vector.load %arg3[%c0_3, %c0_4] : memref<1x128xf32, #tpu.memory_space<vmem>>, vector<1x128xf32>
    %4 = vector.broadcast %3 : vector<1x128xf32> to vector<2x128xf32>
    %5 = arith.addf %2, %4 : vector<2x128xf32>
    %c0_5 = arith.constant 0 : index
    %c0_6 = arith.constant 0 : index
    %6 = vector.load %arg4[%c0_5, %c0_6] : memref<2x128xf32, #tpu.memory_space<vmem>>, vector<2x128xf32>
    tpu.vector_store %arg4[%c0_5, %c0_6], %5 {strides = array<i32>} : memref<2x128xf32, #tpu.memory_space<vmem>>, vector<2x128xf32>,
    return
  }
  func.func @transform_0(%arg0: i32) -> (i32, i32) {
    %c0_i32 = arith.constant 0 : i32
    %c0_i32_0 = arith.constant 0 : i32
    %c0_i32_1 = arith.constant 0 : i32
    return %c0_i32, %c0_i32_0 : i32, i32
  }
  func.func @transform_1(%arg0: i32) -> (i32, i32) {
    %c0_i32 = arith.constant 0 : i32
    %c0_i32_0 = arith.constant 0 : i32
    %c0_i32_1 = arith.constant 0 : i32
    return %c0_i32, %c0_i32_0 : i32, i32
  }
  func.func @transform_2(%arg0: i32) -> (i32, i32) {
    %c0_i32 = arith.constant 0 : i32
    %c0_i32_0 = arith.constant 0 : i32
    %c0_i32_1 = arith.constant 0 : i32
    return %c0_i32, %c0_i32_0 : i32, i32
  }
  func.func @transform_3(%arg0: i32) -> (i32, i32) {
    %c0_i32 = arith.constant 0 : i32
    %c0_i32_0 = arith.constant 0 : i32
    %c0_i32_1 = arith.constant 0 : i32
    return %c0_i32, %c0_i32_0 : i32, i32
  }
}

module attributes {stable_mosaic.version = 11 : i64} {
  func.func @_fused_conv_kernel(%arg0: i32, %arg1: memref<1x8x8x4xf32, #tpu.memory_space<vmem>>, %arg2: memref<9x4x16xf32, #tpu.memory_space<vmem>>, %arg3: memref<1x16xf32, #tpu.memory_space<vmem>>, %arg4: memref<9x16x16xf32, #tpu.memory_space<vmem>>, %arg5: memref<1x16xf32, #tpu.memory_space<vmem>>, %arg6: memref<9x16x32xf32, #tpu.memory_space<vmem>>, %arg7: memref<1x32xf32, #tpu.memory_space<vmem>>, %arg8: memref<9x32x32xf32, #tpu.memory_space<vmem>>, %arg9: memref<1x32xf32, #tpu.memory_space<vmem>>, %arg10: memref<1x8x8x32xf32, #tpu.memory_space<vmem>>, %arg11: memref<10x10x32xf32, #tpu.memory_space<vmem>>) attributes {dimension_semantics = [#tpu.dimension_semantics<parallel>], iteration_bounds = array<i64: 2>, scalar_prefetch = 0 : i64, scratch_operands = 1 : i64, tpu.core_type = #tpu.core_type<tc>, window_params = [{transform_indices = @transform_0, window_bounds = array<i64: 1, 8, 8, 4>}, {pipeline_mode = #tpu.pipeline_mode<synchronous>, transform_indices = @transform_1, window_bounds = array<i64: 9, 4, 16>}, {pipeline_mode = #tpu.pipeline_mode<synchronous>, transform_indices = @transform_2, window_bounds = array<i64: 1, 16>}, {pipeline_mode = #tpu.pipeline_mode<synchronous>, transform_indices = @transform_3, window_bounds = array<i64: 9, 16, 16>}, {pipeline_mode = #tpu.pipeline_mode<synchronous>, transform_indices = @transform_4, window_bounds = array<i64: 1, 16>}, {pipeline_mode = #tpu.pipeline_mode<synchronous>, transform_indices = @transform_5, window_bounds = array<i64: 9, 16, 32>}, {pipeline_mode = #tpu.pipeline_mode<synchronous>, transform_indices = @transform_6, window_bounds = array<i64: 1, 32>}, {pipeline_mode = #tpu.pipeline_mode<synchronous>, transform_indices = @transform_7, window_bounds = array<i64: 9, 32, 32>}, {pipeline_mode = #tpu.pipeline_mode<synchronous>, transform_indices = @transform_8, window_bounds = array<i64: 1, 32>}, {transform_indices = @transform_9, window_bounds = array<i64: 1, 8, 8, 32>}]} {
    %cst = arith.constant 0.000000e+00 : f32
    %0 = vector.broadcast %cst : f32 to vector<10x10x32xf32>
    %c0 = arith.constant 0 : index
    %c0_0 = arith.constant 0 : index
    %c0_1 = arith.constant 0 : index
    %1 = vector.load %arg11[%c0, %c0_0, %c0_1] : memref<10x10x32xf32, #tpu.memory_space<vmem>>, vector<10x10x32xf32>
    tpu.vector_store %arg11[%c0, %c0_0, %c0_1], %0 {strides = array<i32>} : memref<10x10x32xf32, #tpu.memory_space<vmem>>, vector<10x10x32xf32>,
    %c0_2 = arith.constant 0 : index
    %c0_3 = arith.constant 0 : index
    %c0_4 = arith.constant 0 : index
    %c0_5 = arith.constant 0 : index
    %2 = vector.load %arg1[%c0_2, %c0_3, %c0_4, %c0_5] : memref<1x8x8x4xf32, #tpu.memory_space<vmem>>, vector<1x8x8x4xf32>
    %3 = vector.shape_cast %2 : vector<1x8x8x4xf32> to vector<8x8x4xf32>
    %c1 = arith.constant 1 : index
    %c1_6 = arith.constant 1 : index
    %c0_7 = arith.constant 0 : index
    %4 = vector.load %arg11[%c1, %c1_6, %c0_7] : memref<10x10x32xf32, #tpu.memory_space<vmem>>, vector<8x8x4xf32>
    tpu.vector_store %arg11[%c1, %c1_6, %c0_7], %3 {strides = array<i32>} : memref<10x10x32xf32, #tpu.memory_space<vmem>>, vector<8x8x4xf32>,
    %cst_8 = arith.constant 0.000000e+00 : f32
    %5 = vector.broadcast %cst_8 : f32 to vector<64x16xf32>
    %c0_9 = arith.constant 0 : index
    %c0_10 = arith.constant 0 : index
    %c0_11 = arith.constant 0 : index
    %6 = vector.load %arg11[%c0_9, %c0_10, %c0_11] : memref<10x10x32xf32, #tpu.memory_space<vmem>>, vector<8x8x4xf32>
    %7 = vector.shape_cast %6 : vector<8x8x4xf32> to vector<64x4xf32>
    %c0_12 = arith.constant 0 : index
    %c0_13 = arith.constant 0 : index
    %c0_14 = arith.constant 0 : index
    %8 = vector.load %arg2[%c0_12, %c0_13, %c0_14] : memref<9x4x16xf32, #tpu.memory_space<vmem>>, vector<1x4x16xf32>
    %9 = vector.shape_cast %8 : vector<1x4x16xf32> to vector<4x16xf32>
    %cst_15 = arith.constant dense<0.000000e+00> : vector<64x16xf32>
    %10 = tpu.matmul %7, %9, %cst_15 {dimension_numbers = #tpu.dot_dimension_numbers<[1], [0], [0], [1], [0, 0, 1, 1], [], []>} : vector<64x4xf32>, vector<4x16xf32>, vector<64x16xf32> -> vector<64x16xf32>
    %11 = arith.addf %5, %10 : vector<64x16xf32>
    %c0_16 = arith.constant 0 : index
    %c1_17 = arith.constant 1 : index
    %c0_18 = arith.constant 0 : index
    %12 = vector.load %arg11[%c0_16, %c1_17, %c0_18] : memref<10x10x32xf32, #tpu.memory_space<vmem>>, vector<8x8x4xf32>
    %13 = vector.shape_cast %12 : vector<8x8x4xf32> to vector<64x4xf32>
    %c1_19 = arith.constant 1 : index
    %c0_20 = arith.constant 0 : index
    %c0_21 = arith.constant 0 : index
    %14 = vector.load %arg2[%c1_19, %c0_20, %c0_21] : memref<9x4x16xf32, #tpu.memory_space<vmem>>, vector<1x4x16xf32>
    %15 = vector.shape_cast %14 : vector<1x4x16xf32> to vector<4x16xf32>
    %cst_22 = arith.constant dense<0.000000e+00> : vector<64x16xf32>
    %16 = tpu.matmul %13, %15, %cst_22 {dimension_numbers = #tpu.dot_dimension_numbers<[1], [0], [0], [1], [0, 0, 1, 1], [], []>} : vector<64x4xf32>, vector<4x16xf32>, vector<64x16xf32> -> vector<64x16xf32>
    %17 = arith.addf %11, %16 : vector<64x16xf32>
    %c0_23 = arith.constant 0 : index
    %c2 = arith.constant 2 : index
    %c0_24 = arith.constant 0 : index
    %18 = vector.load %arg11[%c0_23, %c2, %c0_24] : memref<10x10x32xf32, #tpu.memory_space<vmem>>, vector<8x8x4xf32>
    %19 = vector.shape_cast %18 : vector<8x8x4xf32> to vector<64x4xf32>
    %c2_25 = arith.constant 2 : index
    %c0_26 = arith.constant 0 : index
    %c0_27 = arith.constant 0 : index
    %20 = vector.load %arg2[%c2_25, %c0_26, %c0_27] : memref<9x4x16xf32, #tpu.memory_space<vmem>>, vector<1x4x16xf32>
    %21 = vector.shape_cast %20 : vector<1x4x16xf32> to vector<4x16xf32>
    %cst_28 = arith.constant dense<0.000000e+00> : vector<64x16xf32>
    %22 = tpu.matmul %19, %21, %cst_28 {dimension_numbers = #tpu.dot_dimension_numbers<[1], [0], [0], [1], [0, 0, 1, 1], [], []>} : vector<64x4xf32>, vector<4x16xf32>, vector<64x16xf32> -> vector<64x16xf32>
    %23 = arith.addf %17, %22 : vector<64x16xf32>
    %c1_29 = arith.constant 1 : index
    %c0_30 = arith.constant 0 : index
    %c0_31 = arith.constant 0 : index
    %24 = vector.load %arg11[%c1_29, %c0_30, %c0_31] : memref<10x10x32xf32, #tpu.memory_space<vmem>>, vector<8x8x4xf32>
    %25 = vector.shape_cast %24 : vector<8x8x4xf32> to vector<64x4xf32>
    %c3 = arith.constant 3 : index
    %c0_32 = arith.constant 0 : index
    %c0_33 = arith.constant 0 : index
    %26 = vector.load %arg2[%c3, %c0_32, %c0_33] : memref<9x4x16xf32, #tpu.memory_space<vmem>>, vector<1x4x16xf32>
    %27 = vector.shape_cast %26 : vector<1x4x16xf32> to vector<4x16xf32>
    %cst_34 = arith.constant dense<0.000000e+00> : vector<64x16xf32>
    %28 = tpu.matmul %25, %27, %cst_34 {dimension_numbers = #tpu.dot_dimension_numbers<[1], [0], [0], [1], [0, 0, 1, 1], [], []>} : vector<64x4xf32>, vector<4x16xf32>, vector<64x16xf32> -> vector<64x16xf32>
    %29 = arith.addf %23, %28 : vector<64x16xf32>
    %c1_35 = arith.constant 1 : index
    %c1_36 = arith.constant 1 : index
    %c0_37 = arith.constant 0 : index
    %30 = vector.load %arg11[%c1_35, %c1_36, %c0_37] : memref<10x10x32xf32, #tpu.memory_space<vmem>>, vector<8x8x4xf32>
    %31 = vector.shape_cast %30 : vector<8x8x4xf32> to vector<64x4xf32>
    %c4 = arith.constant 4 : index
    %c0_38 = arith.constant 0 : index
    %c0_39 = arith.constant 0 : index
    %32 = vector.load %arg2[%c4, %c0_38, %c0_39] : memref<9x4x16xf32, #tpu.memory_space<vmem>>, vector<1x4x16xf32>
    %33 = vector.shape_cast %32 : vector<1x4x16xf32> to vector<4x16xf32>
    %cst_40 = arith.constant dense<0.000000e+00> : vector<64x16xf32>
    %34 = tpu.matmul %31, %33, %cst_40 {dimension_numbers = #tpu.dot_dimension_numbers<[1], [0], [0], [1], [0, 0, 1, 1], [], []>} : vector<64x4xf32>, vector<4x16xf32>, vector<64x16xf32> -> vector<64x16xf32>
    %35 = arith.addf %29, %34 : vector<64x16xf32>
    %c1_41 = arith.constant 1 : index
    %c2_42 = arith.constant 2 : index
    %c0_43 = arith.constant 0 : index
    %36 = vector.load %arg11[%c1_41, %c2_42, %c0_43] : memref<10x10x32xf32, #tpu.memory_space<vmem>>, vector<8x8x4xf32>
    %37 = vector.shape_cast %36 : vector<8x8x4xf32> to vector<64x4xf32>
    %c5 = arith.constant 5 : index
    %c0_44 = arith.constant 0 : index
    %c0_45 = arith.constant 0 : index
    %38 = vector.load %arg2[%c5, %c0_44, %c0_45] : memref<9x4x16xf32, #tpu.memory_space<vmem>>, vector<1x4x16xf32>
    %39 = vector.shape_cast %38 : vector<1x4x16xf32> to vector<4x16xf32>
    %cst_46 = arith.constant dense<0.000000e+00> : vector<64x16xf32>
    %40 = tpu.matmul %37, %39, %cst_46 {dimension_numbers = #tpu.dot_dimension_numbers<[1], [0], [0], [1], [0, 0, 1, 1], [], []>} : vector<64x4xf32>, vector<4x16xf32>, vector<64x16xf32> -> vector<64x16xf32>
    %41 = arith.addf %35, %40 : vector<64x16xf32>
    %c2_47 = arith.constant 2 : index
    %c0_48 = arith.constant 0 : index
    %c0_49 = arith.constant 0 : index
    %42 = vector.load %arg11[%c2_47, %c0_48, %c0_49] : memref<10x10x32xf32, #tpu.memory_space<vmem>>, vector<8x8x4xf32>
    %43 = vector.shape_cast %42 : vector<8x8x4xf32> to vector<64x4xf32>
    %c6 = arith.constant 6 : index
    %c0_50 = arith.constant 0 : index
    %c0_51 = arith.constant 0 : index
    %44 = vector.load %arg2[%c6, %c0_50, %c0_51] : memref<9x4x16xf32, #tpu.memory_space<vmem>>, vector<1x4x16xf32>
    %45 = vector.shape_cast %44 : vector<1x4x16xf32> to vector<4x16xf32>
    %cst_52 = arith.constant dense<0.000000e+00> : vector<64x16xf32>
    %46 = tpu.matmul %43, %45, %cst_52 {dimension_numbers = #tpu.dot_dimension_numbers<[1], [0], [0], [1], [0, 0, 1, 1], [], []>} : vector<64x4xf32>, vector<4x16xf32>, vector<64x16xf32> -> vector<64x16xf32>
    %47 = arith.addf %41, %46 : vector<64x16xf32>
    %c2_53 = arith.constant 2 : index
    %c1_54 = arith.constant 1 : index
    %c0_55 = arith.constant 0 : index
    %48 = vector.load %arg11[%c2_53, %c1_54, %c0_55] : memref<10x10x32xf32, #tpu.memory_space<vmem>>, vector<8x8x4xf32>
    %49 = vector.shape_cast %48 : vector<8x8x4xf32> to vector<64x4xf32>
    %c7 = arith.constant 7 : index
    %c0_56 = arith.constant 0 : index
    %c0_57 = arith.constant 0 : index
    %50 = vector.load %arg2[%c7, %c0_56, %c0_57] : memref<9x4x16xf32, #tpu.memory_space<vmem>>, vector<1x4x16xf32>
    %51 = vector.shape_cast %50 : vector<1x4x16xf32> to vector<4x16xf32>
    %cst_58 = arith.constant dense<0.000000e+00> : vector<64x16xf32>
    %52 = tpu.matmul %49, %51, %cst_58 {dimension_numbers = #tpu.dot_dimension_numbers<[1], [0], [0], [1], [0, 0, 1, 1], [], []>} : vector<64x4xf32>, vector<4x16xf32>, vector<64x16xf32> -> vector<64x16xf32>
    %53 = arith.addf %47, %52 : vector<64x16xf32>
    %c2_59 = arith.constant 2 : index
    %c2_60 = arith.constant 2 : index
    %c0_61 = arith.constant 0 : index
    %54 = vector.load %arg11[%c2_59, %c2_60, %c0_61] : memref<10x10x32xf32, #tpu.memory_space<vmem>>, vector<8x8x4xf32>
    %55 = vector.shape_cast %54 : vector<8x8x4xf32> to vector<64x4xf32>
    %c8 = arith.constant 8 : index
    %c0_62 = arith.constant 0 : index
    %c0_63 = arith.constant 0 : index
    %56 = vector.load %arg2[%c8, %c0_62, %c0_63] : memref<9x4x16xf32, #tpu.memory_space<vmem>>, vector<1x4x16xf32>
    %57 = vector.shape_cast %56 : vector<1x4x16xf32> to vector<4x16xf32>
    %cst_64 = arith.constant dense<0.000000e+00> : vector<64x16xf32>
    %58 = tpu.matmul %55, %57, %cst_64 {dimension_numbers = #tpu.dot_dimension_numbers<[1], [0], [0], [1], [0, 0, 1, 1], [], []>} : vector<64x4xf32>, vector<4x16xf32>, vector<64x16xf32> -> vector<64x16xf32>
    %59 = arith.addf %53, %58 : vector<64x16xf32>
    %c0_65 = arith.constant 0 : index
    %c0_66 = arith.constant 0 : index
    %60 = vector.load %arg3[%c0_65, %c0_66] : memref<1x16xf32, #tpu.memory_space<vmem>>, vector<1x16xf32>
    %61 = vector.broadcast %60 : vector<1x16xf32> to vector<64x16xf32>
    %62 = arith.addf %59, %61 : vector<64x16xf32>
    %cst_67 = arith.constant 0.000000e+00 : f32
    %63 = vector.broadcast %cst_67 : f32 to vector<64x16xf32>
    %64 = arith.maximumf %62, %63 : vector<64x16xf32>
    %65 = vector.shape_cast %64 : vector<64x16xf32> to vector<8x8x16xf32>
    %c1_68 = arith.constant 1 : index
    %c1_69 = arith.constant 1 : index
    %c0_70 = arith.constant 0 : index
    %66 = vector.load %arg11[%c1_68, %c1_69, %c0_70] : memref<10x10x32xf32, #tpu.memory_space<vmem>>, vector<8x8x16xf32>
    tpu.vector_store %arg11[%c1_68, %c1_69, %c0_70], %65 {strides = array<i32>} : memref<10x10x32xf32, #tpu.memory_space<vmem>>, vector<8x8x16xf32>,
    %cst_71 = arith.constant 0.000000e+00 : f32
    %67 = vector.broadcast %cst_71 : f32 to vector<64x16xf32>
    %c0_72 = arith.constant 0 : index
    %c0_73 = arith.constant 0 : index
    %c0_74 = arith.constant 0 : index
    %68 = vector.load %arg11[%c0_72, %c0_73, %c0_74] : memref<10x10x32xf32, #tpu.memory_space<vmem>>, vector<8x8x16xf32>
    %69 = vector.shape_cast %68 : vector<8x8x16xf32> to vector<64x16xf32>
    %c0_75 = arith.constant 0 : index
    %c0_76 = arith.constant 0 : index
    %c0_77 = arith.constant 0 : index
    %70 = vector.load %arg4[%c0_75, %c0_76, %c0_77] : memref<9x16x16xf32, #tpu.memory_space<vmem>>, vector<1x16x16xf32>
    %71 = vector.shape_cast %70 : vector<1x16x16xf32> to vector<16x16xf32>
    %cst_78 = arith.constant dense<0.000000e+00> : vector<64x16xf32>
    %72 = tpu.matmul %69, %71, %cst_78 {dimension_numbers = #tpu.dot_dimension_numbers<[1], [0], [0], [1], [0, 0, 1, 1], [], []>} : vector<64x16xf32>, vector<16x16xf32>, vector<64x16xf32> -> vector<64x16xf32>
    %73 = arith.addf %67, %72 : vector<64x16xf32>
    %c0_79 = arith.constant 0 : index
    %c1_80 = arith.constant 1 : index
    %c0_81 = arith.constant 0 : index
    %74 = vector.load %arg11[%c0_79, %c1_80, %c0_81] : memref<10x10x32xf32, #tpu.memory_space<vmem>>, vector<8x8x16xf32>
    %75 = vector.shape_cast %74 : vector<8x8x16xf32> to vector<64x16xf32>
    %c1_82 = arith.constant 1 : index
    %c0_83 = arith.constant 0 : index
    %c0_84 = arith.constant 0 : index
    %76 = vector.load %arg4[%c1_82, %c0_83, %c0_84] : memref<9x16x16xf32, #tpu.memory_space<vmem>>, vector<1x16x16xf32>
    %77 = vector.shape_cast %76 : vector<1x16x16xf32> to vector<16x16xf32>
    %cst_85 = arith.constant dense<0.000000e+00> : vector<64x16xf32>
    %78 = tpu.matmul %75, %77, %cst_85 {dimension_numbers = #tpu.dot_dimension_numbers<[1], [0], [0], [1], [0, 0, 1, 1], [], []>} : vector<64x16xf32>, vector<16x16xf32>, vector<64x16xf32> -> vector<64x16xf32>
    %79 = arith.addf %73, %78 : vector<64x16xf32>
    %c0_86 = arith.constant 0 : index
    %c2_87 = arith.constant 2 : index
    %c0_88 = arith.constant 0 : index
    %80 = vector.load %arg11[%c0_86, %c2_87, %c0_88] : memref<10x10x32xf32, #tpu.memory_space<vmem>>, vector<8x8x16xf32>
    %81 = vector.shape_cast %80 : vector<8x8x16xf32> to vector<64x16xf32>
    %c2_89 = arith.constant 2 : index
    %c0_90 = arith.constant 0 : index
    %c0_91 = arith.constant 0 : index
    %82 = vector.load %arg4[%c2_89, %c0_90, %c0_91] : memref<9x16x16xf32, #tpu.memory_space<vmem>>, vector<1x16x16xf32>
    %83 = vector.shape_cast %82 : vector<1x16x16xf32> to vector<16x16xf32>
    %cst_92 = arith.constant dense<0.000000e+00> : vector<64x16xf32>
    %84 = tpu.matmul %81, %83, %cst_92 {dimension_numbers = #tpu.dot_dimension_numbers<[1], [0], [0], [1], [0, 0, 1, 1], [], []>} : vector<64x16xf32>, vector<16x16xf32>, vector<64x16xf32> -> vector<64x16xf32>
    %85 = arith.addf %79, %84 : vector<64x16xf32>
    %c1_93 = arith.constant 1 : index
    %c0_94 = arith.constant 0 : index
    %c0_95 = arith.constant 0 : index
    %86 = vector.load %arg11[%c1_93, %c0_94, %c0_95] : memref<10x10x32xf32, #tpu.memory_space<vmem>>, vector<8x8x16xf32>
    %87 = vector.shape_cast %86 : vector<8x8x16xf32> to vector<64x16xf32>
    %c3_96 = arith.constant 3 : index
    %c0_97 = arith.constant 0 : index
    %c0_98 = arith.constant 0 : index
    %88 = vector.load %arg4[%c3_96, %c0_97, %c0_98] : memref<9x16x16xf32, #tpu.memory_space<vmem>>, vector<1x16x16xf32>
    %89 = vector.shape_cast %88 : vector<1x16x16xf32> to vector<16x16xf32>
    %cst_99 = arith.constant dense<0.000000e+00> : vector<64x16xf32>
    %90 = tpu.matmul %87, %89, %cst_99 {dimension_numbers = #tpu.dot_dimension_numbers<[1], [0], [0], [1], [0, 0, 1, 1], [], []>} : vector<64x16xf32>, vector<16x16xf32>, vector<64x16xf32> -> vector<64x16xf32>
    %91 = arith.addf %85, %90 : vector<64x16xf32>
    %c1_100 = arith.constant 1 : index
    %c1_101 = arith.constant 1 : index
    %c0_102 = arith.constant 0 : index
    %92 = vector.load %arg11[%c1_100, %c1_101, %c0_102] : memref<10x10x32xf32, #tpu.memory_space<vmem>>, vector<8x8x16xf32>
    %93 = vector.shape_cast %92 : vector<8x8x16xf32> to vector<64x16xf32>
    %c4_103 = arith.constant 4 : index
    %c0_104 = arith.constant 0 : index
    %c0_105 = arith.constant 0 : index
    %94 = vector.load %arg4[%c4_103, %c0_104, %c0_105] : memref<9x16x16xf32, #tpu.memory_space<vmem>>, vector<1x16x16xf32>
    %95 = vector.shape_cast %94 : vector<1x16x16xf32> to vector<16x16xf32>
    %cst_106 = arith.constant dense<0.000000e+00> : vector<64x16xf32>
    %96 = tpu.matmul %93, %95, %cst_106 {dimension_numbers = #tpu.dot_dimension_numbers<[1], [0], [0], [1], [0, 0, 1, 1], [], []>} : vector<64x16xf32>, vector<16x16xf32>, vector<64x16xf32> -> vector<64x16xf32>
    %97 = arith.addf %91, %96 : vector<64x16xf32>
    %c1_107 = arith.constant 1 : index
    %c2_108 = arith.constant 2 : index
    %c0_109 = arith.constant 0 : index
    %98 = vector.load %arg11[%c1_107, %c2_108, %c0_109] : memref<10x10x32xf32, #tpu.memory_space<vmem>>, vector<8x8x16xf32>
    %99 = vector.shape_cast %98 : vector<8x8x16xf32> to vector<64x16xf32>
    %c5_110 = arith.constant 5 : index
    %c0_111 = arith.constant 0 : index
    %c0_112 = arith.constant 0 : index
    %100 = vector.load %arg4[%c5_110, %c0_111, %c0_112] : memref<9x16x16xf32, #tpu.memory_space<vmem>>, vector<1x16x16xf32>
    %101 = vector.shape_cast %100 : vector<1x16x16xf32> to vector<16x16xf32>
    %cst_113 = arith.constant dense<0.000000e+00> : vector<64x16xf32>
    %102 = tpu.matmul %99, %101, %cst_113 {dimension_numbers = #tpu.dot_dimension_numbers<[1], [0], [0], [1], [0, 0, 1, 1], [], []>} : vector<64x16xf32>, vector<16x16xf32>, vector<64x16xf32> -> vector<64x16xf32>
    %103 = arith.addf %97, %102 : vector<64x16xf32>
    %c2_114 = arith.constant 2 : index
    %c0_115 = arith.constant 0 : index
    %c0_116 = arith.constant 0 : index
    %104 = vector.load %arg11[%c2_114, %c0_115, %c0_116] : memref<10x10x32xf32, #tpu.memory_space<vmem>>, vector<8x8x16xf32>
    %105 = vector.shape_cast %104 : vector<8x8x16xf32> to vector<64x16xf32>
    %c6_117 = arith.constant 6 : index
    %c0_118 = arith.constant 0 : index
    %c0_119 = arith.constant 0 : index
    %106 = vector.load %arg4[%c6_117, %c0_118, %c0_119] : memref<9x16x16xf32, #tpu.memory_space<vmem>>, vector<1x16x16xf32>
    %107 = vector.shape_cast %106 : vector<1x16x16xf32> to vector<16x16xf32>
    %cst_120 = arith.constant dense<0.000000e+00> : vector<64x16xf32>
    %108 = tpu.matmul %105, %107, %cst_120 {dimension_numbers = #tpu.dot_dimension_numbers<[1], [0], [0], [1], [0, 0, 1, 1], [], []>} : vector<64x16xf32>, vector<16x16xf32>, vector<64x16xf32> -> vector<64x16xf32>
    %109 = arith.addf %103, %108 : vector<64x16xf32>
    %c2_121 = arith.constant 2 : index
    %c1_122 = arith.constant 1 : index
    %c0_123 = arith.constant 0 : index
    %110 = vector.load %arg11[%c2_121, %c1_122, %c0_123] : memref<10x10x32xf32, #tpu.memory_space<vmem>>, vector<8x8x16xf32>
    %111 = vector.shape_cast %110 : vector<8x8x16xf32> to vector<64x16xf32>
    %c7_124 = arith.constant 7 : index
    %c0_125 = arith.constant 0 : index
    %c0_126 = arith.constant 0 : index
    %112 = vector.load %arg4[%c7_124, %c0_125, %c0_126] : memref<9x16x16xf32, #tpu.memory_space<vmem>>, vector<1x16x16xf32>
    %113 = vector.shape_cast %112 : vector<1x16x16xf32> to vector<16x16xf32>
    %cst_127 = arith.constant dense<0.000000e+00> : vector<64x16xf32>
    %114 = tpu.matmul %111, %113, %cst_127 {dimension_numbers = #tpu.dot_dimension_numbers<[1], [0], [0], [1], [0, 0, 1, 1], [], []>} : vector<64x16xf32>, vector<16x16xf32>, vector<64x16xf32> -> vector<64x16xf32>
    %115 = arith.addf %109, %114 : vector<64x16xf32>
    %c2_128 = arith.constant 2 : index
    %c2_129 = arith.constant 2 : index
    %c0_130 = arith.constant 0 : index
    %116 = vector.load %arg11[%c2_128, %c2_129, %c0_130] : memref<10x10x32xf32, #tpu.memory_space<vmem>>, vector<8x8x16xf32>
    %117 = vector.shape_cast %116 : vector<8x8x16xf32> to vector<64x16xf32>
    %c8_131 = arith.constant 8 : index
    %c0_132 = arith.constant 0 : index
    %c0_133 = arith.constant 0 : index
    %118 = vector.load %arg4[%c8_131, %c0_132, %c0_133] : memref<9x16x16xf32, #tpu.memory_space<vmem>>, vector<1x16x16xf32>
    %119 = vector.shape_cast %118 : vector<1x16x16xf32> to vector<16x16xf32>
    %cst_134 = arith.constant dense<0.000000e+00> : vector<64x16xf32>
    %120 = tpu.matmul %117, %119, %cst_134 {dimension_numbers = #tpu.dot_dimension_numbers<[1], [0], [0], [1], [0, 0, 1, 1], [], []>} : vector<64x16xf32>, vector<16x16xf32>, vector<64x16xf32> -> vector<64x16xf32>
    %121 = arith.addf %115, %120 : vector<64x16xf32>
    %c0_135 = arith.constant 0 : index
    %c0_136 = arith.constant 0 : index
    %122 = vector.load %arg5[%c0_135, %c0_136] : memref<1x16xf32, #tpu.memory_space<vmem>>, vector<1x16xf32>
    %123 = vector.broadcast %122 : vector<1x16xf32> to vector<64x16xf32>
    %124 = arith.addf %121, %123 : vector<64x16xf32>
    %cst_137 = arith.constant 0.000000e+00 : f32
    %125 = vector.broadcast %cst_137 : f32 to vector<64x16xf32>
    %126 = arith.maximumf %124, %125 : vector<64x16xf32>
    %127 = vector.shape_cast %126 : vector<64x16xf32> to vector<8x8x16xf32>
    %c1_138 = arith.constant 1 : index
    %c1_139 = arith.constant 1 : index
    %c0_140 = arith.constant 0 : index
    %128 = vector.load %arg11[%c1_138, %c1_139, %c0_140] : memref<10x10x32xf32, #tpu.memory_space<vmem>>, vector<8x8x16xf32>
    tpu.vector_store %arg11[%c1_138, %c1_139, %c0_140], %127 {strides = array<i32>} : memref<10x10x32xf32, #tpu.memory_space<vmem>>, vector<8x8x16xf32>,
    %cst_141 = arith.constant 0.000000e+00 : f32
    %129 = vector.broadcast %cst_141 : f32 to vector<64x32xf32>
    %c0_142 = arith.constant 0 : index
    %c0_143 = arith.constant 0 : index
    %c0_144 = arith.constant 0 : index
    %130 = vector.load %arg11[%c0_142, %c0_143, %c0_144] : memref<10x10x32xf32, #tpu.memory_space<vmem>>, vector<8x8x16xf32>
    %131 = vector.shape_cast %130 : vector<8x8x16xf32> to vector<64x16xf32>
    %c0_145 = arith.constant 0 : index
    %c0_146 = arith.constant 0 : index
    %c0_147 = arith.constant 0 : index
    %132 = vector.load %arg6[%c0_145, %c0_146, %c0_147] : memref<9x16x32xf32, #tpu.memory_space<vmem>>, vector<1x16x32xf32>
    %133 = vector.shape_cast %132 : vector<1x16x32xf32> to vector<16x32xf32>
    %cst_148 = arith.constant dense<0.000000e+00> : vector<64x32xf32>
    %134 = tpu.matmul %131, %133, %cst_148 {dimension_numbers = #tpu.dot_dimension_numbers<[1], [0], [0], [1], [0, 0, 1, 1], [], []>} : vector<64x16xf32>, vector<16x32xf32>, vector<64x32xf32> -> vector<64x32xf32>
    %135 = arith.addf %129, %134 : vector<64x32xf32>
    %c0_149 = arith.constant 0 : index
    %c1_150 = arith.constant 1 : index
    %c0_151 = arith.constant 0 : index
    %136 = vector.load %arg11[%c0_149, %c1_150, %c0_151] : memref<10x10x32xf32, #tpu.memory_space<vmem>>, vector<8x8x16xf32>
    %137 = vector.shape_cast %136 : vector<8x8x16xf32> to vector<64x16xf32>
    %c1_152 = arith.constant 1 : index
    %c0_153 = arith.constant 0 : index
    %c0_154 = arith.constant 0 : index
    %138 = vector.load %arg6[%c1_152, %c0_153, %c0_154] : memref<9x16x32xf32, #tpu.memory_space<vmem>>, vector<1x16x32xf32>
    %139 = vector.shape_cast %138 : vector<1x16x32xf32> to vector<16x32xf32>
    %cst_155 = arith.constant dense<0.000000e+00> : vector<64x32xf32>
    %140 = tpu.matmul %137, %139, %cst_155 {dimension_numbers = #tpu.dot_dimension_numbers<[1], [0], [0], [1], [0, 0, 1, 1], [], []>} : vector<64x16xf32>, vector<16x32xf32>, vector<64x32xf32> -> vector<64x32xf32>
    %141 = arith.addf %135, %140 : vector<64x32xf32>
    %c0_156 = arith.constant 0 : index
    %c2_157 = arith.constant 2 : index
    %c0_158 = arith.constant 0 : index
    %142 = vector.load %arg11[%c0_156, %c2_157, %c0_158] : memref<10x10x32xf32, #tpu.memory_space<vmem>>, vector<8x8x16xf32>
    %143 = vector.shape_cast %142 : vector<8x8x16xf32> to vector<64x16xf32>
    %c2_159 = arith.constant 2 : index
    %c0_160 = arith.constant 0 : index
    %c0_161 = arith.constant 0 : index
    %144 = vector.load %arg6[%c2_159, %c0_160, %c0_161] : memref<9x16x32xf32, #tpu.memory_space<vmem>>, vector<1x16x32xf32>
    %145 = vector.shape_cast %144 : vector<1x16x32xf32> to vector<16x32xf32>
    %cst_162 = arith.constant dense<0.000000e+00> : vector<64x32xf32>
    %146 = tpu.matmul %143, %145, %cst_162 {dimension_numbers = #tpu.dot_dimension_numbers<[1], [0], [0], [1], [0, 0, 1, 1], [], []>} : vector<64x16xf32>, vector<16x32xf32>, vector<64x32xf32> -> vector<64x32xf32>
    %147 = arith.addf %141, %146 : vector<64x32xf32>
    %c1_163 = arith.constant 1 : index
    %c0_164 = arith.constant 0 : index
    %c0_165 = arith.constant 0 : index
    %148 = vector.load %arg11[%c1_163, %c0_164, %c0_165] : memref<10x10x32xf32, #tpu.memory_space<vmem>>, vector<8x8x16xf32>
    %149 = vector.shape_cast %148 : vector<8x8x16xf32> to vector<64x16xf32>
    %c3_166 = arith.constant 3 : index
    %c0_167 = arith.constant 0 : index
    %c0_168 = arith.constant 0 : index
    %150 = vector.load %arg6[%c3_166, %c0_167, %c0_168] : memref<9x16x32xf32, #tpu.memory_space<vmem>>, vector<1x16x32xf32>
    %151 = vector.shape_cast %150 : vector<1x16x32xf32> to vector<16x32xf32>
    %cst_169 = arith.constant dense<0.000000e+00> : vector<64x32xf32>
    %152 = tpu.matmul %149, %151, %cst_169 {dimension_numbers = #tpu.dot_dimension_numbers<[1], [0], [0], [1], [0, 0, 1, 1], [], []>} : vector<64x16xf32>, vector<16x32xf32>, vector<64x32xf32> -> vector<64x32xf32>
    %153 = arith.addf %147, %152 : vector<64x32xf32>
    %c1_170 = arith.constant 1 : index
    %c1_171 = arith.constant 1 : index
    %c0_172 = arith.constant 0 : index
    %154 = vector.load %arg11[%c1_170, %c1_171, %c0_172] : memref<10x10x32xf32, #tpu.memory_space<vmem>>, vector<8x8x16xf32>
    %155 = vector.shape_cast %154 : vector<8x8x16xf32> to vector<64x16xf32>
    %c4_173 = arith.constant 4 : index
    %c0_174 = arith.constant 0 : index
    %c0_175 = arith.constant 0 : index
    %156 = vector.load %arg6[%c4_173, %c0_174, %c0_175] : memref<9x16x32xf32, #tpu.memory_space<vmem>>, vector<1x16x32xf32>
    %157 = vector.shape_cast %156 : vector<1x16x32xf32> to vector<16x32xf32>
    %cst_176 = arith.constant dense<0.000000e+00> : vector<64x32xf32>
    %158 = tpu.matmul %155, %157, %cst_176 {dimension_numbers = #tpu.dot_dimension_numbers<[1], [0], [0], [1], [0, 0, 1, 1], [], []>} : vector<64x16xf32>, vector<16x32xf32>, vector<64x32xf32> -> vector<64x32xf32>
    %159 = arith.addf %153, %158 : vector<64x32xf32>
    %c1_177 = arith.constant 1 : index
    %c2_178 = arith.constant 2 : index
    %c0_179 = arith.constant 0 : index
    %160 = vector.load %arg11[%c1_177, %c2_178, %c0_179] : memref<10x10x32xf32, #tpu.memory_space<vmem>>, vector<8x8x16xf32>
    %161 = vector.shape_cast %160 : vector<8x8x16xf32> to vector<64x16xf32>
    %c5_180 = arith.constant 5 : index
    %c0_181 = arith.constant 0 : index
    %c0_182 = arith.constant 0 : index
    %162 = vector.load %arg6[%c5_180, %c0_181, %c0_182] : memref<9x16x32xf32, #tpu.memory_space<vmem>>, vector<1x16x32xf32>
    %163 = vector.shape_cast %162 : vector<1x16x32xf32> to vector<16x32xf32>
    %cst_183 = arith.constant dense<0.000000e+00> : vector<64x32xf32>
    %164 = tpu.matmul %161, %163, %cst_183 {dimension_numbers = #tpu.dot_dimension_numbers<[1], [0], [0], [1], [0, 0, 1, 1], [], []>} : vector<64x16xf32>, vector<16x32xf32>, vector<64x32xf32> -> vector<64x32xf32>
    %165 = arith.addf %159, %164 : vector<64x32xf32>
    %c2_184 = arith.constant 2 : index
    %c0_185 = arith.constant 0 : index
    %c0_186 = arith.constant 0 : index
    %166 = vector.load %arg11[%c2_184, %c0_185, %c0_186] : memref<10x10x32xf32, #tpu.memory_space<vmem>>, vector<8x8x16xf32>
    %167 = vector.shape_cast %166 : vector<8x8x16xf32> to vector<64x16xf32>
    %c6_187 = arith.constant 6 : index
    %c0_188 = arith.constant 0 : index
    %c0_189 = arith.constant 0 : index
    %168 = vector.load %arg6[%c6_187, %c0_188, %c0_189] : memref<9x16x32xf32, #tpu.memory_space<vmem>>, vector<1x16x32xf32>
    %169 = vector.shape_cast %168 : vector<1x16x32xf32> to vector<16x32xf32>
    %cst_190 = arith.constant dense<0.000000e+00> : vector<64x32xf32>
    %170 = tpu.matmul %167, %169, %cst_190 {dimension_numbers = #tpu.dot_dimension_numbers<[1], [0], [0], [1], [0, 0, 1, 1], [], []>} : vector<64x16xf32>, vector<16x32xf32>, vector<64x32xf32> -> vector<64x32xf32>
    %171 = arith.addf %165, %170 : vector<64x32xf32>
    %c2_191 = arith.constant 2 : index
    %c1_192 = arith.constant 1 : index
    %c0_193 = arith.constant 0 : index
    %172 = vector.load %arg11[%c2_191, %c1_192, %c0_193] : memref<10x10x32xf32, #tpu.memory_space<vmem>>, vector<8x8x16xf32>
    %173 = vector.shape_cast %172 : vector<8x8x16xf32> to vector<64x16xf32>
    %c7_194 = arith.constant 7 : index
    %c0_195 = arith.constant 0 : index
    %c0_196 = arith.constant 0 : index
    %174 = vector.load %arg6[%c7_194, %c0_195, %c0_196] : memref<9x16x32xf32, #tpu.memory_space<vmem>>, vector<1x16x32xf32>
    %175 = vector.shape_cast %174 : vector<1x16x32xf32> to vector<16x32xf32>
    %cst_197 = arith.constant dense<0.000000e+00> : vector<64x32xf32>
    %176 = tpu.matmul %173, %175, %cst_197 {dimension_numbers = #tpu.dot_dimension_numbers<[1], [0], [0], [1], [0, 0, 1, 1], [], []>} : vector<64x16xf32>, vector<16x32xf32>, vector<64x32xf32> -> vector<64x32xf32>
    %177 = arith.addf %171, %176 : vector<64x32xf32>
    %c2_198 = arith.constant 2 : index
    %c2_199 = arith.constant 2 : index
    %c0_200 = arith.constant 0 : index
    %178 = vector.load %arg11[%c2_198, %c2_199, %c0_200] : memref<10x10x32xf32, #tpu.memory_space<vmem>>, vector<8x8x16xf32>
    %179 = vector.shape_cast %178 : vector<8x8x16xf32> to vector<64x16xf32>
    %c8_201 = arith.constant 8 : index
    %c0_202 = arith.constant 0 : index
    %c0_203 = arith.constant 0 : index
    %180 = vector.load %arg6[%c8_201, %c0_202, %c0_203] : memref<9x16x32xf32, #tpu.memory_space<vmem>>, vector<1x16x32xf32>
    %181 = vector.shape_cast %180 : vector<1x16x32xf32> to vector<16x32xf32>
    %cst_204 = arith.constant dense<0.000000e+00> : vector<64x32xf32>
    %182 = tpu.matmul %179, %181, %cst_204 {dimension_numbers = #tpu.dot_dimension_numbers<[1], [0], [0], [1], [0, 0, 1, 1], [], []>} : vector<64x16xf32>, vector<16x32xf32>, vector<64x32xf32> -> vector<64x32xf32>
    %183 = arith.addf %177, %182 : vector<64x32xf32>
    %c0_205 = arith.constant 0 : index
    %c0_206 = arith.constant 0 : index
    %184 = vector.load %arg7[%c0_205, %c0_206] : memref<1x32xf32, #tpu.memory_space<vmem>>, vector<1x32xf32>
    %185 = vector.broadcast %184 : vector<1x32xf32> to vector<64x32xf32>
    %186 = arith.addf %183, %185 : vector<64x32xf32>
    %cst_207 = arith.constant 0.000000e+00 : f32
    %187 = vector.broadcast %cst_207 : f32 to vector<64x32xf32>
    %188 = arith.maximumf %186, %187 : vector<64x32xf32>
    %189 = vector.shape_cast %188 : vector<64x32xf32> to vector<8x8x32xf32>
    %c1_208 = arith.constant 1 : index
    %c1_209 = arith.constant 1 : index
    %c0_210 = arith.constant 0 : index
    %190 = vector.load %arg11[%c1_208, %c1_209, %c0_210] : memref<10x10x32xf32, #tpu.memory_space<vmem>>, vector<8x8x32xf32>
    tpu.vector_store %arg11[%c1_208, %c1_209, %c0_210], %189 {strides = array<i32>} : memref<10x10x32xf32, #tpu.memory_space<vmem>>, vector<8x8x32xf32>,
    %cst_211 = arith.constant 0.000000e+00 : f32
    %191 = vector.broadcast %cst_211 : f32 to vector<64x32xf32>
    %c0_212 = arith.constant 0 : index
    %c0_213 = arith.constant 0 : index
    %c0_214 = arith.constant 0 : index
    %192 = vector.load %arg11[%c0_212, %c0_213, %c0_214] : memref<10x10x32xf32, #tpu.memory_space<vmem>>, vector<8x8x32xf32>
    %193 = vector.shape_cast %192 : vector<8x8x32xf32> to vector<64x32xf32>
    %c0_215 = arith.constant 0 : index
    %c0_216 = arith.constant 0 : index
    %c0_217 = arith.constant 0 : index
    %194 = vector.load %arg8[%c0_215, %c0_216, %c0_217] : memref<9x32x32xf32, #tpu.memory_space<vmem>>, vector<1x32x32xf32>
    %195 = vector.shape_cast %194 : vector<1x32x32xf32> to vector<32x32xf32>
    %cst_218 = arith.constant dense<0.000000e+00> : vector<64x32xf32>
    %196 = tpu.matmul %193, %195, %cst_218 {dimension_numbers = #tpu.dot_dimension_numbers<[1], [0], [0], [1], [0, 0, 1, 1], [], []>} : vector<64x32xf32>, vector<32x32xf32>, vector<64x32xf32> -> vector<64x32xf32>
    %197 = arith.addf %191, %196 : vector<64x32xf32>
    %c0_219 = arith.constant 0 : index
    %c1_220 = arith.constant 1 : index
    %c0_221 = arith.constant 0 : index
    %198 = vector.load %arg11[%c0_219, %c1_220, %c0_221] : memref<10x10x32xf32, #tpu.memory_space<vmem>>, vector<8x8x32xf32>
    %199 = vector.shape_cast %198 : vector<8x8x32xf32> to vector<64x32xf32>
    %c1_222 = arith.constant 1 : index
    %c0_223 = arith.constant 0 : index
    %c0_224 = arith.constant 0 : index
    %200 = vector.load %arg8[%c1_222, %c0_223, %c0_224] : memref<9x32x32xf32, #tpu.memory_space<vmem>>, vector<1x32x32xf32>
    %201 = vector.shape_cast %200 : vector<1x32x32xf32> to vector<32x32xf32>
    %cst_225 = arith.constant dense<0.000000e+00> : vector<64x32xf32>
    %202 = tpu.matmul %199, %201, %cst_225 {dimension_numbers = #tpu.dot_dimension_numbers<[1], [0], [0], [1], [0, 0, 1, 1], [], []>} : vector<64x32xf32>, vector<32x32xf32>, vector<64x32xf32> -> vector<64x32xf32>
    %203 = arith.addf %197, %202 : vector<64x32xf32>
    %c0_226 = arith.constant 0 : index
    %c2_227 = arith.constant 2 : index
    %c0_228 = arith.constant 0 : index
    %204 = vector.load %arg11[%c0_226, %c2_227, %c0_228] : memref<10x10x32xf32, #tpu.memory_space<vmem>>, vector<8x8x32xf32>
    %205 = vector.shape_cast %204 : vector<8x8x32xf32> to vector<64x32xf32>
    %c2_229 = arith.constant 2 : index
    %c0_230 = arith.constant 0 : index
    %c0_231 = arith.constant 0 : index
    %206 = vector.load %arg8[%c2_229, %c0_230, %c0_231] : memref<9x32x32xf32, #tpu.memory_space<vmem>>, vector<1x32x32xf32>
    %207 = vector.shape_cast %206 : vector<1x32x32xf32> to vector<32x32xf32>
    %cst_232 = arith.constant dense<0.000000e+00> : vector<64x32xf32>
    %208 = tpu.matmul %205, %207, %cst_232 {dimension_numbers = #tpu.dot_dimension_numbers<[1], [0], [0], [1], [0, 0, 1, 1], [], []>} : vector<64x32xf32>, vector<32x32xf32>, vector<64x32xf32> -> vector<64x32xf32>
    %209 = arith.addf %203, %208 : vector<64x32xf32>
    %c1_233 = arith.constant 1 : index
    %c0_234 = arith.constant 0 : index
    %c0_235 = arith.constant 0 : index
    %210 = vector.load %arg11[%c1_233, %c0_234, %c0_235] : memref<10x10x32xf32, #tpu.memory_space<vmem>>, vector<8x8x32xf32>
    %211 = vector.shape_cast %210 : vector<8x8x32xf32> to vector<64x32xf32>
    %c3_236 = arith.constant 3 : index
    %c0_237 = arith.constant 0 : index
    %c0_238 = arith.constant 0 : index
    %212 = vector.load %arg8[%c3_236, %c0_237, %c0_238] : memref<9x32x32xf32, #tpu.memory_space<vmem>>, vector<1x32x32xf32>
    %213 = vector.shape_cast %212 : vector<1x32x32xf32> to vector<32x32xf32>
    %cst_239 = arith.constant dense<0.000000e+00> : vector<64x32xf32>
    %214 = tpu.matmul %211, %213, %cst_239 {dimension_numbers = #tpu.dot_dimension_numbers<[1], [0], [0], [1], [0, 0, 1, 1], [], []>} : vector<64x32xf32>, vector<32x32xf32>, vector<64x32xf32> -> vector<64x32xf32>
    %215 = arith.addf %209, %214 : vector<64x32xf32>
    %c1_240 = arith.constant 1 : index
    %c1_241 = arith.constant 1 : index
    %c0_242 = arith.constant 0 : index
    %216 = vector.load %arg11[%c1_240, %c1_241, %c0_242] : memref<10x10x32xf32, #tpu.memory_space<vmem>>, vector<8x8x32xf32>
    %217 = vector.shape_cast %216 : vector<8x8x32xf32> to vector<64x32xf32>
    %c4_243 = arith.constant 4 : index
    %c0_244 = arith.constant 0 : index
    %c0_245 = arith.constant 0 : index
    %218 = vector.load %arg8[%c4_243, %c0_244, %c0_245] : memref<9x32x32xf32, #tpu.memory_space<vmem>>, vector<1x32x32xf32>
    %219 = vector.shape_cast %218 : vector<1x32x32xf32> to vector<32x32xf32>
    %cst_246 = arith.constant dense<0.000000e+00> : vector<64x32xf32>
    %220 = tpu.matmul %217, %219, %cst_246 {dimension_numbers = #tpu.dot_dimension_numbers<[1], [0], [0], [1], [0, 0, 1, 1], [], []>} : vector<64x32xf32>, vector<32x32xf32>, vector<64x32xf32> -> vector<64x32xf32>
    %221 = arith.addf %215, %220 : vector<64x32xf32>
    %c1_247 = arith.constant 1 : index
    %c2_248 = arith.constant 2 : index
    %c0_249 = arith.constant 0 : index
    %222 = vector.load %arg11[%c1_247, %c2_248, %c0_249] : memref<10x10x32xf32, #tpu.memory_space<vmem>>, vector<8x8x32xf32>
    %223 = vector.shape_cast %222 : vector<8x8x32xf32> to vector<64x32xf32>
    %c5_250 = arith.constant 5 : index
    %c0_251 = arith.constant 0 : index
    %c0_252 = arith.constant 0 : index
    %224 = vector.load %arg8[%c5_250, %c0_251, %c0_252] : memref<9x32x32xf32, #tpu.memory_space<vmem>>, vector<1x32x32xf32>
    %225 = vector.shape_cast %224 : vector<1x32x32xf32> to vector<32x32xf32>
    %cst_253 = arith.constant dense<0.000000e+00> : vector<64x32xf32>
    %226 = tpu.matmul %223, %225, %cst_253 {dimension_numbers = #tpu.dot_dimension_numbers<[1], [0], [0], [1], [0, 0, 1, 1], [], []>} : vector<64x32xf32>, vector<32x32xf32>, vector<64x32xf32> -> vector<64x32xf32>
    %227 = arith.addf %221, %226 : vector<64x32xf32>
    %c2_254 = arith.constant 2 : index
    %c0_255 = arith.constant 0 : index
    %c0_256 = arith.constant 0 : index
    %228 = vector.load %arg11[%c2_254, %c0_255, %c0_256] : memref<10x10x32xf32, #tpu.memory_space<vmem>>, vector<8x8x32xf32>
    %229 = vector.shape_cast %228 : vector<8x8x32xf32> to vector<64x32xf32>
    %c6_257 = arith.constant 6 : index
    %c0_258 = arith.constant 0 : index
    %c0_259 = arith.constant 0 : index
    %230 = vector.load %arg8[%c6_257, %c0_258, %c0_259] : memref<9x32x32xf32, #tpu.memory_space<vmem>>, vector<1x32x32xf32>
    %231 = vector.shape_cast %230 : vector<1x32x32xf32> to vector<32x32xf32>
    %cst_260 = arith.constant dense<0.000000e+00> : vector<64x32xf32>
    %232 = tpu.matmul %229, %231, %cst_260 {dimension_numbers = #tpu.dot_dimension_numbers<[1], [0], [0], [1], [0, 0, 1, 1], [], []>} : vector<64x32xf32>, vector<32x32xf32>, vector<64x32xf32> -> vector<64x32xf32>
    %233 = arith.addf %227, %232 : vector<64x32xf32>
    %c2_261 = arith.constant 2 : index
    %c1_262 = arith.constant 1 : index
    %c0_263 = arith.constant 0 : index
    %234 = vector.load %arg11[%c2_261, %c1_262, %c0_263] : memref<10x10x32xf32, #tpu.memory_space<vmem>>, vector<8x8x32xf32>
    %235 = vector.shape_cast %234 : vector<8x8x32xf32> to vector<64x32xf32>
    %c7_264 = arith.constant 7 : index
    %c0_265 = arith.constant 0 : index
    %c0_266 = arith.constant 0 : index
    %236 = vector.load %arg8[%c7_264, %c0_265, %c0_266] : memref<9x32x32xf32, #tpu.memory_space<vmem>>, vector<1x32x32xf32>
    %237 = vector.shape_cast %236 : vector<1x32x32xf32> to vector<32x32xf32>
    %cst_267 = arith.constant dense<0.000000e+00> : vector<64x32xf32>
    %238 = tpu.matmul %235, %237, %cst_267 {dimension_numbers = #tpu.dot_dimension_numbers<[1], [0], [0], [1], [0, 0, 1, 1], [], []>} : vector<64x32xf32>, vector<32x32xf32>, vector<64x32xf32> -> vector<64x32xf32>
    %239 = arith.addf %233, %238 : vector<64x32xf32>
    %c2_268 = arith.constant 2 : index
    %c2_269 = arith.constant 2 : index
    %c0_270 = arith.constant 0 : index
    %240 = vector.load %arg11[%c2_268, %c2_269, %c0_270] : memref<10x10x32xf32, #tpu.memory_space<vmem>>, vector<8x8x32xf32>
    %241 = vector.shape_cast %240 : vector<8x8x32xf32> to vector<64x32xf32>
    %c8_271 = arith.constant 8 : index
    %c0_272 = arith.constant 0 : index
    %c0_273 = arith.constant 0 : index
    %242 = vector.load %arg8[%c8_271, %c0_272, %c0_273] : memref<9x32x32xf32, #tpu.memory_space<vmem>>, vector<1x32x32xf32>
    %243 = vector.shape_cast %242 : vector<1x32x32xf32> to vector<32x32xf32>
    %cst_274 = arith.constant dense<0.000000e+00> : vector<64x32xf32>
    %244 = tpu.matmul %241, %243, %cst_274 {dimension_numbers = #tpu.dot_dimension_numbers<[1], [0], [0], [1], [0, 0, 1, 1], [], []>} : vector<64x32xf32>, vector<32x32xf32>, vector<64x32xf32> -> vector<64x32xf32>
    %245 = arith.addf %239, %244 : vector<64x32xf32>
    %c0_275 = arith.constant 0 : index
    %c0_276 = arith.constant 0 : index
    %246 = vector.load %arg9[%c0_275, %c0_276] : memref<1x32xf32, #tpu.memory_space<vmem>>, vector<1x32xf32>
    %247 = vector.broadcast %246 : vector<1x32xf32> to vector<64x32xf32>
    %248 = arith.addf %245, %247 : vector<64x32xf32>
    %cst_277 = arith.constant 0.000000e+00 : f32
    %249 = vector.broadcast %cst_277 : f32 to vector<64x32xf32>
    %250 = arith.maximumf %248, %249 : vector<64x32xf32>
    %251 = vector.shape_cast %250 : vector<64x32xf32> to vector<8x8x32xf32>
    %c0_278 = arith.constant 0 : index
    %c0_279 = arith.constant 0 : index
    %c0_280 = arith.constant 0 : index
    %c0_281 = arith.constant 0 : index
    %252 = vector.load %arg10[%c0_278, %c0_279, %c0_280, %c0_281] : memref<1x8x8x32xf32, #tpu.memory_space<vmem>>, vector<1x8x8x32xf32>
    %253 = vector.shape_cast %252 : vector<1x8x8x32xf32> to vector<8x8x32xf32>
    %254 = vector.shape_cast %251 : vector<8x8x32xf32> to vector<1x8x8x32xf32>
    tpu.vector_store %arg10[%c0_278, %c0_279, %c0_280, %c0_281], %254 {strides = array<i32>} : memref<1x8x8x32xf32, #tpu.memory_space<vmem>>, vector<1x8x8x32xf32>,
    return
  }
  func.func @transform_0(%arg0: i32) -> (i32, i32, i32, i32) {
    %c0_i32 = arith.constant 0 : i32
    %c0_i32_0 = arith.constant 0 : i32
    %c0_i32_1 = arith.constant 0 : i32
    %c0_i32_2 = arith.constant 0 : i32
    return %arg0, %c0_i32, %c0_i32_0, %c0_i32_1 : i32, i32, i32, i32
  }
  func.func @transform_1(%arg0: i32) -> (i32, i32, i32) {
    %c0_i32 = arith.constant 0 : i32
    %c0_i32_0 = arith.constant 0 : i32
    %c0_i32_1 = arith.constant 0 : i32
    %c0_i32_2 = arith.constant 0 : i32
    return %c0_i32, %c0_i32_0, %c0_i32_1 : i32, i32, i32
  }
  func.func @transform_2(%arg0: i32) -> (i32, i32) {
    %c0_i32 = arith.constant 0 : i32
    %c0_i32_0 = arith.constant 0 : i32
    %c0_i32_1 = arith.constant 0 : i32
    return %c0_i32, %c0_i32_0 : i32, i32
  }
  func.func @transform_3(%arg0: i32) -> (i32, i32, i32) {
    %c0_i32 = arith.constant 0 : i32
    %c0_i32_0 = arith.constant 0 : i32
    %c0_i32_1 = arith.constant 0 : i32
    %c0_i32_2 = arith.constant 0 : i32
    return %c0_i32, %c0_i32_0, %c0_i32_1 : i32, i32, i32
  }
  func.func @transform_4(%arg0: i32) -> (i32, i32) {
    %c0_i32 = arith.constant 0 : i32
    %c0_i32_0 = arith.constant 0 : i32
    %c0_i32_1 = arith.constant 0 : i32
    return %c0_i32, %c0_i32_0 : i32, i32
  }
  func.func @transform_5(%arg0: i32) -> (i32, i32, i32) {
    %c0_i32 = arith.constant 0 : i32
    %c0_i32_0 = arith.constant 0 : i32
    %c0_i32_1 = arith.constant 0 : i32
    %c0_i32_2 = arith.constant 0 : i32
    return %c0_i32, %c0_i32_0, %c0_i32_1 : i32, i32, i32
  }
  func.func @transform_6(%arg0: i32) -> (i32, i32) {
    %c0_i32 = arith.constant 0 : i32
    %c0_i32_0 = arith.constant 0 : i32
    %c0_i32_1 = arith.constant 0 : i32
    return %c0_i32, %c0_i32_0 : i32, i32
  }
  func.func @transform_7(%arg0: i32) -> (i32, i32, i32) {
    %c0_i32 = arith.constant 0 : i32
    %c0_i32_0 = arith.constant 0 : i32
    %c0_i32_1 = arith.constant 0 : i32
    %c0_i32_2 = arith.constant 0 : i32
    return %c0_i32, %c0_i32_0, %c0_i32_1 : i32, i32, i32
  }
  func.func @transform_8(%arg0: i32) -> (i32, i32) {
    %c0_i32 = arith.constant 0 : i32
    %c0_i32_0 = arith.constant 0 : i32
    %c0_i32_1 = arith.constant 0 : i32
    return %c0_i32, %c0_i32_0 : i32, i32
  }
  func.func @transform_9(%arg0: i32) -> (i32, i32, i32, i32) {
    %c0_i32 = arith.constant 0 : i32
    %c0_i32_0 = arith.constant 0 : i32
    %c0_i32_1 = arith.constant 0 : i32
    %c0_i32_2 = arith.constant 0 : i32
    return %arg0, %c0_i32, %c0_i32_0, %c0_i32_1 : i32, i32, i32, i32
  }
}

</mosaic_0001>

<llo_original>
// kernel: eadan_forward.3
$region0: #{eadan_forward.3}
  #allocation0 [shape = 'u32[]', space=smem, size = 0x4, offset = 0x4, fixed_abs, tag = 'smem constant byte address 0x4 - core index']
  #allocation1 [shape = 'u32[72,128]{1,0:T(1,128)}', space=vmem, size = 0x9000, scoped, tag = 'internal scratch']
  %s0 = inlined_call_operand.vmem [shape: f32[2,2048], index: 0, kind: input, shape index: {}]
  %s1 = inlined_call_operand.hbm [shape: f32[2048,128], index: 1, kind: input, shape index: {}]
  %s2 = inlined_call_operand.vmem [shape: f32[1,128], index: 2, kind: input, shape index: {}]
  %s3 = inlined_call_operand.vmem [shape: f32[2,128], index: 3, kind: output, shape index: {}]
  %s4 = sld [smem:[#allocation0]]
  $region26: #{eadan_forward.3} parent=0
    _
  %s6 = ssub.s32 1, %s4
  %s7 = scalar_select 0, %s6, %s4
  $region1: #{eadan_forward.3} parent=0
    #allocation2 [shape = 'u8[1048576]{0}', space=vmem, size = 0x100000, scoped, tag = 'input window, operand 1, single buffered']
    #allocation3 [shape = 's32[1]{0}', space=sflag, size = 0x4, scoped, tag = 'scoped memory for eadan_forward.3']
    %8 = vsyncpa [#allocation3], 0
    // Predicated region
    $region2: #{eadan_forward.3} parent=1 // pred_check
      _
    $region3: #{eadan_forward.3} parent=1 // pred_check_branch
      %10 = sbr.rel (0) target = $region5
    $region4: #{eadan_forward.3} parent=1 // pred_region
      _
    $region5: #{eadan_forward.3} parent=1 // pred_fallthru
      _
    // Predicated region
    $region6: #{eadan_forward.3} parent=1 // pred_check
      _
    $region7: #{eadan_forward.3} parent=1 // pred_check_branch
      %12 = sbr.rel (0) target = $region9
    $region8: #{eadan_forward.3} parent=1 // pred_region
      %14 = vsyncadd [#allocation3], 0
      %s15 = sshll.u32 %s1, 4
      %s16 = int_to_ptr.hbm [resolvable:$true] %s15
      %s17 = sshll.u32 [#allocation2], 4
      %s18 = int_to_ptr.vmem [resolvable:$true] %s17
      %23 = dma.hbm_to_vmem [thread:$0]  %s16, 32768, %s18, [#allocation3], 128, 128, 8
    $region9: #{eadan_forward.3} parent=1 // pred_fallthru
      _
    // Predicated region
    $region10: #{eadan_forward.3} parent=1 // pred_check
      _
    $region11: #{eadan_forward.3} parent=1 // pred_check_branch
      %25 = sbr.rel (0) target = $region13
    $region12: #{eadan_forward.3} parent=1 // pred_region
      _
    $region13: #{eadan_forward.3} parent=1 // pred_fallthru
      _
    // Predicated region
    $region14: #{eadan_forward.3} parent=1 // pred_check
      _
    $region15: #{eadan_forward.3} parent=1 // pred_check_branch
      %27 = sbr.rel (0) target = $region17
    $region16: #{eadan_forward.3} parent=1 // pred_region
      %29 = dma.done [#allocation3], 32768
    $region17: #{eadan_forward.3} parent=1 // pred_fallthru
      _
    %v30 = vld [vmem:[%s0] sm:$0xff]
    %v31 = vld [vmem:[%s0 + $0x8] sm:$0xff]
    %v32 = vld [vmem:[%s0 + $0x10] sm:$0xff]
    %v33 = vld [vmem:[%s0 + $0x18] sm:$0xff]
    %v34 = vld [vmem:[#allocation2] sm:$0xff]
    %v35 = vld [vmem:[#allocation2 + $0x8] sm:$0xff]
    %v36 = vld [vmem:[#allocation2 + $0x10] sm:$0xff]
    %v37 = vld [vmem:[#allocation2 + $0x18] sm:$0xff]
    %v38 = vld [vmem:[#allocation2 + $0x20] sm:$0xff]
    %v39 = vld [vmem:[#allocation2 + $0x28] sm:$0xff]
    %v40 = vld [vmem:[#allocation2 + $0x30] sm:$0xff]
    %v41 = vld [vmem:[#allocation2 + $0x38] sm:$0xff]
    %v42 = vld [vmem:[#allocation2 + $0x40] sm:$0xff]
    %v43 = vld [vmem:[#allocation2 + $0x48] sm:$0xff]
    %v44 = vld [vmem:[#allocation2 + $0x50] sm:$0xff]
    %v45 = vld [vmem:[#allocation2 + $0x58] sm:$0xff]
    %v46 = vld [vmem:[#allocation2 + $0x60] sm:$0xff]
    %v47 = vld [vmem:[#allocation2 + $0x68] sm:$0xff]
    %v48 = vld [vmem:[#allocation2 + $0x70] sm:$0xff]
    %v49 = vld [vmem:[#allocation2 + $0x78] sm:$0xff]
    %v50 = vld [vmem:[#allocation2 + $0x80] sm:$0xff]
    %v51 = vld [vmem:[#allocation2 + $0x88] sm:$0xff]
    %v52 = vld [vmem:[#allocation2 + $0x90] sm:$0xff]
    %v53 = vld [vmem:[#allocation2 + $0x98] sm:$0xff]
    %v54 = vld [vmem:[#allocation2 + $0xa0] sm:$0xff]
    %v55 = vld [vmem:[#allocation2 + $0xa8] sm:$0xff]
    %v56 = vld [vmem:[#allocation2 + $0xb0] sm:$0xff]
    %v57 = vld [vmem:[#allocation2 + $0xb8] sm:$0xff]
    %v58 = vld [vmem:[#allocation2 + $0xc0] sm:$0xff]
    %v59 = vld [vmem:[#allocation2 + $0xc8] sm:$0xff]
    %v60 = vld [vmem:[#allocation2 + $0xd0] sm:$0xff]
    %v61 = vld [vmem:[#allocation2 + $0xd8] sm:$0xff]
    %v62 = vld [vmem:[#allocation2 + $0xe0] sm:$0xff]
    %v63 = vld [vmem:[#allocation2 + $0xe8] sm:$0xff]
    %v64 = vld [vmem:[#allocation2 + $0xf0] sm:$0xff]
    %v65 = vld [vmem:[#allocation2 + $0xf8] sm:$0xff]
    %v66 = vld [vmem:[#allocation2 + $0x100] sm:$0xff]
    %v67 = vld [vmem:[#allocation2 + $0x108] sm:$0xff]
    %v68 = vld [vmem:[#allocation2 + $0x110] sm:$0xff]
    %v69 = vld [vmem:[#allocation2 + $0x118] sm:$0xff]
    %v70 = vld [vmem:[#allocation2 + $0x120] sm:$0xff]
    %v71 = vld [vmem:[#allocation2 + $0x128] sm:$0xff]
    %v72 = vld [vmem:[#allocation2 + $0x130] sm:$0xff]
    %v73 = vld [vmem:[#allocation2 + $0x138] sm:$0xff]
    %v74 = vld [vmem:[#allocation2 + $0x140] sm:$0xff]
    %v75 = vld [vmem:[#allocation2 + $0x148] sm:$0xff]
    %v76 = vld [vmem:[#allocation2 + $0x150] sm:$0xff]
    %v77 = vld [vmem:[#allocation2 + $0x158] sm:$0xff]
    %v78 = vld [vmem:[#allocation2 + $0x160] sm:$0xff]
    %v79 = vld [vmem:[#allocation2 + $0x168] sm:$0xff]
    %v80 = vld [vmem:[#allocation2 + $0x170] sm:$0xff]
    %v81 = vld [vmem:[#allocation2 + $0x178] sm:$0xff]
    %v82 = vld [vmem:[#allocation2 + $0x180] sm:$0xff]
    %v83 = vld [vmem:[#allocation2 + $0x188] sm:$0xff]
    %v84 = vld [vmem:[#allocation2 + $0x190] sm:$0xff]
    %v85 = vld [vmem:[#allocation2 + $0x198] sm:$0xff]
    %v86 = vld [vmem:[#allocation2 + $0x1a0] sm:$0xff]
    %v87 = vld [vmem:[#allocation2 + $0x1a8] sm:$0xff]
    %v88 = vld [vmem:[#allocation2 + $0x1b0] sm:$0xff]
    %v89 = vld [vmem:[#allocation2 + $0x1b8] sm:$0xff]
    %v90 = vld [vmem:[#allocation2 + $0x1c0] sm:$0xff]
    %v91 = vld [vmem:[#allocation2 + $0x1c8] sm:$0xff]
    %v92 = vld [vmem:[#allocation2 + $0x1d0] sm:$0xff]
    %v93 = vld [vmem:[#allocation2 + $0x1d8] sm:$0xff]
    %v94 = vld [vmem:[#allocation2 + $0x1e0] sm:$0xff]
    %v95 = vld [vmem:[#allocation2 + $0x1e8] sm:$0xff]
    %v96 = vld [vmem:[#allocation2 + $0x1f0] sm:$0xff]
    %v97 = vld [vmem:[#allocation2 + $0x1f8] sm:$0xff]
    %v98 = vld [vmem:[#allocation2 + $0x200] sm:$0xff]
    %v99 = vld [vmem:[#allocation2 + $0x208] sm:$0xff]
    %v100 = vld [vmem:[#allocation2 + $0x210] sm:$0xff]
    %v101 = vld [vmem:[#allocation2 + $0x218] sm:$0xff]
    %v102 = vld [vmem:[#allocation2 + $0x220] sm:$0xff]
    %v103 = vld [vmem:[#allocation2 + $0x228] sm:$0xff]
    %v104 = vld [vmem:[#allocation2 + $0x230] sm:$0xff]
    %v105 = vld [vmem:[#allocation2 + $0x238] sm:$0xff]
    %v106 = vld [vmem:[#allocation2 + $0x240] sm:$0xff]
    %v107 = vld [vmem:[#allocation2 + $0x248] sm:$0xff]
    %v108 = vld [vmem:[#allocation2 + $0x250] sm:$0xff]
    %v109 = vld [vmem:[#allocation2 + $0x258] sm:$0xff]
    %v110 = vld [vmem:[#allocation2 + $0x260] sm:$0xff]
    %v111 = vld [vmem:[#allocation2 + $0x268] sm:$0xff]
    %v112 = vld [vmem:[#allocation2 + $0x270] sm:$0xff]
    %v113 = vld [vmem:[#allocation2 + $0x278] sm:$0xff]
    %v114 = vld [vmem:[#allocation2 + $0x280] sm:$0xff]
    %v115 = vld [vmem:[#allocation2 + $0x288] sm:$0xff]
    %v116 = vld [vmem:[#allocation2 + $0x290] sm:$0xff]
    %v117 = vld [vmem:[#allocation2 + $0x298] sm:$0xff]
    %v118 = vld [vmem:[#allocation2 + $0x2a0] sm:$0xff]
    %v119 = vld [vmem:[#allocation2 + $0x2a8] sm:$0xff]
    %v120 = vld [vmem:[#allocation2 + $0x2b0] sm:$0xff]
    %v121 = vld [vmem:[#allocation2 + $0x2b8] sm:$0xff]
    %v122 = vld [vmem:[#allocation2 + $0x2c0] sm:$0xff]
    %v123 = vld [vmem:[#allocation2 + $0x2c8] sm:$0xff]
    %v124 = vld [vmem:[#allocation2 + $0x2d0] sm:$0xff]
    %v125 = vld [vmem:[#allocation2 + $0x2d8] sm:$0xff]
    %v126 = vld [vmem:[#allocation2 + $0x2e0] sm:$0xff]
    %v127 = vld [vmem:[#allocation2 + $0x2e8] sm:$0xff]
    %v128 = vld [vmem:[#allocation2 + $0x2f0] sm:$0xff]
    %v129 = vld [vmem:[#allocation2 + $0x2f8] sm:$0xff]
    %v130 = vld [vmem:[#allocation2 + $0x300] sm:$0xff]
    %v131 = vld [vmem:[#allocation2 + $0x308] sm:$0xff]
    %v132 = vld [vmem:[#allocation2 + $0x310] sm:$0xff]
    %v133 = vld [vmem:[#allocation2 + $0x318] sm:$0xff]
    %v134 = vld [vmem:[#allocation2 + $0x320] sm:$0xff]
    %v135 = vld [vmem:[#allocation2 + $0x328] sm:$0xff]
    %v136 = vld [vmem:[#allocation2 + $0x330] sm:$0xff]
    %v137 = vld [vmem:[#allocation2 + $0x338] sm:$0xff]
    %v138 = vld [vmem:[#allocation2 + $0x340] sm:$0xff]
    %v139 = vld [vmem:[#allocation2 + $0x348] sm:$0xff]
    %v140 = vld [vmem:[#allocation2 + $0x350] sm:$0xff]
    %v141 = vld [vmem:[#allocation2 + $0x358] sm:$0xff]
    %v142 = vld [vmem:[#allocation2 + $0x360] sm:$0xff]
    %v143 = vld [vmem:[#allocation2 + $0x368] sm:$0xff]
    %v144 = vld [vmem:[#allocation2 + $0x370] sm:$0xff]
    %v145 = vld [vmem:[#allocation2 + $0x378] sm:$0xff]
    %v146 = vld [vmem:[#allocation2 + $0x380] sm:$0xff]
    %v147 = vld [vmem:[#allocation2 + $0x388] sm:$0xff]
    %v148 = vld [vmem:[#allocation2 + $0x390] sm:$0xff]
    %v149 = vld [vmem:[#allocation2 + $0x398] sm:$0xff]
    %v150 = vld [vmem:[#allocation2 + $0x3a0] sm:$0xff]
    %v151 = vld [vmem:[#allocation2 + $0x3a8] sm:$0xff]
    %v152 = vld [vmem:[#allocation2 + $0x3b0] sm:$0xff]
    %v153 = vld [vmem:[#allocation2 + $0x3b8] sm:$0xff]
    %v154 = vld [vmem:[#allocation2 + $0x3c0] sm:$0xff]
    %v155 = vld [vmem:[#allocation2 + $0x3c8] sm:$0xff]
    %v156 = vld [vmem:[#allocation2 + $0x3d0] sm:$0xff]
    %v157 = vld [vmem:[#allocation2 + $0x3d8] sm:$0xff]
    %v158 = vld [vmem:[#allocation2 + $0x3e0] sm:$0xff]
    %v159 = vld [vmem:[#allocation2 + $0x3e8] sm:$0xff]
    %v160 = vld [vmem:[#allocation2 + $0x3f0] sm:$0xff]
    %v161 = vld [vmem:[#allocation2 + $0x3f8] sm:$0xff]
    %v162 = vld [vmem:[#allocation2 + $0x400] sm:$0xff]
    %v163 = vld [vmem:[#allocation2 + $0x408] sm:$0xff]
    %v164 = vld [vmem:[#allocation2 + $0x410] sm:$0xff]
    %v165 = vld [vmem:[#allocation2 + $0x418] sm:$0xff]
    %v166 = vld [vmem:[#allocation2 + $0x420] sm:$0xff]
    %v167 = vld [vmem:[#allocation2 + $0x428] sm:$0xff]
    %v168 = vld [vmem:[#allocation2 + $0x430] sm:$0xff]
    %v169 = vld [vmem:[#allocation2 + $0x438] sm:$0xff]
    %v170 = vld [vmem:[#allocation2 + $0x440] sm:$0xff]
    %v171 = vld [vmem:[#allocation2 + $0x448] sm:$0xff]
    %v172 = vld [vmem:[#allocation2 + $0x450] sm:$0xff]
    %v173 = vld [vmem:[#allocation2 + $0x458] sm:$0xff]
    %v174 = vld [vmem:[#allocation2 + $0x460] sm:$0xff]
    %v175 = vld [vmem:[#allocation2 + $0x468] sm:$0xff]
    %v176 = vld [vmem:[#allocation2 + $0x470] sm:$0xff]
    %v177 = vld [vmem:[#allocation2 + $0x478] sm:$0xff]
    %v178 = vld [vmem:[#allocation2 + $0x480] sm:$0xff]
    %v179 = vld [vmem:[#allocation2 + $0x488] sm:$0xff]
    %v180 = vld [vmem:[#allocation2 + $0x490] sm:$0xff]
    %v181 = vld [vmem:[#allocation2 + $0x498] sm:$0xff]
    %v182 = vld [vmem:[#allocation2 + $0x4a0] sm:$0xff]
    %v183 = vld [vmem:[#allocation2 + $0x4a8] sm:$0xff]
    %v184 = vld [vmem:[#allocation2 + $0x4b0] sm:$0xff]
    %v185 = vld [vmem:[#allocation2 + $0x4b8] sm:$0xff]
    %v186 = vld [vmem:[#allocation2 + $0x4c0] sm:$0xff]
    %v187 = vld [vmem:[#allocation2 + $0x4c8] sm:$0xff]
    %v188 = vld [vmem:[#allocation2 + $0x4d0] sm:$0xff]
    %v189 = vld [vmem:[#allocation2 + $0x4d8] sm:$0xff]
    %v190 = vld [vmem:[#allocation2 + $0x4e0] sm:$0xff]
    %v191 = vld [vmem:[#allocation2 + $0x4e8] sm:$0xff]
    %v192 = vld [vmem:[#allocation2 + $0x4f0] sm:$0xff]
    %v193 = vld [vmem:[#allocation2 + $0x4f8] sm:$0xff]
    %v194 = vld [vmem:[#allocation2 + $0x500] sm:$0xff]
    %v195 = vld [vmem:[#allocation2 + $0x508] sm:$0xff]
    %v196 = vld [vmem:[#allocation2 + $0x510] sm:$0xff]
    %v197 = vld [vmem:[#allocation2 + $0x518] sm:$0xff]
    %v198 = vld [vmem:[#allocation2 + $0x520] sm:$0xff]
    %v199 = vld [vmem:[#allocation2 + $0x528] sm:$0xff]
    %v200 = vld [vmem:[#allocation2 + $0x530] sm:$0xff]
    %v201 = vld [vmem:[#allocation2 + $0x538] sm:$0xff]
    %v202 = vld [vmem:[#allocation2 + $0x540] sm:$0xff]
    %v203 = vld [vmem:[#allocation2 + $0x548] sm:$0xff]
    %v204 = vld [vmem:[#allocation2 + $0x550] sm:$0xff]
    %v205 = vld [vmem:[#allocation2 + $0x558] sm:$0xff]
    %v206 = vld [vmem:[#allocation2 + $0x560] sm:$0xff]
    %v207 = vld [vmem:[#allocation2 + $0x568] sm:$0xff]
    %v208 = vld [vmem:[#allocation2 + $0x570] sm:$0xff]
    %v209 = vld [vmem:[#allocation2 + $0x578] sm:$0xff]
    %v210 = vld [vmem:[#allocation2 + $0x580] sm:$0xff]
    %v211 = vld [vmem:[#allocation2 + $0x588] sm:$0xff]
    %v212 = vld [vmem:[#allocation2 + $0x590] sm:$0xff]
    %v213 = vld [vmem:[#allocation2 + $0x598] sm:$0xff]
    %v214 = vld [vmem:[#allocation2 + $0x5a0] sm:$0xff]
    %v215 = vld [vmem:[#allocation2 + $0x5a8] sm:$0xff]
    %v216 = vld [vmem:[#allocation2 + $0x5b0] sm:$0xff]
    %v217 = vld [vmem:[#allocation2 + $0x5b8] sm:$0xff]
    %v218 = vld [vmem:[#allocation2 + $0x5c0] sm:$0xff]
    %v219 = vld [vmem:[#allocation2 + $0x5c8] sm:$0xff]
    %v220 = vld [vmem:[#allocation2 + $0x5d0] sm:$0xff]
    %v221 = vld [vmem:[#allocation2 + $0x5d8] sm:$0xff]
    %v222 = vld [vmem:[#allocation2 + $0x5e0] sm:$0xff]
    %v223 = vld [vmem:[#allocation2 + $0x5e8] sm:$0xff]
    %v224 = vld [vmem:[#allocation2 + $0x5f0] sm:$0xff]
    %v225 = vld [vmem:[#allocation2 + $0x5f8] sm:$0xff]
    %v226 = vld [vmem:[#allocation2 + $0x600] sm:$0xff]
    %v227 = vld [vmem:[#allocation2 + $0x608] sm:$0xff]
    %v228 = vld [vmem:[#allocation2 + $0x610] sm:$0xff]
    %v229 = vld [vmem:[#allocation2 + $0x618] sm:$0xff]
    %v230 = vld [vmem:[#allocation2 + $0x620] sm:$0xff]
    %v231 = vld [vmem:[#allocation2 + $0x628] sm:$0xff]
    %v232 = vld [vmem:[#allocation2 + $0x630] sm:$0xff]
    %v233 = vld [vmem:[#allocation2 + $0x638] sm:$0xff]
    %v234 = vld [vmem:[#allocation2 + $0x640] sm:$0xff]
    %v235 = vld [vmem:[#allocation2 + $0x648] sm:$0xff]
    %v236 = vld [vmem:[#allocation2 + $0x650] sm:$0xff]
    %v237 = vld [vmem:[#allocation2 + $0x658] sm:$0xff]
    %v238 = vld [vmem:[#allocation2 + $0x660] sm:$0xff]
    %v239 = vld [vmem:[#allocation2 + $0x668] sm:$0xff]
    %v240 = vld [vmem:[#allocation2 + $0x670] sm:$0xff]
    %v241 = vld [vmem:[#allocation2 + $0x678] sm:$0xff]
    %v242 = vld [vmem:[#allocation2 + $0x680] sm:$0xff]
    %v243 = vld [vmem:[#allocation2 + $0x688] sm:$0xff]
    %v244 = vld [vmem:[#allocation2 + $0x690] sm:$0xff]
    %v245 = vld [vmem:[#allocation2 + $0x698] sm:$0xff]
    %v246 = vld [vmem:[#allocation2 + $0x6a0] sm:$0xff]
    %v247 = vld [vmem:[#allocation2 + $0x6a8] sm:$0xff]
    %v248 = vld [vmem:[#allocation2 + $0x6b0] sm:$0xff]
    %v249 = vld [vmem:[#allocation2 + $0x6b8] sm:$0xff]
    %v250 = vld [vmem:[#allocation2 + $0x6c0] sm:$0xff]
    %v251 = vld [vmem:[#allocation2 + $0x6c8] sm:$0xff]
    %v252 = vld [vmem:[#allocation2 + $0x6d0] sm:$0xff]
    %v253 = vld [vmem:[#allocation2 + $0x6d8] sm:$0xff]
    %v254 = vld [vmem:[#allocation2 + $0x6e0] sm:$0xff]
    %v255 = vld [vmem:[#allocation2 + $0x6e8] sm:$0xff]
    %v256 = vld [vmem:[#allocation2 + $0x6f0] sm:$0xff]
    %v257 = vld [vmem:[#allocation2 + $0x6f8] sm:$0xff]
    %v258 = vld [vmem:[#allocation2 + $0x700] sm:$0xff]
    %v259 = vld [vmem:[#allocation2 + $0x708] sm:$0xff]
    %v260 = vld [vmem:[#allocation2 + $0x710] sm:$0xff]
    %v261 = vld [vmem:[#allocation2 + $0x718] sm:$0xff]
    %v262 = vld [vmem:[#allocation2 + $0x720] sm:$0xff]
    %v263 = vld [vmem:[#allocation2 + $0x728] sm:$0xff]
    %v264 = vld [vmem:[#allocation2 + $0x730] sm:$0xff]
    %v265 = vld [vmem:[#allocation2 + $0x738] sm:$0xff]
    %v266 = vld [vmem:[#allocation2 + $0x740] sm:$0xff]
    %v267 = vld [vmem:[#allocation2 + $0x748] sm:$0xff]
    %v268 = vld [vmem:[#allocation2 + $0x750] sm:$0xff]
    %v269 = vld [vmem:[#allocation2 + $0x758] sm:$0xff]
    %v270 = vld [vmem:[#allocation2 + $0x760] sm:$0xff]
    %v271 = vld [vmem:[#allocation2 + $0x768] sm:$0xff]
    %v272 = vld [vmem:[#allocation2 + $0x770] sm:$0xff]
    %v273 = vld [vmem:[#allocation2 + $0x778] sm:$0xff]
    %v274 = vld [vmem:[#allocation2 + $0x780] sm:$0xff]
    %v275 = vld [vmem:[#allocation2 + $0x788] sm:$0xff]
    %v276 = vld [vmem:[#allocation2 + $0x790] sm:$0xff]
    %v277 = vld [vmem:[#allocation2 + $0x798] sm:$0xff]
    %v278 = vld [vmem:[#allocation2 + $0x7a0] sm:$0xff]
    %v279 = vld [vmem:[#allocation2 + $0x7a8] sm:$0xff]
    %v280 = vld [vmem:[#allocation2 + $0x7b0] sm:$0xff]
    %v281 = vld [vmem:[#allocation2 + $0x7b8] sm:$0xff]
    %v282 = vld [vmem:[#allocation2 + $0x7c0] sm:$0xff]
    %v283 = vld [vmem:[#allocation2 + $0x7c8] sm:$0xff]
    %v284 = vld [vmem:[#allocation2 + $0x7d0] sm:$0xff]
    %v285 = vld [vmem:[#allocation2 + $0x7d8] sm:$0xff]
    %v286 = vld [vmem:[#allocation2 + $0x7e0] sm:$0xff]
    %v287 = vld [vmem:[#allocation2 + $0x7e8] sm:$0xff]
    %v288 = vld [vmem:[#allocation2 + $0x7f0] sm:$0xff]
    %v289 = vld [vmem:[#allocation2 + $0x7f8] sm:$0xff]
    %v290 = vld [vmem:[%s2] sm:$0x1]
    %v292 = vperm.slane %v290, 0
    %298 = vst [vmem:[#allocation1] ss:$4 sm:$0xff] %v30
    %s299 = scalar_lea.vmem [#allocation1], 32
    %300 = vst [vmem:[%s299] ss:$4 sm:$0xff] %v31
    %v301 = vld.sshfl [vmem:[#allocation1] sm:$0xff pattern:$0x73625140]
    %v302 = vld.sshfl [vmem:[#allocation1 + $0x8] sm:$0xff pattern:$0x73625140]
    %v303 = vld.sshfl [vmem:[#allocation1 + $0x10] sm:$0xff pattern:$0x73625140]
    %v304 = vld.sshfl [vmem:[#allocation1 + $0x18] sm:$0xff pattern:$0x73625140]
    %v305 = vld.sshfl [vmem:[#allocation1 + $0x20] sm:$0xff pattern:$0x73625140]
    %v306 = vld.sshfl [vmem:[#allocation1 + $0x28] sm:$0xff pattern:$0x73625140]
    %v307 = vld.sshfl [vmem:[#allocation1 + $0x30] sm:$0xff pattern:$0x73625140]
    %v308 = vld.sshfl [vmem:[#allocation1 + $0x38] sm:$0xff pattern:$0x73625140]
    %309 = vst [vmem:[#allocation1] ss:$4 sm:$0xff] %v32
    %310 = vst [vmem:[%s299] ss:$4 sm:$0xff] %v33
    %v311 = vld.sshfl [vmem:[#allocation1] sm:$0xff pattern:$0x73625140]
    %v312 = vld.sshfl [vmem:[#allocation1 + $0x8] sm:$0xff pattern:$0x73625140]
    %v313 = vld.sshfl [vmem:[#allocation1 + $0x10] sm:$0xff pattern:$0x73625140]
    %v314 = vld.sshfl [vmem:[#allocation1 + $0x18] sm:$0xff pattern:$0x73625140]
    %v315 = vld.sshfl [vmem:[#allocation1 + $0x20] sm:$0xff pattern:$0x73625140]
    %v316 = vld.sshfl [vmem:[#allocation1 + $0x28] sm:$0xff pattern:$0x73625140]
    %v317 = vld.sshfl [vmem:[#allocation1 + $0x30] sm:$0xff pattern:$0x73625140]
    %v318 = vld.sshfl [vmem:[#allocation1 + $0x38] sm:$0xff pattern:$0x73625140]
    %335 = vmatpush.msra.mxu0 %v49
    %336 = vmatpush.msra.mxu0 %v48
    %337 = vmatpush.msra.mxu0 %v47
    %338 = vmatpush.msra.mxu0 %v46
    %339 = vmatpush.msra.mxu0 %v45
    %340 = vmatpush.msra.mxu0 %v44
    %341 = vmatpush.msra.mxu0 %v43
    %342 = vmatpush.msra.mxu0 %v42
    %343 = vmatpush.msra.mxu0 %v41
    %344 = vmatpush.msra.mxu0 %v40
    %345 = vmatpush.msra.mxu0 %v39
    %346 = vmatpush.msra.mxu0 %v38
    %347 = vmatpush.msra.mxu0 %v37
    %348 = vmatpush.msra.mxu0 %v36
    %349 = vmatpush.msra.mxu0 %v35
    %350 = vmatpush.msra.mxu0 %v34
    %351 = vmatmul.f32.gmra.mxu0 %v301
    %v352 = vpop.f32.mrf.mxu0
    %v353 = vadd.f32 %v292, %v352
    %354 = vdwg.mxu0
    %355 = vmatpush.msra.mxu0 %v65
    %356 = vmatpush.msra.mxu0 %v64
    %357 = vmatpush.msra.mxu0 %v63
    %358 = vmatpush.msra.mxu0 %v62
    %359 = vmatpush.msra.mxu0 %v61
    %360 = vmatpush.msra.mxu0 %v60
    %361 = vmatpush.msra.mxu0 %v59
    %362 = vmatpush.msra.mxu0 %v58
    %363 = vmatpush.msra.mxu0 %v57
    %364 = vmatpush.msra.mxu0 %v56
    %365 = vmatpush.msra.mxu0 %v55
    %366 = vmatpush.msra.mxu0 %v54
    %367 = vmatpush.msra.mxu0 %v53
    %368 = vmatpush.msra.mxu0 %v52
    %369 = vmatpush.msra.mxu0 %v51
    %370 = vmatpush.msra.mxu0 %v50
    %371 = vmatmul.f32.gmra.mxu0 %v302
    %v372 = vpop.f32.mrf.mxu0
    %v373 = vadd.f32 %v353, %v372
    %374 = vdwg.mxu0
    %375 = vmatpush.msra.mxu0 %v81
    %376 = vmatpush.msra.mxu0 %v80
    %377 = vmatpush.msra.mxu0 %v79
    %378 = vmatpush.msra.mxu0 %v78
    %379 = vmatpush.msra.mxu0 %v77
    %380 = vmatpush.msra.mxu0 %v76
    %381 = vmatpush.msra.mxu0 %v75
    %382 = vmatpush.msra.mxu0 %v74
    %383 = vmatpush.msra.mxu0 %v73
    %384 = vmatpush.msra.mxu0 %v72
    %385 = vmatpush.msra.mxu0 %v71
    %386 = vmatpush.msra.mxu0 %v70
    %387 = vmatpush.msra.mxu0 %v69
    %388 = vmatpush.msra.mxu0 %v68
    %389 = vmatpush.msra.mxu0 %v67
    %390 = vmatpush.msra.mxu0 %v66
    %391 = vmatmul.f32.gmra.mxu0 %v303
    %v392 = vpop.f32.mrf.mxu0
    %v393 = vadd.f32 %v373, %v392
    %394 = vdwg.mxu0
    %395 = vmatpush.msra.mxu0 %v97
    %396 = vmatpush.msra.mxu0 %v96
    %397 = vmatpush.msra.mxu0 %v95
    %398 = vmatpush.msra.mxu0 %v94
    %399 = vmatpush.msra.mxu0 %v93
    %400 = vmatpush.msra.mxu0 %v92
    %401 = vmatpush.msra.mxu0 %v91
    %402 = vmatpush.msra.mxu0 %v90
    %403 = vmatpush.msra.mxu0 %v89
    %404 = vmatpush.msra.mxu0 %v88
    %405 = vmatpush.msra.mxu0 %v87
    %406 = vmatpush.msra.mxu0 %v86
    %407 = vmatpush.msra.mxu0 %v85
    %408 = vmatpush.msra.mxu0 %v84
    %409 = vmatpush.msra.mxu0 %v83
    %410 = vmatpush.msra.mxu0 %v82
    %411 = vmatmul.f32.gmra.mxu0 %v304
    %v412 = vpop.f32.mrf.mxu0
    %v413 = vadd.f32 %v393, %v412
    %414 = vdwg.mxu0
    %415 = vmatpush.msra.mxu0 %v113
    %416 = vmatpush.msra.mxu0 %v112
    %417 = vmatpush.msra.mxu0 %v111
    %418 = vmatpush.msra.mxu0 %v110
    %419 = vmatpush.msra.mxu0 %v109
    %420 = vmatpush.msra.mxu0 %v108
    %421 = vmatpush.msra.mxu0 %v107
    %422 = vmatpush.msra.mxu0 %v106
    %423 = vmatpush.msra.mxu0 %v105
    %424 = vmatpush.msra.mxu0 %v104
    %425 = vmatpush.msra.mxu0 %v103
    %426 = vmatpush.msra.mxu0 %v102
    %427 = vmatpush.msra.mxu0 %v101
    %428 = vmatpush.msra.mxu0 %v100
    %429 = vmatpush.msra.mxu0 %v99
    %430 = vmatpush.msra.mxu0 %v98
    %431 = vmatmul.f32.gmra.mxu0 %v305
    %v432 = vpop.f32.mrf.mxu0
    %v433 = vadd.f32 %v413, %v432
    %434 = vdwg.mxu0
    %435 = vmatpush.msra.mxu0 %v129
    %436 = vmatpush.msra.mxu0 %v128
    %437 = vmatpush.msra.mxu0 %v127
    %438 = vmatpush.msra.mxu0 %v126
    %439 = vmatpush.msra.mxu0 %v125
    %440 = vmatpush.msra.mxu0 %v124
    %441 = vmatpush.msra.mxu0 %v123
    %442 = vmatpush.msra.mxu0 %v122
    %443 = vmatpush.msra.mxu0 %v121
    %444 = vmatpush.msra.mxu0 %v120
    %445 = vmatpush.msra.mxu0 %v119
    %446 = vmatpush.msra.mxu0 %v118
    %447 = vmatpush.msra.mxu0 %v117
    %448 = vmatpush.msra.mxu0 %v116
    %449 = vmatpush.msra.mxu0 %v115
    %450 = vmatpush.msra.mxu0 %v114
    %451 = vmatmul.f32.gmra.mxu0 %v306
    %v452 = vpop.f32.mrf.mxu0
    %v453 = vadd.f32 %v433, %v452
    %454 = vdwg.mxu0
    %455 = vmatpush.msra.mxu0 %v145
    %456 = vmatpush.msra.mxu0 %v144
    %457 = vmatpush.msra.mxu0 %v143
    %458 = vmatpush.msra.mxu0 %v142
    %459 = vmatpush.msra.mxu0 %v141
    %460 = vmatpush.msra.mxu0 %v140
    %461 = vmatpush.msra.mxu0 %v139
    %462 = vmatpush.msra.mxu0 %v138
    %463 = vmatpush.msra.mxu0 %v137
    %464 = vmatpush.msra.mxu0 %v136
    %465 = vmatpush.msra.mxu0 %v135
    %466 = vmatpush.msra.mxu0 %v134
    %467 = vmatpush.msra.mxu0 %v133
    %468 = vmatpush.msra.mxu0 %v132
    %469 = vmatpush.msra.mxu0 %v131
    %470 = vmatpush.msra.mxu0 %v130
    %471 = vmatmul.f32.gmra.mxu0 %v307
    %v472 = vpop.f32.mrf.mxu0
    %v473 = vadd.f32 %v453, %v472
    %474 = vdwg.mxu0
    %475 = vmatpush.msra.mxu0 %v161
    %476 = vmatpush.msra.mxu0 %v160
    %477 = vmatpush.msra.mxu0 %v159
    %478 = vmatpush.msra.mxu0 %v158
    %479 = vmatpush.msra.mxu0 %v157
    %480 = vmatpush.msra.mxu0 %v156
    %481 = vmatpush.msra.mxu0 %v155
    %482 = vmatpush.msra.mxu0 %v154
    %483 = vmatpush.msra.mxu0 %v153
    %484 = vmatpush.msra.mxu0 %v152
    %485 = vmatpush.msra.mxu0 %v151
    %486 = vmatpush.msra.mxu0 %v150
    %487 = vmatpush.msra.mxu0 %v149
    %488 = vmatpush.msra.mxu0 %v148
    %489 = vmatpush.msra.mxu0 %v147
    %490 = vmatpush.msra.mxu0 %v146
    %491 = vmatmul.f32.gmra.mxu0 %v308
    %v492 = vpop.f32.mrf.mxu0
    %v493 = vadd.f32 %v473, %v492
    %494 = vdwg.mxu0
    %495 = vmatpush.msra.mxu0 %v177
    %496 = vmatpush.msra.mxu0 %v176
    %497 = vmatpush.msra.mxu0 %v175
    %498 = vmatpush.msra.mxu0 %v174
    %499 = vmatpush.msra.mxu0 %v173
    %500 = vmatpush.msra.mxu0 %v172
    %501 = vmatpush.msra.mxu0 %v171
    %502 = vmatpush.msra.mxu0 %v170
    %503 = vmatpush.msra.mxu0 %v169
    %504 = vmatpush.msra.mxu0 %v168
    %505 = vmatpush.msra.mxu0 %v167
    %506 = vmatpush.msra.mxu0 %v166
    %507 = vmatpush.msra.mxu0 %v165
    %508 = vmatpush.msra.mxu0 %v164
    %509 = vmatpush.msra.mxu0 %v163
    %510 = vmatpush.msra.mxu0 %v162
    %511 = vmatmul.f32.gmra.mxu0 %v311
    %v512 = vpop.f32.mrf.mxu0
    %v513 = vadd.f32 %v493, %v512
    %514 = vdwg.mxu0
    %515 = vmatpush.msra.mxu0 %v193
    %516 = vmatpush.msra.mxu0 %v192
    %517 = vmatpush.msra.mxu0 %v191
    %518 = vmatpush.msra.mxu0 %v190
    %519 = vmatpush.msra.mxu0 %v189
    %520 = vmatpush.msra.mxu0 %v188
    %521 = vmatpush.msra.mxu0 %v187
    %522 = vmatpush.msra.mxu0 %v186
    %523 = vmatpush.msra.mxu0 %v185
    %524 = vmatpush.msra.mxu0 %v184
    %525 = vmatpush.msra.mxu0 %v183
    %526 = vmatpush.msra.mxu0 %v182
    %527 = vmatpush.msra.mxu0 %v181
    %528 = vmatpush.msra.mxu0 %v180
    %529 = vmatpush.msra.mxu0 %v179
    %530 = vmatpush.msra.mxu0 %v178
    %531 = vmatmul.f32.gmra.mxu0 %v312
    %v532 = vpop.f32.mrf.mxu0
    %v533 = vadd.f32 %v513, %v532
    %534 = vdwg.mxu0
    %535 = vmatpush.msra.mxu0 %v209
    %536 = vmatpush.msra.mxu0 %v208
    %537 = vmatpush.msra.mxu0 %v207
    %538 = vmatpush.msra.mxu0 %v206
    %539 = vmatpush.msra.mxu0 %v205
    %540 = vmatpush.msra.mxu0 %v204
    %541 = vmatpush.msra.mxu0 %v203
    %542 = vmatpush.msra.mxu0 %v202
    %543 = vmatpush.msra.mxu0 %v201
    %544 = vmatpush.msra.mxu0 %v200
    %545 = vmatpush.msra.mxu0 %v199
    %546 = vmatpush.msra.mxu0 %v198
    %547 = vmatpush.msra.mxu0 %v197
    %548 = vmatpush.msra.mxu0 %v196
    %549 = vmatpush.msra.mxu0 %v195
    %550 = vmatpush.msra.mxu0 %v194
    %551 = vmatmul.f32.gmra.mxu0 %v313
    %v552 = vpop.f32.mrf.mxu0
    %v553 = vadd.f32 %v533, %v552
    %554 = vdwg.mxu0
    %555 = vmatpush.msra.mxu0 %v225
    %556 = vmatpush.msra.mxu0 %v224
    %557 = vmatpush.msra.mxu0 %v223
    %558 = vmatpush.msra.mxu0 %v222
    %559 = vmatpush.msra.mxu0 %v221
    %560 = vmatpush.msra.mxu0 %v220
    %561 = vmatpush.msra.mxu0 %v219
    %562 = vmatpush.msra.mxu0 %v218
    %563 = vmatpush.msra.mxu0 %v217
    %564 = vmatpush.msra.mxu0 %v216
    %565 = vmatpush.msra.mxu0 %v215
    %566 = vmatpush.msra.mxu0 %v214
    %567 = vmatpush.msra.mxu0 %v213
    %568 = vmatpush.msra.mxu0 %v212
    %569 = vmatpush.msra.mxu0 %v211
    %570 = vmatpush.msra.mxu0 %v210
    %571 = vmatmul.f32.gmra.mxu0 %v314
    %v572 = vpop.f32.mrf.mxu0
    %v573 = vadd.f32 %v553, %v572
    %574 = vdwg.mxu0
    %575 = vmatpush.msra.mxu0 %v241
    %576 = vmatpush.msra.mxu0 %v240
    %577 = vmatpush.msra.mxu0 %v239
    %578 = vmatpush.msra.mxu0 %v238
    %579 = vmatpush.msra.mxu0 %v237
    %580 = vmatpush.msra.mxu0 %v236
    %581 = vmatpush.msra.mxu0 %v235
    %582 = vmatpush.msra.mxu0 %v234
    %583 = vmatpush.msra.mxu0 %v233
    %584 = vmatpush.msra.mxu0 %v232
    %585 = vmatpush.msra.mxu0 %v231
    %586 = vmatpush.msra.mxu0 %v230
    %587 = vmatpush.msra.mxu0 %v229
    %588 = vmatpush.msra.mxu0 %v228
    %589 = vmatpush.msra.mxu0 %v227
    %590 = vmatpush.msra.mxu0 %v226
    %591 = vmatmul.f32.gmra.mxu0 %v315
    %v592 = vpop.f32.mrf.mxu0
    %v593 = vadd.f32 %v573, %v592
    %594 = vdwg.mxu0
    %595 = vmatpush.msra.mxu0 %v257
    %596 = vmatpush.msra.mxu0 %v256
    %597 = vmatpush.msra.mxu0 %v255
    %598 = vmatpush.msra.mxu0 %v254
    %599 = vmatpush.msra.mxu0 %v253
    %600 = vmatpush.msra.mxu0 %v252
    %601 = vmatpush.msra.mxu0 %v251
    %602 = vmatpush.msra.mxu0 %v250
    %603 = vmatpush.msra.mxu0 %v249
    %604 = vmatpush.msra.mxu0 %v248
    %605 = vmatpush.msra.mxu0 %v247
    %606 = vmatpush.msra.mxu0 %v246
    %607 = vmatpush.msra.mxu0 %v245
    %608 = vmatpush.msra.mxu0 %v244
    %609 = vmatpush.msra.mxu0 %v243
    %610 = vmatpush.msra.mxu0 %v242
    %611 = vmatmul.f32.gmra.mxu0 %v316
    %v612 = vpop.f32.mrf.mxu0
    %v613 = vadd.f32 %v593, %v612
    %614 = vdwg.mxu0
    %615 = vmatpush.msra.mxu0 %v273
    %616 = vmatpush.msra.mxu0 %v272
    %617 = vmatpush.msra.mxu0 %v271
    %618 = vmatpush.msra.mxu0 %v270
    %619 = vmatpush.msra.mxu0 %v269
    %620 = vmatpush.msra.mxu0 %v268
    %621 = vmatpush.msra.mxu0 %v267
    %622 = vmatpush.msra.mxu0 %v266
    %623 = vmatpush.msra.mxu0 %v265
    %624 = vmatpush.msra.mxu0 %v264
    %625 = vmatpush.msra.mxu0 %v263
    %626 = vmatpush.msra.mxu0 %v262
    %627 = vmatpush.msra.mxu0 %v261
    %628 = vmatpush.msra.mxu0 %v260
    %629 = vmatpush.msra.mxu0 %v259
    %630 = vmatpush.msra.mxu0 %v258
    %631 = vmatmul.f32.gmra.mxu0 %v317
    %v632 = vpop.f32.mrf.mxu0
    %v633 = vadd.f32 %v613, %v632
    %634 = vdwg.mxu0
    %635 = vmatpush.msra.mxu0 %v289
    %636 = vmatpush.msra.mxu0 %v288
    %637 = vmatpush.msra.mxu0 %v287
    %638 = vmatpush.msra.mxu0 %v286
    %639 = vmatpush.msra.mxu0 %v285
    %640 = vmatpush.msra.mxu0 %v284
    %641 = vmatpush.msra.mxu0 %v283
    %642 = vmatpush.msra.mxu0 %v282
    %643 = vmatpush.msra.mxu0 %v281
    %644 = vmatpush.msra.mxu0 %v280
    %645 = vmatpush.msra.mxu0 %v279
    %646 = vmatpush.msra.mxu0 %v278
    %647 = vmatpush.msra.mxu0 %v277
    %648 = vmatpush.msra.mxu0 %v276
    %649 = vmatpush.msra.mxu0 %v275
    %650 = vmatpush.msra.mxu0 %v274
    %651 = vmatmul.f32.gmra.mxu0 %v318
    %v652 = vpop.f32.mrf.mxu0
    %v653 = vadd.f32 %v633, %v652
    %654 = vdwg.mxu0
    %655 = vst [vmem:[%s3] sm:$0x3] %v653
    // Predicated region
    $region18: #{eadan_forward.3} parent=1 // pred_check
      _
    $region19: #{eadan_forward.3} parent=1 // pred_check_branch
      %657 = sbr.rel (0) target = $region21
    $region20: #{eadan_forward.3} parent=1 // pred_region
      _
    $region21: #{eadan_forward.3} parent=1 // pred_fallthru
      _
    // Predicated region
    $region22: #{eadan_forward.3} parent=1 // pred_check
      _
    $region23: #{eadan_forward.3} parent=1 // pred_check_branch
      %659 = sbr.rel (0) target = $region25
    $region24: #{eadan_forward.3} parent=1 // pred_region
      _
    $region25: #{eadan_forward.3} parent=1 // pred_fallthru
      _
    %660 = vsyncpa [#allocation3], 1

// kernel: eadan_forward.2
$region0: #{eadan_forward.2}
  #allocation0 [shape = 'u32[]', space=smem, size = 0x4, offset = 0x4, fixed_abs, tag = 'smem constant byte address 0x4 - core index']
  #allocation1 [shape = 'u32[72,128]{1,0:T(1,128)}', space=vmem, size = 0x9000, scoped, tag = 'internal scratch']
  #allocation2 [shape = 'f32[10,10,32]{2,1,0:T(8,128)}', space=vmem, size = 0x14000, scoped, tag = 'scratch operand']
  %s0 = inlined_call_operand.vmem [shape: f32[2,8,8,4], index: 0, kind: input, shape index: {}]
  %s1 = inlined_call_operand.vmem [shape: f32[9,4,16], index: 1, kind: input, shape index: {}]
  %s2 = inlined_call_operand.vmem [shape: f32[1,16], index: 2, kind: input, shape index: {}]
  %s3 = inlined_call_operand.vmem [shape: f32[9,16,16], index: 3, kind: input, shape index: {}]
  %s4 = inlined_call_operand.vmem [shape: f32[1,16], index: 4, kind: input, shape index: {}]
  %s5 = inlined_call_operand.hbm [shape: f32[9,16,32], index: 5, kind: input, shape index: {}]
  %s6 = inlined_call_operand.vmem [shape: f32[1,32], index: 6, kind: input, shape index: {}]
  %s7 = inlined_call_operand.hbm [shape: f32[9,32,32], index: 7, kind: input, shape index: {}]
  %s8 = inlined_call_operand.vmem [shape: f32[1,32], index: 8, kind: input, shape index: {}]
  %s9 = inlined_call_operand.vmem [shape: f32[2,8,8,32], index: 9, kind: output, shape index: {}]
  %s10 = sld [smem:[#allocation0]]
  $region77: #{eadan_forward.2} parent=0
    _
  %s12 = ssub.s32 1, %s10
  %s13 = scalar_select 0, %s12, %s10
  $region1: #{eadan_forward.2} parent=0
    #allocation3 [shape = 'u8[73728]{0}', space=vmem, size = 0x12000, scoped, tag = 'input window, operand 5, single buffered']
    #allocation4 [shape = 's32[2]{0}', space=sflag, size = 0x8, scoped, tag = 'scoped memory for eadan_forward.2']
    #allocation5 [shape = 'u8[147456]{0}', space=vmem, size = 0x24000, scoped, tag = 'input window, operand 7, single buffered']
    #allocation6 [shape = 's32[1]{0}', space=sflag, size = 0x4, scoped, tag = 'scoped memory for eadan_forward.2']
    %14 = vsyncpa [#allocation4], 0
    %15 = vsyncpa [#allocation6], 0
    loop: start=0, step=1, limit=4
    $region2: #{eadan_forward.2} parent=1 // loop_pre_header
      _
    $region3: #{eadan_forward.2} parent=1 // loop_header
      %s17 = sphi 0, %s21
      %p18 = scmp.ge.s32.totalorder %s17, 4
      %s27 = sphi 0, %s29
      %s30 = sphi 0, %s27
      %s31 = sphi 0, %s30
      %s47 = sphi 0, %s31
      %s51 = sphi 0, %s51
      %s53 = sphi 0, %s51
      %s54 = sphi 0, %s53
      %s68 = sphi 0, %s54
      %s72 = sphi 0, %s72
      %s74 = sphi 0, %s72
      %s75 = sphi 0, %s74
      %s89 = sphi 0, %s75
      %s93 = sphi 0, %s93
      %s95 = sphi 0, %s93
      %s96 = sphi 0, %s95
      %s110 = sphi 0, %s96
      %s114 = sphi 0, %s114
      %s116 = sphi 0, %s114
      %s117 = sphi 0, %s116
      %s131 = sphi 0, %s117
      %s135 = sphi 0, %s135
      %s137 = sphi 0, %s135
      %s138 = sphi 0, %s137
      %s152 = sphi 0, %s138
      %s156 = sphi 0, %s156
      %s158 = sphi 0, %s156
      %s159 = sphi 0, %s158
      %s173 = sphi 0, %s159
      %s177 = sphi 0, %s177
      %s179 = sphi 0, %s177
      %s180 = sphi 0, %s179
      %s194 = sphi 0, %s180
      %s198 = sphi 0, %s198
      %s200 = sphi 0, %s198
      %s201 = sphi 0, %s200
      %s215 = sphi 0, %s201
      %s221 = sphi 0, %s223
      %s224 = sphi 0, %s221
      %s225 = sphi 0, %s224
      %s241 = sphi 0, %s225
    $region4: #{eadan_forward.2} parent=1 // loop_header_branch
      %20 = sbr.rel (%p18) target = $region8
    $region5: #{eadan_forward.2} parent=1 // loop_body
      %s22 = ssub.s32 %s17, 1
      %s23 = ssub.s32 %s17, 2
      %s24 = sadd.s32 %s17, 1
      %s25 = ssub.s32 %s17, %s24
      %p26 = scmp.eq.s32.totalorder %s25, 0
      %s28 = sadd.s32 %s27, 1
      %s29 = scalar_select %p26, %s27, %s28
      %p32 = pneg %p26
      %p33 = scmp.eq.s32.totalorder %s17, 1
      %p34 = por %p32, %p33
      %p35 = scmp.ne.s32.totalorder %s27, %s30
      %p36 = scmp.eq.s32.totalorder %s17, 0
      %p37 = por %p35, %p36
      %p38 = scmp.ne.s32.totalorder %s27, %s30
      %p39 = scmp.eq.s32.totalorder %s22, 1
      %p40 = por %p38, %p39
      %p41 = scmp.ne.s32.totalorder %s30, %s31
      %p42 = scmp.eq.s32.totalorder %s22, 0
      %p43 = por %p41, %p42
      %p44 = scmp.ne.s32.totalorder %s30, %s31
      %p45 = scmp.eq.s32.totalorder %s23, 1
      %p46 = por %p44, %p45
      %p48 = scmp.ne.s32.totalorder %s31, %s47
      %p49 = scmp.eq.s32.totalorder %s23, 0
      %p50 = por %p48, %p49
      %s52 = sadd.s32 %s51, 1
      %p55 = scmp.eq.s32.totalorder %s17, 1
      %p56 = scmp.ne.s32.totalorder %s51, %s53
      %p57 = scmp.eq.s32.totalorder %s17, 0
      %p58 = por %p56, %p57
      %p59 = scmp.ne.s32.totalorder %s51, %s53
      %p60 = scmp.eq.s32.totalorder %s22, 1
      %p61 = por %p59, %p60
      %p62 = scmp.ne.s32.totalorder %s53, %s54
      %p63 = scmp.eq.s32.totalorder %s22, 0
      %p64 = por %p62, %p63
      %p65 = scmp.ne.s32.totalorder %s53, %s54
      %p66 = scmp.eq.s32.totalorder %s23, 1
      %p67 = por %p65, %p66
      %p69 = scmp.ne.s32.totalorder %s54, %s68
      %p70 = scmp.eq.s32.totalorder %s23, 0
      %p71 = por %p69, %p70
      %s73 = sadd.s32 %s72, 1
      %p76 = scmp.eq.s32.totalorder %s17, 1
      %p77 = scmp.ne.s32.totalorder %s72, %s74
      %p78 = scmp.eq.s32.totalorder %s17, 0
      %p79 = por %p77, %p78
      %p80 = scmp.ne.s32.totalorder %s72, %s74
      %p81 = scmp.eq.s32.totalorder %s22, 1
      %p82 = por %p80, %p81
      %p83 = scmp.ne.s32.totalorder %s74, %s75
      %p84 = scmp.eq.s32.totalorder %s22, 0
      %p85 = por %p83, %p84
      %p86 = scmp.ne.s32.totalorder %s74, %s75
      %p87 = scmp.eq.s32.totalorder %s23, 1
      %p88 = por %p86, %p87
      %p90 = scmp.ne.s32.totalorder %s75, %s89
      %p91 = scmp.eq.s32.totalorder %s23, 0
      %p92 = por %p90, %p91
      %s94 = sadd.s32 %s93, 1
      %p97 = scmp.eq.s32.totalorder %s17, 1
      %p98 = scmp.ne.s32.totalorder %s93, %s95
      %p99 = scmp.eq.s32.totalorder %s17, 0
      %p100 = por %p98, %p99
      %p101 = scmp.ne.s32.totalorder %s93, %s95
      %p102 = scmp.eq.s32.totalorder %s22, 1
      %p103 = por %p101, %p102
      %p104 = scmp.ne.s32.totalorder %s95, %s96
      %p105 = scmp.eq.s32.totalorder %s22, 0
      %p106 = por %p104, %p105
      %p107 = scmp.ne.s32.totalorder %s95, %s96
      %p108 = scmp.eq.s32.totalorder %s23, 1
      %p109 = por %p107, %p108
      %p111 = scmp.ne.s32.totalorder %s96, %s110
      %p112 = scmp.eq.s32.totalorder %s23, 0
      %p113 = por %p111, %p112
      %s115 = sadd.s32 %s114, 1
      %p118 = scmp.eq.s32.totalorder %s17, 1
      %p119 = scmp.ne.s32.totalorder %s114, %s116
      %p120 = scmp.eq.s32.totalorder %s17, 0
      %p121 = por %p119, %p120
      %p122 = scmp.ne.s32.totalorder %s114, %s116
      %p123 = scmp.eq.s32.totalorder %s22, 1
      %p124 = por %p122, %p123
      %p125 = scmp.ne.s32.totalorder %s116, %s117
      %p126 = scmp.eq.s32.totalorder %s22, 0
      %p127 = por %p125, %p126
      %p128 = scmp.ne.s32.totalorder %s116, %s117
      %p129 = scmp.eq.s32.totalorder %s23, 1
      %p130 = por %p128, %p129
      %p132 = scmp.ne.s32.totalorder %s117, %s131
      %p133 = scmp.eq.s32.totalorder %s23, 0
      %p134 = por %p132, %p133
      %s136 = sadd.s32 %s135, 1
      %p139 = scmp.eq.s32.totalorder %s17, 1
      %p140 = scmp.ne.s32.totalorder %s135, %s137
      %p141 = scmp.eq.s32.totalorder %s17, 0
      %p142 = por %p140, %p141
      %p143 = scmp.ne.s32.totalorder %s135, %s137
      %p144 = scmp.eq.s32.totalorder %s22, 1
      %p145 = por %p143, %p144
      %p146 = scmp.ne.s32.totalorder %s137, %s138
      %p147 = scmp.eq.s32.totalorder %s22, 0
      %p148 = por %p146, %p147
      %p149 = scmp.ne.s32.totalorder %s137, %s138
      %p150 = scmp.eq.s32.totalorder %s23, 1
      %p151 = por %p149, %p150
      %p153 = scmp.ne.s32.totalorder %s138, %s152
      %p154 = scmp.eq.s32.totalorder %s23, 0
      %p155 = por %p153, %p154
      %s157 = sadd.s32 %s156, 1
      %p160 = scmp.eq.s32.totalorder %s17, 1
      %p161 = scmp.ne.s32.totalorder %s156, %s158
      %p162 = scmp.eq.s32.totalorder %s17, 0
      %p163 = por %p161, %p162
      %p164 = scmp.ne.s32.totalorder %s156, %s158
      %p165 = scmp.eq.s32.totalorder %s22, 1
      %p166 = por %p164, %p165
      %p167 = scmp.ne.s32.totalorder %s158, %s159
      %p168 = scmp.eq.s32.totalorder %s22, 0
      %p169 = por %p167, %p168
      %p170 = scmp.ne.s32.totalorder %s158, %s159
      %p171 = scmp.eq.s32.totalorder %s23, 1
      %p172 = por %p170, %p171
      %p174 = scmp.ne.s32.totalorder %s159, %s173
      %p175 = scmp.eq.s32.totalorder %s23, 0
      %p176 = por %p174, %p175
      %s178 = sadd.s32 %s177, 1
      %p181 = scmp.eq.s32.totalorder %s17, 1
      %p182 = scmp.ne.s32.totalorder %s177, %s179
      %p183 = scmp.eq.s32.totalorder %s17, 0
      %p184 = por %p182, %p183
      %p185 = scmp.ne.s32.totalorder %s177, %s179
      %p186 = scmp.eq.s32.totalorder %s22, 1
      %p187 = por %p185, %p186
      %p188 = scmp.ne.s32.totalorder %s179, %s180
      %p189 = scmp.eq.s32.totalorder %s22, 0
      %p190 = por %p188, %p189
      %p191 = scmp.ne.s32.totalorder %s179, %s180
      %p192 = scmp.eq.s32.totalorder %s23, 1
      %p193 = por %p191, %p192
      %p195 = scmp.ne.s32.totalorder %s180, %s194
      %p196 = scmp.eq.s32.totalorder %s23, 0
      %p197 = por %p195, %p196
      %s199 = sadd.s32 %s198, 1
      %p202 = scmp.eq.s32.totalorder %s17, 1
      %p203 = scmp.ne.s32.totalorder %s198, %s200
      %p204 = scmp.eq.s32.totalorder %s17, 0
      %p205 = por %p203, %p204
      %p206 = scmp.ne.s32.totalorder %s198, %s200
      %p207 = scmp.eq.s32.totalorder %s22, 1
      %p208 = por %p206, %p207
      %p209 = scmp.ne.s32.totalorder %s200, %s201
      %p210 = scmp.eq.s32.totalorder %s22, 0
      %p211 = por %p209, %p210
      %p212 = scmp.ne.s32.totalorder %s200, %s201
      %p213 = scmp.eq.s32.totalorder %s23, 1
      %p214 = por %p212, %p213
      %p216 = scmp.ne.s32.totalorder %s201, %s215
      %p217 = scmp.eq.s32.totalorder %s23, 0
      %p218 = por %p216, %p217
      %s219 = ssub.s32 %s17, %s24
      %p220 = scmp.eq.s32.totalorder %s219, 0
      %s222 = sadd.s32 %s221, 1
      %s223 = scalar_select %p220, %s221, %s222
      %p226 = pneg %p220
      %p227 = scmp.eq.s32.totalorder %s17, 1
      %p228 = por %p226, %p227
      %p229 = scmp.ne.s32.totalorder %s221, %s224
      %p230 = scmp.eq.s32.totalorder %s17, 0
      %p231 = por %p229, %p230
      %p232 = scmp.ne.s32.totalorder %s221, %s224
      %p233 = scmp.eq.s32.totalorder %s22, 1
      %p234 = por %p232, %p233
      %p235 = scmp.ne.s32.totalorder %s224, %s225
      %p236 = scmp.eq.s32.totalorder %s22, 0
      %p237 = por %p235, %p236
      %p238 = scmp.ne.s32.totalorder %s224, %s225
      %p239 = scmp.eq.s32.totalorder %s23, 1
      %p240 = por %p238, %p239
      %p242 = scmp.ne.s32.totalorder %s225, %s241
      %p243 = scmp.eq.s32.totalorder %s23, 0
      %p244 = por %p242, %p243
      %p245 = scmp.le.s32.totalorder 1, %s17
      %p246 = scmp.lt.s32.totalorder %s17, 3
      %p247 = pnand %p245, %p246
      %p248 = pneg %p247
      // Predicated region
      $region9: #{eadan_forward.2} parent=5 // pred_check
        _
      $region10: #{eadan_forward.2} parent=5 // pred_check_branch
        %250 = sbr.rel (%p247) target = $region12
      $region11: #{eadan_forward.2} parent=5 // pred_region
        %s251 = ssub.s32 %s17, 1
        // Predicated region
        $region13: #{eadan_forward.2} parent=11 // pred_check
          %p252 = pneg %p64
        $region14: #{eadan_forward.2} parent=11 // pred_check_branch
          %254 = sbr.rel (%p252) target = $region16
        $region15: #{eadan_forward.2} parent=11 // pred_region
          _
        $region16: #{eadan_forward.2} parent=11 // pred_fallthru
          _
        // Predicated region
        $region17: #{eadan_forward.2} parent=11 // pred_check
          %p255 = pneg %p85
        $region18: #{eadan_forward.2} parent=11 // pred_check_branch
          %257 = sbr.rel (%p255) target = $region20
        $region19: #{eadan_forward.2} parent=11 // pred_region
          _
        $region20: #{eadan_forward.2} parent=11 // pred_fallthru
          _
        // Predicated region
        $region21: #{eadan_forward.2} parent=11 // pred_check
          %p258 = pneg %p106
        $region22: #{eadan_forward.2} parent=11 // pred_check_branch
          %260 = sbr.rel (%p258) target = $region24
        $region23: #{eadan_forward.2} parent=11 // pred_region
          _
        $region24: #{eadan_forward.2} parent=11 // pred_fallthru
          _
        // Predicated region
        $region25: #{eadan_forward.2} parent=11 // pred_check
          %p261 = pneg %p127
        $region26: #{eadan_forward.2} parent=11 // pred_check_branch
          %263 = sbr.rel (%p261) target = $region28
        $region27: #{eadan_forward.2} parent=11 // pred_region
          _
        $region28: #{eadan_forward.2} parent=11 // pred_fallthru
          _
        // Predicated region
        $region29: #{eadan_forward.2} parent=11 // pred_check
          %p264 = pneg %p148
        $region30: #{eadan_forward.2} parent=11 // pred_check_branch
          %266 = sbr.rel (%p264) target = $region32
        $region31: #{eadan_forward.2} parent=11 // pred_region
          %268 = vsyncadd [#allocation4], 0
          %s269 = sshll.u32 %s5, 4
          %s270 = int_to_ptr.hbm [resolvable:$true] %s269
          %s271 = sshll.u32 [#allocation3], 4
          %s272 = int_to_ptr.vmem [resolvable:$true] %s271
          %277 = dma.hbm_to_vmem [thread:$0]  %s270, 2304, %s272, [#allocation4], 128, 128, 8
        $region32: #{eadan_forward.2} parent=11 // pred_fallthru
          _
        // Predicated region
        $region33: #{eadan_forward.2} parent=11 // pred_check
          %p278 = pneg %p169
        $region34: #{eadan_forward.2} parent=11 // pred_check_branch
          %280 = sbr.rel (%p278) target = $region36
        $region35: #{eadan_forward.2} parent=11 // pred_region
          _
        $region36: #{eadan_forward.2} parent=11 // pred_fallthru
          _
        // Predicated region
        $region37: #{eadan_forward.2} parent=11 // pred_check
          %p281 = pneg %p190
        $region38: #{eadan_forward.2} parent=11 // pred_check_branch
          %283 = sbr.rel (%p281) target = $region40
        $region39: #{eadan_forward.2} parent=11 // pred_region
          %285 = vsyncadd [#allocation6], 0
          %s286 = sshll.u32 %s7, 4
          %s287 = int_to_ptr.hbm [resolvable:$true] %s286
          %s288 = sshll.u32 [#allocation5], 4
          %s289 = int_to_ptr.vmem [resolvable:$true] %s288
          %294 = dma.hbm_to_vmem [thread:$0]  %s287, 4608, %s289, [#allocation6], 128, 128, 8
        $region40: #{eadan_forward.2} parent=11 // pred_fallthru
          _
        // Predicated region
        $region41: #{eadan_forward.2} parent=11 // pred_check
          %p295 = pneg %p211
        $region42: #{eadan_forward.2} parent=11 // pred_check_branch
          %297 = sbr.rel (%p295) target = $region44
        $region43: #{eadan_forward.2} parent=11 // pred_region
          _
        $region44: #{eadan_forward.2} parent=11 // pred_fallthru
          _
      $region12: #{eadan_forward.2} parent=5 // pred_fallthru
        _
      %p298 = scmp.lt.s32.totalorder %s17, 2
      // Predicated region
      $region45: #{eadan_forward.2} parent=5 // pred_check
        %p299 = pneg %p298
      $region46: #{eadan_forward.2} parent=5 // pred_check_branch
        %301 = sbr.rel (%p299) target = $region48
      $region47: #{eadan_forward.2} parent=5 // pred_region
        // Predicated region
        $region49: #{eadan_forward.2} parent=47 // pred_check
          %p302 = pneg %p37
        $region50: #{eadan_forward.2} parent=47 // pred_check_branch
          %304 = sbr.rel (%p302) target = $region52
        $region51: #{eadan_forward.2} parent=47 // pred_region
          %p305 = scmp.lt.s32.totalorder %s17, 1
          %s306 = scalar_select %p305, %s17, 1
          %s307 = smul.addr %s306, 8
          %s308 = smul.addr %s307, 8
          %s309 = scalar_lea.vmem %s0, %s308
        $region52: #{eadan_forward.2} parent=47 // pred_fallthru
          _
      $region48: #{eadan_forward.2} parent=5 // pred_fallthru
        _
      %p310 = scmp.le.s32.totalorder 1, %s17
      %p311 = scmp.lt.s32.totalorder %s17, 3
      %p312 = pnand %p310, %p311
      %p313 = pneg %p312
      // Predicated region
      $region53: #{eadan_forward.2} parent=5 // pred_check
        _
      $region54: #{eadan_forward.2} parent=5 // pred_check_branch
        %315 = sbr.rel (%p312) target = $region56
      $region55: #{eadan_forward.2} parent=5 // pred_region
        %s316 = ssub.s32 %s17, 1
        // Predicated region
        $region57: #{eadan_forward.2} parent=55 // pred_check
          %p317 = pneg %p148
        $region58: #{eadan_forward.2} parent=55 // pred_check_branch
          %319 = sbr.rel (%p317) target = $region60
        $region59: #{eadan_forward.2} parent=55 // pred_region
          %321 = dma.done [#allocation4], 2304
        $region60: #{eadan_forward.2} parent=55 // pred_fallthru
          _
        // Predicated region
        $region61: #{eadan_forward.2} parent=55 // pred_check
          %p322 = pneg %p190
        $region62: #{eadan_forward.2} parent=55 // pred_check_branch
          %324 = sbr.rel (%p322) target = $region64
        $region63: #{eadan_forward.2} parent=55 // pred_region
          %326 = dma.done [#allocation6], 4608
        $region64: #{eadan_forward.2} parent=55 // pred_fallthru
          _
        %p327 = scmp.lt.s32.totalorder %s22, 1
        %s328 = scalar_select %p327, %s22, 1
        %s329 = smul.addr %s328, 8
        %s330 = smul.addr %s329, 8
        %s331 = scalar_lea.vmem %s0, %s330
        %p332 = pneg %p43
        %p333 = pneg %p40
        %p334 = pneg %p64
        %p335 = pneg %p61
        %p336 = pneg %p85
        %p337 = pneg %p82
        %p338 = pneg %p106
        %p339 = pneg %p103
        %p340 = pneg %p127
        %p341 = pneg %p124
        %p342 = pneg %p148
        %p343 = pneg %p145
        %p344 = pneg %p169
        %p345 = pneg %p166
        %p346 = pneg %p190
        %p347 = pneg %p187
        %p348 = pneg %p211
        %p349 = pneg %p208
        %p350 = pneg %p237
        %p351 = pneg %p234
        %p352 = scmp.lt.s32.totalorder %s22, 1
        %s353 = scalar_select %p352, %s22, 1
        %s354 = smul.addr %s353, 8
        %s355 = smul.addr %s354, 8
        %s356 = scalar_lea.vmem %s9, %s355
        %p357 = scmp.lt.s32.totalorder %s22, 1
        %s358 = scalar_select %p357, %s22, 1
        %s359 = smul.addr %s358, 8
        %s360 = smul.addr %s359, 8
        %s361 = scalar_lea.vmem %s0, %s360
        %p362 = scmp.lt.s32.totalorder %s22, 1
        %s363 = scalar_select %p362, %s22, 1
        %s364 = smul.addr %s363, 8
        %s365 = smul.addr %s364, 8
        %s366 = scalar_lea.vmem %s9, %s365
        %vm367 = vcmask 261120
        %368 = vst.msk [vmem:[#allocation2] sm:$0xff] %vm367, 0.0
        %vm369 = vcmask 254976
        %370 = vst.msk [vmem:[#allocation2 + $0x8] sm:$0x3] %vm369, 0.0
        %371 = vst.msk [vmem:[#allocation2 + $0x10] sm:$0xff] %vm367, 0.0
        %372 = vst.msk [vmem:[#allocation2 + $0x18] sm:$0x3] %vm369, 0.0
        %373 = vst.msk [vmem:[#allocation2 + $0x20] sm:$0xff] %vm367, 0.0
        %374 = vst.msk [vmem:[#allocation2 + $0x28] sm:$0x3] %vm369, 0.0
        %375 = vst.msk [vmem:[#allocation2 + $0x30] sm:$0xff] %vm367, 0.0
        %376 = vst.msk [vmem:[#allocation2 + $0x38] sm:$0x3] %vm369, 0.0
        %377 = vst.msk [vmem:[#allocation2 + $0x40] sm:$0xff] %vm367, 0.0
        %378 = vst.msk [vmem:[#allocation2 + $0x48] sm:$0x3] %vm369, 0.0
        %379 = vst.msk [vmem:[#allocation2 + $0x50] sm:$0xff] %vm367, 0.0
        %380 = vst.msk [vmem:[#allocation2 + $0x58] sm:$0x3] %vm369, 0.0
        %381 = vst.msk [vmem:[#allocation2 + $0x60] sm:$0xff] %vm367, 0.0
        %382 = vst.msk [vmem:[#allocation2 + $0x68] sm:$0x3] %vm369, 0.0
        %383 = vst.msk [vmem:[#allocation2 + $0x70] sm:$0xff] %vm367, 0.0
        %384 = vst.msk [vmem:[#allocation2 + $0x78] sm:$0x3] %vm369, 0.0
        %385 = vst.msk [vmem:[#allocation2 + $0x80] sm:$0xff] %vm367, 0.0
        %386 = vst.msk [vmem:[#allocation2 + $0x88] sm:$0x3] %vm369, 0.0
        %387 = vst.msk [vmem:[#allocation2 + $0x90] sm:$0xff] %vm367, 0.0
        %388 = vst.msk [vmem:[#allocation2 + $0x98] sm:$0x3] %vm369, 0.0
        %v389 = vld [vmem:[%s361] sm:$0xff]
        %v390 = vld [vmem:[%s361 + $0x8] sm:$0xff]
        %v391 = vld [vmem:[%s361 + $0x10] sm:$0xff]
        %v392 = vld [vmem:[%s361 + $0x18] sm:$0xff]
        %v393 = vld [vmem:[%s361 + $0x20] sm:$0xff]
        %v394 = vld [vmem:[%s361 + $0x28] sm:$0xff]
        %v395 = vld [vmem:[%s361 + $0x30] sm:$0xff]
        %v396 = vld [vmem:[%s361 + $0x38] sm:$0xff]
        %s397 = scalar_lea.vmem [#allocation2], 16
        %vm398 = vcmask 31744
        %399 = vst.msk [vmem:[%s397 + $0x1] sm:$0xff] %vm398, %v389
        %400 = vst.msk [vmem:[%s397 + $0x11] sm:$0xff] %vm398, %v390
        %401 = vst.msk [vmem:[%s397 + $0x21] sm:$0xff] %vm398, %v391
        %402 = vst.msk [vmem:[%s397 + $0x31] sm:$0xff] %vm398, %v392
        %403 = vst.msk [vmem:[%s397 + $0x41] sm:$0xff] %vm398, %v393
        %404 = vst.msk [vmem:[%s397 + $0x51] sm:$0xff] %vm398, %v394
        %405 = vst.msk [vmem:[%s397 + $0x61] sm:$0xff] %vm398, %v395
        %406 = vst.msk [vmem:[%s397 + $0x71] sm:$0xff] %vm398, %v396
        %v407 = vld [vmem:[#allocation2] sm:$0xff]
        %v408 = vld [vmem:[#allocation2 + $0x10] sm:$0xff]
        %v409 = vld [vmem:[#allocation2 + $0x20] sm:$0xff]
        %v410 = vld [vmem:[#allocation2 + $0x30] sm:$0xff]
        %v411 = vld [vmem:[#allocation2 + $0x40] sm:$0xff]
        %v412 = vld [vmem:[#allocation2 + $0x50] sm:$0xff]
        %v413 = vld [vmem:[#allocation2 + $0x60] sm:$0xff]
        %v414 = vld [vmem:[#allocation2 + $0x70] sm:$0xff]
        %v415 = vld [vmem:[%s1] sm:$0xf]
        %v416 = vld [vmem:[#allocation2 + $0x1] sm:$0xff]
        %v417 = vld [vmem:[#allocation2 + $0x11] sm:$0xff]
        %v418 = vld [vmem:[#allocation2 + $0x21] sm:$0xff]
        %v419 = vld [vmem:[#allocation2 + $0x31] sm:$0xff]
        %v420 = vld [vmem:[#allocation2 + $0x41] sm:$0xff]
        %v421 = vld [vmem:[#allocation2 + $0x51] sm:$0xff]
        %v422 = vld [vmem:[#allocation2 + $0x61] sm:$0xff]
        %v423 = vld [vmem:[#allocation2 + $0x71] sm:$0xff]
        %s424 = scalar_lea.vmem %s1, 4
        %v425 = vld [vmem:[%s424] sm:$0xf]
        %v427 = vsel %vm398, %v416, 0
        %v430 = vsel %vm398, %v417, 0
        %v433 = vsel %vm398, %v418, 0
        %v436 = vsel %vm398, %v419, 0
        %v439 = vsel %vm398, %v420, 0
        %v442 = vsel %vm398, %v421, 0
        %v445 = vsel %vm398, %v422, 0
        %v448 = vsel %vm398, %v423, 0
        %vm450 = vcmask 1043456
        %v452 = vsel %vm450, %v425, 0
        %454 = vmatpush.msra.mxu0 0.0
        %455 = vmatpush.msra.mxu0 0.0
        %456 = vmatpush.msra.mxu0 0.0
        %457 = vmatpush.msra.mxu0 0.0
        %458 = vmatpush.msra.mxu0 0.0
        %459 = vmatpush.msra.mxu0 0.0
        %460 = vmatpush.msra.mxu0 0.0
        %461 = vmatpush.msra.mxu0 0.0
        %462 = vmatpush.msra.mxu0 0.0
        %463 = vmatpush.msra.mxu0 0.0
        %464 = vmatpush.msra.mxu0 0.0
        %465 = vmatpush.msra.mxu0 0.0
        %466 = vmatpush.msra.mxu0 0.0
        %467 = vmatpush.msra.mxu0 0.0
        %468 = vmatpush.msra.mxu0 0.0
        %469 = vmatpush.msra.mxu0 %v452
        %470 = vmatmul.f32.gmra.mxu0 %v427
        %v471 = vpop.f32.mrf.mxu0
        %v472 = vadd.f32 0.0, %v471
        %473 = vmatmul.f32.gmra.mxu0 %v430
        %v474 = vpop.f32.mrf.mxu0
        %v475 = vadd.f32 0.0, %v474
        %476 = vmatmul.f32.gmra.mxu0 %v433
        %v477 = vpop.f32.mrf.mxu0
        %v478 = vadd.f32 0.0, %v477
        %479 = vmatmul.f32.gmra.mxu0 %v436
        %v480 = vpop.f32.mrf.mxu0
        %v481 = vadd.f32 0.0, %v480
        %482 = vmatmul.f32.gmra.mxu0 %v439
        %v483 = vpop.f32.mrf.mxu0
        %v484 = vadd.f32 0.0, %v483
        %485 = vmatmul.f32.gmra.mxu0 %v442
        %v486 = vpop.f32.mrf.mxu0
        %v487 = vadd.f32 0.0, %v486
        %488 = vmatmul.f32.gmra.mxu0 %v445
        %v489 = vpop.f32.mrf.mxu0
        %v490 = vadd.f32 0.0, %v489
        %491 = vmatmul.f32.gmra.mxu0 %v448
        %v492 = vpop.f32.mrf.mxu0
        %v493 = vadd.f32 0.0, %v492
        %494 = vdwg.mxu0
        %v496 = vsel %vm398, %v407, 0
        %v499 = vsel %vm398, %v408, 0
        %v502 = vsel %vm398, %v409, 0
        %v505 = vsel %vm398, %v410, 0
        %v508 = vsel %vm398, %v411, 0
        %v511 = vsel %vm398, %v412, 0
        %v514 = vsel %vm398, %v413, 0
        %v517 = vsel %vm398, %v414, 0
        %v520 = vsel %vm450, %v415, 0
        %522 = vmatpush.msra.mxu0 0.0
        %523 = vmatpush.msra.mxu0 0.0
        %524 = vmatpush.msra.mxu0 0.0
        %525 = vmatpush.msra.mxu0 0.0
        %526 = vmatpush.msra.mxu0 0.0
        %527 = vmatpush.msra.mxu0 0.0
        %528 = vmatpush.msra.mxu0 0.0
        %529 = vmatpush.msra.mxu0 0.0
        %530 = vmatpush.msra.mxu0 0.0
        %531 = vmatpush.msra.mxu0 0.0
        %532 = vmatpush.msra.mxu0 0.0
        %533 = vmatpush.msra.mxu0 0.0
        %534 = vmatpush.msra.mxu0 0.0
        %535 = vmatpush.msra.mxu0 0.0
        %536 = vmatpush.msra.mxu0 0.0
        %537 = vmatpush.msra.mxu0 %v520
        %538 = vmatmul.f32.gmra.mxu0 %v496
        %v539 = vpop.f32.mrf.mxu0
        %v540 = vadd.f32 %v472, %v539
        %541 = vmatmul.f32.gmra.mxu0 %v499
        %v542 = vpop.f32.mrf.mxu0
        %v543 = vadd.f32 %v475, %v542
        %544 = vmatmul.f32.gmra.mxu0 %v502
        %v545 = vpop.f32.mrf.mxu0
        %v546 = vadd.f32 %v478, %v545
        %547 = vmatmul.f32.gmra.mxu0 %v505
        %v548 = vpop.f32.mrf.mxu0
        %v549 = vadd.f32 %v481, %v548
        %550 = vmatmul.f32.gmra.mxu0 %v508
        %v551 = vpop.f32.mrf.mxu0
        %v552 = vadd.f32 %v484, %v551
        %553 = vmatmul.f32.gmra.mxu0 %v511
        %v554 = vpop.f32.mrf.mxu0
        %v555 = vadd.f32 %v487, %v554
        %556 = vmatmul.f32.gmra.mxu0 %v514
        %v557 = vpop.f32.mrf.mxu0
        %v558 = vadd.f32 %v490, %v557
        %559 = vmatmul.f32.gmra.mxu0 %v517
        %v560 = vpop.f32.mrf.mxu0
        %v561 = vadd.f32 %v493, %v560
        %562 = vdwg.mxu0
        %v563 = vld [vmem:[#allocation2 + $0x2] sm:$0xff]
        %v564 = vld [vmem:[#allocation2 + $0x12] sm:$0xff]
        %v565 = vld [vmem:[#allocation2 + $0x22] sm:$0xff]
        %v566 = vld [vmem:[#allocation2 + $0x32] sm:$0xff]
        %v567 = vld [vmem:[#allocation2 + $0x42] sm:$0xff]
        %v568 = vld [vmem:[#allocation2 + $0x52] sm:$0xff]
        %v569 = vld [vmem:[#allocation2 + $0x62] sm:$0xff]
        %v570 = vld [vmem:[#allocation2 + $0x72] sm:$0xff]
        %s571 = scalar_lea.vmem %s1, 8
        %v572 = vld [vmem:[%s571] sm:$0xf]
        %v574 = vsel %vm398, %v563, 0
        %v577 = vsel %vm398, %v564, 0
        %v580 = vsel %vm398, %v565, 0
        %v583 = vsel %vm398, %v566, 0
        %v586 = vsel %vm398, %v567, 0
        %v589 = vsel %vm398, %v568, 0
        %v592 = vsel %vm398, %v569, 0
        %v595 = vsel %vm398, %v570, 0
        %v598 = vsel %vm450, %v572, 0
        %600 = vmatpush.msra.mxu0 0.0
        %601 = vmatpush.msra.mxu0 0.0
        %602 = vmatpush.msra.mxu0 0.0
        %603 = vmatpush.msra.mxu0 0.0
        %604 = vmatpush.msra.mxu0 0.0
        %605 = vmatpush.msra.mxu0 0.0
        %606 = vmatpush.msra.mxu0 0.0
        %607 = vmatpush.msra.mxu0 0.0
        %608 = vmatpush.msra.mxu0 0.0
        %609 = vmatpush.msra.mxu0 0.0
        %610 = vmatpush.msra.mxu0 0.0
        %611 = vmatpush.msra.mxu0 0.0
        %612 = vmatpush.msra.mxu0 0.0
        %613 = vmatpush.msra.mxu0 0.0
        %614 = vmatpush.msra.mxu0 0.0
        %615 = vmatpush.msra.mxu0 %v598
        %616 = vmatmul.f32.gmra.mxu0 %v574
        %v617 = vpop.f32.mrf.mxu0
        %v618 = vadd.f32 0.0, %v617
        %619 = vmatmul.f32.gmra.mxu0 %v577
        %v620 = vpop.f32.mrf.mxu0
        %v621 = vadd.f32 0.0, %v620
        %622 = vmatmul.f32.gmra.mxu0 %v580
        %v623 = vpop.f32.mrf.mxu0
        %v624 = vadd.f32 0.0, %v623
        %625 = vmatmul.f32.gmra.mxu0 %v583
        %v626 = vpop.f32.mrf.mxu0
        %v627 = vadd.f32 0.0, %v626
        %628 = vmatmul.f32.gmra.mxu0 %v586
        %v629 = vpop.f32.mrf.mxu0
        %v630 = vadd.f32 0.0, %v629
        %631 = vmatmul.f32.gmra.mxu0 %v589
        %v632 = vpop.f32.mrf.mxu0
        %v633 = vadd.f32 0.0, %v632
        %634 = vmatmul.f32.gmra.mxu0 %v592
        %v635 = vpop.f32.mrf.mxu0
        %v636 = vadd.f32 0.0, %v635
        %637 = vmatmul.f32.gmra.mxu0 %v595
        %v638 = vpop.f32.mrf.mxu0
        %v639 = vadd.f32 0.0, %v638
        %640 = vdwg.mxu0
        %v641 = vadd.f32 %v540, %v618
        %v642 = vadd.f32 %v543, %v621
        %v643 = vadd.f32 %v546, %v624
        %v644 = vadd.f32 %v549, %v627
        %v645 = vadd.f32 %v552, %v630
        %v646 = vadd.f32 %v555, %v633
        %v647 = vadd.f32 %v558, %v636
        %v648 = vadd.f32 %v561, %v639
        %v649 = vld [vmem:[%s397] sm:$0xff]
        %v650 = vld [vmem:[%s397 + $0x10] sm:$0xff]
        %v651 = vld [vmem:[%s397 + $0x20] sm:$0xff]
        %v652 = vld [vmem:[%s397 + $0x30] sm:$0xff]
        %v653 = vld [vmem:[%s397 + $0x40] sm:$0xff]
        %v654 = vld [vmem:[%s397 + $0x50] sm:$0xff]
        %v655 = vld [vmem:[%s397 + $0x60] sm:$0xff]
        %v656 = vld [vmem:[%s397 + $0x70] sm:$0xff]
        %s657 = scalar_lea.vmem %s1, 12
        %v658 = vld [vmem:[%s657] sm:$0xf]
        %v660 = vsel %vm398, %v649, 0
        %v663 = vsel %vm398, %v650, 0
        %v666 = vsel %vm398, %v651, 0
        %v669 = vsel %vm398, %v652, 0
        %v672 = vsel %vm398, %v653, 0
        %v675 = vsel %vm398, %v654, 0
        %v678 = vsel %vm398, %v655, 0
        %v681 = vsel %vm398, %v656, 0
        %v684 = vsel %vm450, %v658, 0
        %686 = vmatpush.msra.mxu0 0.0
        %687 = vmatpush.msra.mxu0 0.0
        %688 = vmatpush.msra.mxu0 0.0
        %689 = vmatpush.msra.mxu0 0.0
        %690 = vmatpush.msra.mxu0 0.0
        %691 = vmatpush.msra.mxu0 0.0
        %692 = vmatpush.msra.mxu0 0.0
        %693 = vmatpush.msra.mxu0 0.0
        %694 = vmatpush.msra.mxu0 0.0
        %695 = vmatpush.msra.mxu0 0.0
        %696 = vmatpush.msra.mxu0 0.0
        %697 = vmatpush.msra.mxu0 0.0
        %698 = vmatpush.msra.mxu0 0.0
        %699 = vmatpush.msra.mxu0 0.0
        %700 = vmatpush.msra.mxu0 0.0
        %701 = vmatpush.msra.mxu0 %v684
        %702 = vmatmul.f32.gmra.mxu0 %v660
        %v703 = vpop.f32.mrf.mxu0
        %v704 = vadd.f32 0.0, %v703
        %705 = vmatmul.f32.gmra.mxu0 %v663
        %v706 = vpop.f32.mrf.mxu0
        %v707 = vadd.f32 0.0, %v706
        %708 = vmatmul.f32.gmra.mxu0 %v666
        %v709 = vpop.f32.mrf.mxu0
        %v710 = vadd.f32 0.0, %v709
        %711 = vmatmul.f32.gmra.mxu0 %v669
        %v712 = vpop.f32.mrf.mxu0
        %v713 = vadd.f32 0.0, %v712
        %714 = vmatmul.f32.gmra.mxu0 %v672
        %v715 = vpop.f32.mrf.mxu0
        %v716 = vadd.f32 0.0, %v715
        %717 = vmatmul.f32.gmra.mxu0 %v675
        %v718 = vpop.f32.mrf.mxu0
        %v719 = vadd.f32 0.0, %v718
        %720 = vmatmul.f32.gmra.mxu0 %v678
        %v721 = vpop.f32.mrf.mxu0
        %v722 = vadd.f32 0.0, %v721
        %723 = vmatmul.f32.gmra.mxu0 %v681
        %v724 = vpop.f32.mrf.mxu0
        %v725 = vadd.f32 0.0, %v724
        %726 = vdwg.mxu0
        %v727 = vadd.f32 %v641, %v704
        %v728 = vadd.f32 %v642, %v707
        %v729 = vadd.f32 %v643, %v710
        %v730 = vadd.f32 %v644, %v713
        %v731 = vadd.f32 %v645, %v716
        %v732 = vadd.f32 %v646, %v719
        %v733 = vadd.f32 %v647, %v722
        %v734 = vadd.f32 %v648, %v725
        %v735 = vld [vmem:[%s397 + $0x1] sm:$0xff]
        %v736 = vld [vmem:[%s397 + $0x11] sm:$0xff]
        %v737 = vld [vmem:[%s397 + $0x21] sm:$0xff]
        %v738 = vld [vmem:[%s397 + $0x31] sm:$0xff]
        %v739 = vld [vmem:[%s397 + $0x41] sm:$0xff]
        %v740 = vld [vmem:[%s397 + $0x51] sm:$0xff]
        %v741 = vld [vmem:[%s397 + $0x61] sm:$0xff]
        %v742 = vld [vmem:[%s397 + $0x71] sm:$0xff]
        %s743 = scalar_lea.vmem %s1, 16
        %v744 = vld [vmem:[%s743] sm:$0xf]
        %v746 = vsel %vm398, %v735, 0
        %v749 = vsel %vm398, %v736, 0
        %v752 = vsel %vm398, %v737, 0
        %v755 = vsel %vm398, %v738, 0
        %v758 = vsel %vm398, %v739, 0
        %v761 = vsel %vm398, %v740, 0
        %v764 = vsel %vm398, %v741, 0
        %v767 = vsel %vm398, %v742, 0
        %v770 = vsel %vm450, %v744, 0
        %772 = vmatpush.msra.mxu0 0.0
        %773 = vmatpush.msra.mxu0 0.0
        %774 = vmatpush.msra.mxu0 0.0
        %775 = vmatpush.msra.mxu0 0.0
        %776 = vmatpush.msra.mxu0 0.0
        %777 = vmatpush.msra.mxu0 0.0
        %778 = vmatpush.msra.mxu0 0.0
        %779 = vmatpush.msra.mxu0 0.0
        %780 = vmatpush.msra.mxu0 0.0
        %781 = vmatpush.msra.mxu0 0.0
        %782 = vmatpush.msra.mxu0 0.0
        %783 = vmatpush.msra.mxu0 0.0
        %784 = vmatpush.msra.mxu0 0.0
        %785 = vmatpush.msra.mxu0 0.0
        %786 = vmatpush.msra.mxu0 0.0
        %787 = vmatpush.msra.mxu0 %v770
        %788 = vmatmul.f32.gmra.mxu0 %v746
        %v789 = vpop.f32.mrf.mxu0
        %v790 = vadd.f32 0.0, %v789
        %791 = vmatmul.f32.gmra.mxu0 %v749
        %v792 = vpop.f32.mrf.mxu0
        %v793 = vadd.f32 0.0, %v792
        %794 = vmatmul.f32.gmra.mxu0 %v752
        %v795 = vpop.f32.mrf.mxu0
        %v796 = vadd.f32 0.0, %v795
        %797 = vmatmul.f32.gmra.mxu0 %v755
        %v798 = vpop.f32.mrf.mxu0
        %v799 = vadd.f32 0.0, %v798
        %800 = vmatmul.f32.gmra.mxu0 %v758
        %v801 = vpop.f32.mrf.mxu0
        %v802 = vadd.f32 0.0, %v801
        %803 = vmatmul.f32.gmra.mxu0 %v761
        %v804 = vpop.f32.mrf.mxu0
        %v805 = vadd.f32 0.0, %v804
        %806 = vmatmul.f32.gmra.mxu0 %v764
        %v807 = vpop.f32.mrf.mxu0
        %v808 = vadd.f32 0.0, %v807
        %809 = vmatmul.f32.gmra.mxu0 %v767
        %v810 = vpop.f32.mrf.mxu0
        %v811 = vadd.f32 0.0, %v810
        %812 = vdwg.mxu0
        %v813 = vadd.f32 %v727, %v790
        %v814 = vadd.f32 %v728, %v793
        %v815 = vadd.f32 %v729, %v796
        %v816 = vadd.f32 %v730, %v799
        %v817 = vadd.f32 %v731, %v802
        %v818 = vadd.f32 %v732, %v805
        %v819 = vadd.f32 %v733, %v808
        %v820 = vadd.f32 %v734, %v811
        %v821 = vld [vmem:[%s397 + $0x2] sm:$0xff]
        %v822 = vld [vmem:[%s397 + $0x12] sm:$0xff]
        %v823 = vld [vmem:[%s397 + $0x22] sm:$0xff]
        %v824 = vld [vmem:[%s397 + $0x32] sm:$0xff]
        %v825 = vld [vmem:[%s397 + $0x42] sm:$0xff]
        %v826 = vld [vmem:[%s397 + $0x52] sm:$0xff]
        %v827 = vld [vmem:[%s397 + $0x62] sm:$0xff]
        %v828 = vld [vmem:[%s397 + $0x72] sm:$0xff]
        %s829 = scalar_lea.vmem %s1, 20
        %v830 = vld [vmem:[%s829] sm:$0xf]
        %v832 = vsel %vm398, %v821, 0
        %v835 = vsel %vm398, %v822, 0
        %v838 = vsel %vm398, %v823, 0
        %v841 = vsel %vm398, %v824, 0
        %v844 = vsel %vm398, %v825, 0
        %v847 = vsel %vm398, %v826, 0
        %v850 = vsel %vm398, %v827, 0
        %v853 = vsel %vm398, %v828, 0
        %v856 = vsel %vm450, %v830, 0
        %858 = vmatpush.msra.mxu0 0.0
        %859 = vmatpush.msra.mxu0 0.0
        %860 = vmatpush.msra.mxu0 0.0
        %861 = vmatpush.msra.mxu0 0.0
        %862 = vmatpush.msra.mxu0 0.0
        %863 = vmatpush.msra.mxu0 0.0
        %864 = vmatpush.msra.mxu0 0.0
        %865 = vmatpush.msra.mxu0 0.0
        %866 = vmatpush.msra.mxu0 0.0
        %867 = vmatpush.msra.mxu0 0.0
        %868 = vmatpush.msra.mxu0 0.0
        %869 = vmatpush.msra.mxu0 0.0
        %870 = vmatpush.msra.mxu0 0.0
        %871 = vmatpush.msra.mxu0 0.0
        %872 = vmatpush.msra.mxu0 0.0
        %873 = vmatpush.msra.mxu0 %v856
        %874 = vmatmul.f32.gmra.mxu0 %v832
        %v875 = vpop.f32.mrf.mxu0
        %v876 = vadd.f32 0.0, %v875
        %877 = vmatmul.f32.gmra.mxu0 %v835
        %v878 = vpop.f32.mrf.mxu0
        %v879 = vadd.f32 0.0, %v878
        %880 = vmatmul.f32.gmra.mxu0 %v838
        %v881 = vpop.f32.mrf.mxu0
        %v882 = vadd.f32 0.0, %v881
        %883 = vmatmul.f32.gmra.mxu0 %v841
        %v884 = vpop.f32.mrf.mxu0
        %v885 = vadd.f32 0.0, %v884
        %886 = vmatmul.f32.gmra.mxu0 %v844
        %v887 = vpop.f32.mrf.mxu0
        %v888 = vadd.f32 0.0, %v887
        %889 = vmatmul.f32.gmra.mxu0 %v847
        %v890 = vpop.f32.mrf.mxu0
        %v891 = vadd.f32 0.0, %v890
        %892 = vmatmul.f32.gmra.mxu0 %v850
        %v893 = vpop.f32.mrf.mxu0
        %v894 = vadd.f32 0.0, %v893
        %895 = vmatmul.f32.gmra.mxu0 %v853
        %v896 = vpop.f32.mrf.mxu0
        %v897 = vadd.f32 0.0, %v896
        %898 = vdwg.mxu0
        %v899 = vadd.f32 %v813, %v876
        %v900 = vadd.f32 %v814, %v879
        %v901 = vadd.f32 %v815, %v882
        %v902 = vadd.f32 %v816, %v885
        %v903 = vadd.f32 %v817, %v888
        %v904 = vadd.f32 %v818, %v891
        %v905 = vadd.f32 %v819, %v894
        %v906 = vadd.f32 %v820, %v897
        %s907 = scalar_lea.vmem [#allocation2], 32
        %v908 = vld [vmem:[%s907] sm:$0xff]
        %v909 = vld [vmem:[%s907 + $0x10] sm:$0xff]
        %v910 = vld [vmem:[%s907 + $0x20] sm:$0xff]
        %v911 = vld [vmem:[%s907 + $0x30] sm:$0xff]
        %v912 = vld [vmem:[%s907 + $0x40] sm:$0xff]
        %v913 = vld [vmem:[%s907 + $0x50] sm:$0xff]
        %v914 = vld [vmem:[%s907 + $0x60] sm:$0xff]
        %v915 = vld [vmem:[%s907 + $0x70] sm:$0xff]
        %s916 = scalar_lea.vmem %s1, 24
        %v917 = vld [vmem:[%s916] sm:$0xf]
        %v919 = vsel %vm398, %v908, 0
        %v922 = vsel %vm398, %v909, 0
        %v925 = vsel %vm398, %v910, 0
        %v928 = vsel %vm398, %v911, 0
        %v931 = vsel %vm398, %v912, 0
        %v934 = vsel %vm398, %v913, 0
        %v937 = vsel %vm398, %v914, 0
        %v940 = vsel %vm398, %v915, 0
        %v943 = vsel %vm450, %v917, 0
        %945 = vmatpush.msra.mxu0 0.0
        %946 = vmatpush.msra.mxu0 0.0
        %947 = vmatpush.msra.mxu0 0.0
        %948 = vmatpush.msra.mxu0 0.0
        %949 = vmatpush.msra.mxu0 0.0
        %950 = vmatpush.msra.mxu0 0.0
        %951 = vmatpush.msra.mxu0 0.0
        %952 = vmatpush.msra.mxu0 0.0
        %953 = vmatpush.msra.mxu0 0.0
        %954 = vmatpush.msra.mxu0 0.0
        %955 = vmatpush.msra.mxu0 0.0
        %956 = vmatpush.msra.mxu0 0.0
        %957 = vmatpush.msra.mxu0 0.0
        %958 = vmatpush.msra.mxu0 0.0
        %959 = vmatpush.msra.mxu0 0.0
        %960 = vmatpush.msra.mxu0 %v943
        %961 = vmatmul.f32.gmra.mxu0 %v919
        %v962 = vpop.f32.mrf.mxu0
        %v963 = vadd.f32 0.0, %v962
        %964 = vmatmul.f32.gmra.mxu0 %v922
        %v965 = vpop.f32.mrf.mxu0
        %v966 = vadd.f32 0.0, %v965
        %967 = vmatmul.f32.gmra.mxu0 %v925
        %v968 = vpop.f32.mrf.mxu0
        %v969 = vadd.f32 0.0, %v968
        %970 = vmatmul.f32.gmra.mxu0 %v928
        %v971 = vpop.f32.mrf.mxu0
        %v972 = vadd.f32 0.0, %v971
        %973 = vmatmul.f32.gmra.mxu0 %v931
        %v974 = vpop.f32.mrf.mxu0
        %v975 = vadd.f32 0.0, %v974
        %976 = vmatmul.f32.gmra.mxu0 %v934
        %v977 = vpop.f32.mrf.mxu0
        %v978 = vadd.f32 0.0, %v977
        %979 = vmatmul.f32.gmra.mxu0 %v937
        %v980 = vpop.f32.mrf.mxu0
        %v981 = vadd.f32 0.0, %v980
        %982 = vmatmul.f32.gmra.mxu0 %v940
        %v983 = vpop.f32.mrf.mxu0
        %v984 = vadd.f32 0.0, %v983
        %985 = vdwg.mxu0
        %v986 = vadd.f32 %v899, %v963
        %v987 = vadd.f32 %v900, %v966
        %v988 = vadd.f32 %v901, %v969
        %v989 = vadd.f32 %v902, %v972
        %v990 = vadd.f32 %v903, %v975
        %v991 = vadd.f32 %v904, %v978
        %v992 = vadd.f32 %v905, %v981
        %v993 = vadd.f32 %v906, %v984
        %v994 = vld [vmem:[%s907 + $0x1] sm:$0xff]
        %v995 = vld [vmem:[%s907 + $0x11] sm:$0xff]
        %v996 = vld [vmem:[%s907 + $0x21] sm:$0xff]
        %v997 = vld [vmem:[%s907 + $0x31] sm:$0xff]
        %v998 = vld [vmem:[%s907 + $0x41] sm:$0xff]
        %v999 = vld [vmem:[%s907 + $0x51] sm:$0xff]
        %v1000 = vld [vmem:[%s907 + $0x61] sm:$0xff]
        %v1001 = vld [vmem:[%s907 + $0x71] sm:$0xff]
        %s1002 = scalar_lea.vmem %s1, 28
        %v1003 = vld [vmem:[%s1002] sm:$0xf]
        %v1005 = vsel %vm398, %v994, 0
        %v1008 = vsel %vm398, %v995, 0
        %v1011 = vsel %vm398, %v996, 0
        %v1014 = vsel %vm398, %v997, 0
        %v1017 = vsel %vm398, %v998, 0
        %v1020 = vsel %vm398, %v999, 0
        %v1023 = vsel %vm398, %v1000, 0
        %v1026 = vsel %vm398, %v1001, 0
        %v1029 = vsel %vm450, %v1003, 0
        %1031 = vmatpush.msra.mxu0 0.0
        %1032 = vmatpush.msra.mxu0 0.0
        %1033 = vmatpush.msra.mxu0 0.0
        %1034 = vmatpush.msra.mxu0 0.0
        %1035 = vmatpush.msra.mxu0 0.0
        %1036 = vmatpush.msra.mxu0 0.0
        %1037 = vmatpush.msra.mxu0 0.0
        %1038 = vmatpush.msra.mxu0 0.0
        %1039 = vmatpush.msra.mxu0 0.0
        %1040 = vmatpush.msra.mxu0 0.0
        %1041 = vmatpush.msra.mxu0 0.0
        %1042 = vmatpush.msra.mxu0 0.0
        %1043 = vmatpush.msra.mxu0 0.0
        %1044 = vmatpush.msra.mxu0 0.0
        %1045 = vmatpush.msra.mxu0 0.0
        %1046 = vmatpush.msra.mxu0 %v1029
        %1047 = vmatmul.f32.gmra.mxu0 %v1005
        %v1048 = vpop.f32.mrf.mxu0
        %v1049 = vadd.f32 0.0, %v1048
        %1050 = vmatmul.f32.gmra.mxu0 %v1008
        %v1051 = vpop.f32.mrf.mxu0
        %v1052 = vadd.f32 0.0, %v1051
        %1053 = vmatmul.f32.gmra.mxu0 %v1011
        %v1054 = vpop.f32.mrf.mxu0
        %v1055 = vadd.f32 0.0, %v1054
        %1056 = vmatmul.f32.gmra.mxu0 %v1014
        %v1057 = vpop.f32.mrf.mxu0
        %v1058 = vadd.f32 0.0, %v1057
        %1059 = vmatmul.f32.gmra.mxu0 %v1017
        %v1060 = vpop.f32.mrf.mxu0
        %v1061 = vadd.f32 0.0, %v1060
        %1062 = vmatmul.f32.gmra.mxu0 %v1020
        %v1063 = vpop.f32.mrf.mxu0
        %v1064 = vadd.f32 0.0, %v1063
        %1065 = vmatmul.f32.gmra.mxu0 %v1023
        %v1066 = vpop.f32.mrf.mxu0
        %v1067 = vadd.f32 0.0, %v1066
        %1068 = vmatmul.f32.gmra.mxu0 %v1026
        %v1069 = vpop.f32.mrf.mxu0
        %v1070 = vadd.f32 0.0, %v1069
        %1071 = vdwg.mxu0
        %v1072 = vadd.f32 %v986, %v1049
        %v1073 = vadd.f32 %v987, %v1052
        %v1074 = vadd.f32 %v988, %v1055
        %v1075 = vadd.f32 %v989, %v1058
        %v1076 = vadd.f32 %v990, %v1061
        %v1077 = vadd.f32 %v991, %v1064
        %v1078 = vadd.f32 %v992, %v1067
        %v1079 = vadd.f32 %v993, %v1070
        %v1080 = vld [vmem:[%s907 + $0x2] sm:$0xff]
        %v1081 = vld [vmem:[%s907 + $0x12] sm:$0xff]
        %v1082 = vld [vmem:[%s907 + $0x22] sm:$0xff]
        %v1083 = vld [vmem:[%s907 + $0x32] sm:$0xff]
        %v1084 = vld [vmem:[%s907 + $0x42] sm:$0xff]
        %v1085 = vld [vmem:[%s907 + $0x52] sm:$0xff]
        %v1086 = vld [vmem:[%s907 + $0x62] sm:$0xff]
        %v1087 = vld [vmem:[%s907 + $0x72] sm:$0xff]
        %s1088 = scalar_lea.vmem %s1, 32
        %v1089 = vld [vmem:[%s1088] sm:$0xf]
        %v1091 = vsel %vm398, %v1080, 0
        %v1094 = vsel %vm398, %v1081, 0
        %v1097 = vsel %vm398, %v1082, 0
        %v1100 = vsel %vm398, %v1083, 0
        %v1103 = vsel %vm398, %v1084, 0
        %v1106 = vsel %vm398, %v1085, 0
        %v1109 = vsel %vm398, %v1086, 0
        %v1112 = vsel %vm398, %v1087, 0
        %v1115 = vsel %vm450, %v1089, 0
        %1117 = vmatpush.msra.mxu0 0.0
        %1118 = vmatpush.msra.mxu0 0.0
        %1119 = vmatpush.msra.mxu0 0.0
        %1120 = vmatpush.msra.mxu0 0.0
        %1121 = vmatpush.msra.mxu0 0.0
        %1122 = vmatpush.msra.mxu0 0.0
        %1123 = vmatpush.msra.mxu0 0.0
        %1124 = vmatpush.msra.mxu0 0.0
        %1125 = vmatpush.msra.mxu0 0.0
        %1126 = vmatpush.msra.mxu0 0.0
        %1127 = vmatpush.msra.mxu0 0.0
        %1128 = vmatpush.msra.mxu0 0.0
        %1129 = vmatpush.msra.mxu0 0.0
        %1130 = vmatpush.msra.mxu0 0.0
        %1131 = vmatpush.msra.mxu0 0.0
        %1132 = vmatpush.msra.mxu0 %v1115
        %1133 = vmatmul.f32.gmra.mxu0 %v1091
        %v1134 = vpop.f32.mrf.mxu0
        %v1135 = vadd.f32 0.0, %v1134
        %1136 = vmatmul.f32.gmra.mxu0 %v1094
        %v1137 = vpop.f32.mrf.mxu0
        %v1138 = vadd.f32 0.0, %v1137
        %1139 = vmatmul.f32.gmra.mxu0 %v1097
        %v1140 = vpop.f32.mrf.mxu0
        %v1141 = vadd.f32 0.0, %v1140
        %1142 = vmatmul.f32.gmra.mxu0 %v1100
        %v1143 = vpop.f32.mrf.mxu0
        %v1144 = vadd.f32 0.0, %v1143
        %1145 = vmatmul.f32.gmra.mxu0 %v1103
        %v1146 = vpop.f32.mrf.mxu0
        %v1147 = vadd.f32 0.0, %v1146
        %1148 = vmatmul.f32.gmra.mxu0 %v1106
        %v1149 = vpop.f32.mrf.mxu0
        %v1150 = vadd.f32 0.0, %v1149
        %1151 = vmatmul.f32.gmra.mxu0 %v1109
        %v1152 = vpop.f32.mrf.mxu0
        %v1153 = vadd.f32 0.0, %v1152
        %1154 = vmatmul.f32.gmra.mxu0 %v1112
        %v1155 = vpop.f32.mrf.mxu0
        %v1156 = vadd.f32 0.0, %v1155
        %1157 = vdwg.mxu0
        %v1158 = vadd.f32 %v1072, %v1135
        %v1159 = vadd.f32 %v1073, %v1138
        %v1160 = vadd.f32 %v1074, %v1141
        %v1161 = vadd.f32 %v1075, %v1144
        %v1162 = vadd.f32 %v1076, %v1147
        %v1163 = vadd.f32 %v1077, %v1150
        %v1164 = vadd.f32 %v1078, %v1153
        %v1165 = vadd.f32 %v1079, %v1156
        %v1166 = vld [vmem:[%s2] sm:$0x1]
        %v1168 = vperm.slane %v1166, 0
        %v1170 = vadd.f32 %v1158, %v1168
        %v1171 = vadd.f32 %v1159, %v1168
        %v1172 = vadd.f32 %v1160, %v1168
        %v1173 = vadd.f32 %v1161, %v1168
        %v1174 = vadd.f32 %v1162, %v1168
        %v1175 = vadd.f32 %v1163, %v1168
        %v1176 = vadd.f32 %v1164, %v1168
        %v1177 = vadd.f32 %v1165, %v1168
        %v1178 = vmax.f32 %v1170, 0.0
        %v1179 = vmax.f32 %v1171, 0.0
        %v1180 = vmax.f32 %v1172, 0.0
        %v1181 = vmax.f32 %v1173, 0.0
        %v1182 = vmax.f32 %v1174, 0.0
        %v1183 = vmax.f32 %v1175, 0.0
        %v1184 = vmax.f32 %v1176, 0.0
        %v1185 = vmax.f32 %v1177, 0.0
        %vm1186 = vcmask 130048
        %1187 = vst.msk [vmem:[%s397 + $0x1] sm:$0xff] %vm1186, %v1178
        %1188 = vst.msk [vmem:[%s397 + $0x11] sm:$0xff] %vm1186, %v1179
        %1189 = vst.msk [vmem:[%s397 + $0x21] sm:$0xff] %vm1186, %v1180
        %1190 = vst.msk [vmem:[%s397 + $0x31] sm:$0xff] %vm1186, %v1181
        %1191 = vst.msk [vmem:[%s397 + $0x41] sm:$0xff] %vm1186, %v1182
        %1192 = vst.msk [vmem:[%s397 + $0x51] sm:$0xff] %vm1186, %v1183
        %1193 = vst.msk [vmem:[%s397 + $0x61] sm:$0xff] %vm1186, %v1184
        %1194 = vst.msk [vmem:[%s397 + $0x71] sm:$0xff] %vm1186, %v1185
        %v1195 = vld [vmem:[#allocation2] sm:$0xff]
        %v1196 = vld [vmem:[#allocation2 + $0x10] sm:$0xff]
        %v1197 = vld [vmem:[#allocation2 + $0x20] sm:$0xff]
        %v1198 = vld [vmem:[#allocation2 + $0x30] sm:$0xff]
        %v1199 = vld [vmem:[#allocation2 + $0x40] sm:$0xff]
        %v1200 = vld [vmem:[#allocation2 + $0x50] sm:$0xff]
        %v1201 = vld [vmem:[#allocation2 + $0x60] sm:$0xff]
        %v1202 = vld [vmem:[#allocation2 + $0x70] sm:$0xff]
        %v1203 = vld [vmem:[%s3] sm:$0xff]
        %v1204 = vld [vmem:[%s3 + $0x8] sm:$0xff]
        %v1205 = vld [vmem:[#allocation2 + $0x1] sm:$0xff]
        %v1206 = vld [vmem:[#allocation2 + $0x11] sm:$0xff]
        %v1207 = vld [vmem:[#allocation2 + $0x21] sm:$0xff]
        %v1208 = vld [vmem:[#allocation2 + $0x31] sm:$0xff]
        %v1209 = vld [vmem:[#allocation2 + $0x41] sm:$0xff]
        %v1210 = vld [vmem:[#allocation2 + $0x51] sm:$0xff]
        %v1211 = vld [vmem:[#allocation2 + $0x61] sm:$0xff]
        %v1212 = vld [vmem:[#allocation2 + $0x71] sm:$0xff]
        %s1213 = scalar_lea.vmem %s3, 16
        %v1214 = vld [vmem:[%s1213] sm:$0xff]
        %v1215 = vld [vmem:[%s1213 + $0x8] sm:$0xff]
        %v1217 = vsel %vm1186, %v1205, 0
        %v1220 = vsel %vm1186, %v1206, 0
        %v1223 = vsel %vm1186, %v1207, 0
        %v1226 = vsel %vm1186, %v1208, 0
        %v1229 = vsel %vm1186, %v1209, 0
        %v1232 = vsel %vm1186, %v1210, 0
        %v1235 = vsel %vm1186, %v1211, 0
        %v1238 = vsel %vm1186, %v1212, 0
        %1240 = vmatpush.msra.mxu0 0.0
        %1241 = vmatpush.msra.mxu0 0.0
        %1242 = vmatpush.msra.mxu0 0.0
        %1243 = vmatpush.msra.mxu0 0.0
        %1244 = vmatpush.msra.mxu0 0.0
        %1245 = vmatpush.msra.mxu0 0.0
        %1246 = vmatpush.msra.mxu0 0.0
        %1247 = vmatpush.msra.mxu0 0.0
        %1248 = vmatpush.msra.mxu0 0.0
        %1249 = vmatpush.msra.mxu0 0.0
        %1250 = vmatpush.msra.mxu0 0.0
        %1251 = vmatpush.msra.mxu0 0.0
        %1252 = vmatpush.msra.mxu0 0.0
        %1253 = vmatpush.msra.mxu0 0.0
        %1254 = vmatpush.msra.mxu0 %v1215
        %1255 = vmatpush.msra.mxu0 %v1214
        %1256 = vmatmul.f32.gmra.mxu0 %v1217
        %v1257 = vpop.f32.mrf.mxu0
        %v1258 = vadd.f32 0.0, %v1257
        %1259 = vmatmul.f32.gmra.mxu0 %v1220
        %v1260 = vpop.f32.mrf.mxu0
        %v1261 = vadd.f32 0.0, %v1260
        %1262 = vmatmul.f32.gmra.mxu0 %v1223
        %v1263 = vpop.f32.mrf.mxu0
        %v1264 = vadd.f32 0.0, %v1263
        %1265 = vmatmul.f32.gmra.mxu0 %v1226
        %v1266 = vpop.f32.mrf.mxu0
        %v1267 = vadd.f32 0.0, %v1266
        %1268 = vmatmul.f32.gmra.mxu0 %v1229
        %v1269 = vpop.f32.mrf.mxu0
        %v1270 = vadd.f32 0.0, %v1269
        %1271 = vmatmul.f32.gmra.mxu0 %v1232
        %v1272 = vpop.f32.mrf.mxu0
        %v1273 = vadd.f32 0.0, %v1272
        %1274 = vmatmul.f32.gmra.mxu0 %v1235
        %v1275 = vpop.f32.mrf.mxu0
        %v1276 = vadd.f32 0.0, %v1275
        %1277 = vmatmul.f32.gmra.mxu0 %v1238
        %v1278 = vpop.f32.mrf.mxu0
        %v1279 = vadd.f32 0.0, %v1278
        %1280 = vdwg.mxu0
        %v1282 = vsel %vm1186, %v1195, 0
        %v1285 = vsel %vm1186, %v1196, 0
        %v1288 = vsel %vm1186, %v1197, 0
        %v1291 = vsel %vm1186, %v1198, 0
        %v1294 = vsel %vm1186, %v1199, 0
        %v1297 = vsel %vm1186, %v1200, 0
        %v1300 = vsel %vm1186, %v1201, 0
        %v1303 = vsel %vm1186, %v1202, 0
        %1305 = vmatpush.msra.mxu0 0.0
        %1306 = vmatpush.msra.mxu0 0.0
        %1307 = vmatpush.msra.mxu0 0.0
        %1308 = vmatpush.msra.mxu0 0.0
        %1309 = vmatpush.msra.mxu0 0.0
        %1310 = vmatpush.msra.mxu0 0.0
        %1311 = vmatpush.msra.mxu0 0.0
        %1312 = vmatpush.msra.mxu0 0.0
        %1313 = vmatpush.msra.mxu0 0.0
        %1314 = vmatpush.msra.mxu0 0.0
        %1315 = vmatpush.msra.mxu0 0.0
        %1316 = vmatpush.msra.mxu0 0.0
        %1317 = vmatpush.msra.mxu0 0.0
        %1318 = vmatpush.msra.mxu0 0.0
        %1319 = vmatpush.msra.mxu0 %v1204
        %1320 = vmatpush.msra.mxu0 %v1203
        %1321 = vmatmul.f32.gmra.mxu0 %v1282
        %v1322 = vpop.f32.mrf.mxu0
        %v1323 = vadd.f32 %v1258, %v1322
        %1324 = vmatmul.f32.gmra.mxu0 %v1285
        %v1325 = vpop.f32.mrf.mxu0
        %v1326 = vadd.f32 %v1261, %v1325
        %1327 = vmatmul.f32.gmra.mxu0 %v1288
        %v1328 = vpop.f32.mrf.mxu0
        %v1329 = vadd.f32 %v1264, %v1328
        %1330 = vmatmul.f32.gmra.mxu0 %v1291
        %v1331 = vpop.f32.mrf.mxu0
        %v1332 = vadd.f32 %v1267, %v1331
        %1333 = vmatmul.f32.gmra.mxu0 %v1294
        %v1334 = vpop.f32.mrf.mxu0
        %v1335 = vadd.f32 %v1270, %v1334
        %1336 = vmatmul.f32.gmra.mxu0 %v1297
        %v1337 = vpop.f32.mrf.mxu0
        %v1338 = vadd.f32 %v1273, %v1337
        %1339 = vmatmul.f32.gmra.mxu0 %v1300
        %v1340 = vpop.f32.mrf.mxu0
        %v1341 = vadd.f32 %v1276, %v1340
        %1342 = vmatmul.f32.gmra.mxu0 %v1303
        %v1343 = vpop.f32.mrf.mxu0
        %v1344 = vadd.f32 %v1279, %v1343
        %1345 = vdwg.mxu0
        %v1346 = vld [vmem:[#allocation2 + $0x2] sm:$0xff]
        %v1347 = vld [vmem:[#allocation2 + $0x12] sm:$0xff]
        %v1348 = vld [vmem:[#allocation2 + $0x22] sm:$0xff]
        %v1349 = vld [vmem:[#allocation2 + $0x32] sm:$0xff]
        %v1350 = vld [vmem:[#allocation2 + $0x42] sm:$0xff]
        %v1351 = vld [vmem:[#allocation2 + $0x52] sm:$0xff]
        %v1352 = vld [vmem:[#allocation2 + $0x62] sm:$0xff]
        %v1353 = vld [vmem:[#allocation2 + $0x72] sm:$0xff]
        %s1354 = scalar_lea.vmem %s3, 32
        %v1355 = vld [vmem:[%s1354] sm:$0xff]
        %v1356 = vld [vmem:[%s1354 + $0x8] sm:$0xff]
        %v1358 = vsel %vm1186, %v1346, 0
        %v1361 = vsel %vm1186, %v1347, 0
        %v1364 = vsel %vm1186, %v1348, 0
        %v1367 = vsel %vm1186, %v1349, 0
        %v1370 = vsel %vm1186, %v1350, 0
        %v1373 = vsel %vm1186, %v1351, 0
        %v1376 = vsel %vm1186, %v1352, 0
        %v1379 = vsel %vm1186, %v1353, 0
        %1381 = vmatpush.msra.mxu0 0.0
        %1382 = vmatpush.msra.mxu0 0.0
        %1383 = vmatpush.msra.mxu0 0.0
        %1384 = vmatpush.msra.mxu0 0.0
        %1385 = vmatpush.msra.mxu0 0.0
        %1386 = vmatpush.msra.mxu0 0.0
        %1387 = vmatpush.msra.mxu0 0.0
        %1388 = vmatpush.msra.mxu0 0.0
        %1389 = vmatpush.msra.mxu0 0.0
        %1390 = vmatpush.msra.mxu0 0.0
        %1391 = vmatpush.msra.mxu0 0.0
        %1392 = vmatpush.msra.mxu0 0.0
        %1393 = vmatpush.msra.mxu0 0.0
        %1394 = vmatpush.msra.mxu0 0.0
        %1395 = vmatpush.msra.mxu0 %v1356
        %1396 = vmatpush.msra.mxu0 %v1355
        %1397 = vmatmul.f32.gmra.mxu0 %v1358
        %v1398 = vpop.f32.mrf.mxu0
        %v1399 = vadd.f32 0.0, %v1398
        %1400 = vmatmul.f32.gmra.mxu0 %v1361
        %v1401 = vpop.f32.mrf.mxu0
        %v1402 = vadd.f32 0.0, %v1401
        %1403 = vmatmul.f32.gmra.mxu0 %v1364
        %v1404 = vpop.f32.mrf.mxu0
        %v1405 = vadd.f32 0.0, %v1404
        %1406 = vmatmul.f32.gmra.mxu0 %v1367
        %v1407 = vpop.f32.mrf.mxu0
        %v1408 = vadd.f32 0.0, %v1407
        %1409 = vmatmul.f32.gmra.mxu0 %v1370
        %v1410 = vpop.f32.mrf.mxu0
        %v1411 = vadd.f32 0.0, %v1410
        %1412 = vmatmul.f32.gmra.mxu0 %v1373
        %v1413 = vpop.f32.mrf.mxu0
        %v1414 = vadd.f32 0.0, %v1413
        %1415 = vmatmul.f32.gmra.mxu0 %v1376
        %v1416 = vpop.f32.mrf.mxu0
        %v1417 = vadd.f32 0.0, %v1416
        %1418 = vmatmul.f32.gmra.mxu0 %v1379
        %v1419 = vpop.f32.mrf.mxu0
        %v1420 = vadd.f32 0.0, %v1419
        %1421 = vdwg.mxu0
        %v1422 = vadd.f32 %v1323, %v1399
        %v1423 = vadd.f32 %v1326, %v1402
        %v1424 = vadd.f32 %v1329, %v1405
        %v1425 = vadd.f32 %v1332, %v1408
        %v1426 = vadd.f32 %v1335, %v1411
        %v1427 = vadd.f32 %v1338, %v1414
        %v1428 = vadd.f32 %v1341, %v1417
        %v1429 = vadd.f32 %v1344, %v1420
        %v1430 = vld [vmem:[%s397] sm:$0xff]
        %v1431 = vld [vmem:[%s397 + $0x10] sm:$0xff]
        %v1432 = vld [vmem:[%s397 + $0x20] sm:$0xff]
        %v1433 = vld [vmem:[%s397 + $0x30] sm:$0xff]
        %v1434 = vld [vmem:[%s397 + $0x40] sm:$0xff]
        %v1435 = vld [vmem:[%s397 + $0x50] sm:$0xff]
        %v1436 = vld [vmem:[%s397 + $0x60] sm:$0xff]
        %v1437 = vld [vmem:[%s397 + $0x70] sm:$0xff]
        %s1438 = scalar_lea.vmem %s3, 48
        %v1439 = vld [vmem:[%s1438] sm:$0xff]
        %v1440 = vld [vmem:[%s1438 + $0x8] sm:$0xff]
        %v1442 = vsel %vm1186, %v1430, 0
        %v1445 = vsel %vm1186, %v1431, 0
        %v1448 = vsel %vm1186, %v1432, 0
        %v1451 = vsel %vm1186, %v1433, 0
        %v1454 = vsel %vm1186, %v1434, 0
        %v1457 = vsel %vm1186, %v1435, 0
        %v1460 = vsel %vm1186, %v1436, 0
        %v1463 = vsel %vm1186, %v1437, 0
        %1465 = vmatpush.msra.mxu0 0.0
        %1466 = vmatpush.msra.mxu0 0.0
        %1467 = vmatpush.msra.mxu0 0.0
        %1468 = vmatpush.msra.mxu0 0.0
        %1469 = vmatpush.msra.mxu0 0.0
        %1470 = vmatpush.msra.mxu0 0.0
        %1471 = vmatpush.msra.mxu0 0.0
        %1472 = vmatpush.msra.mxu0 0.0
        %1473 = vmatpush.msra.mxu0 0.0
        %1474 = vmatpush.msra.mxu0 0.0
        %1475 = vmatpush.msra.mxu0 0.0
        %1476 = vmatpush.msra.mxu0 0.0
        %1477 = vmatpush.msra.mxu0 0.0
        %1478 = vmatpush.msra.mxu0 0.0
        %1479 = vmatpush.msra.mxu0 %v1440
        %1480 = vmatpush.msra.mxu0 %v1439
        %1481 = vmatmul.f32.gmra.mxu0 %v1442
        %v1482 = vpop.f32.mrf.mxu0
        %v1483 = vadd.f32 0.0, %v1482
        %1484 = vmatmul.f32.gmra.mxu0 %v1445
        %v1485 = vpop.f32.mrf.mxu0
        %v1486 = vadd.f32 0.0, %v1485
        %1487 = vmatmul.f32.gmra.mxu0 %v1448
        %v1488 = vpop.f32.mrf.mxu0
        %v1489 = vadd.f32 0.0, %v1488
        %1490 = vmatmul.f32.gmra.mxu0 %v1451
        %v1491 = vpop.f32.mrf.mxu0
        %v1492 = vadd.f32 0.0, %v1491
        %1493 = vmatmul.f32.gmra.mxu0 %v1454
        %v1494 = vpop.f32.mrf.mxu0
        %v1495 = vadd.f32 0.0, %v1494
        %1496 = vmatmul.f32.gmra.mxu0 %v1457
        %v1497 = vpop.f32.mrf.mxu0
        %v1498 = vadd.f32 0.0, %v1497
        %1499 = vmatmul.f32.gmra.mxu0 %v1460
        %v1500 = vpop.f32.mrf.mxu0
        %v1501 = vadd.f32 0.0, %v1500
        %1502 = vmatmul.f32.gmra.mxu0 %v1463
        %v1503 = vpop.f32.mrf.mxu0
        %v1504 = vadd.f32 0.0, %v1503
        %1505 = vdwg.mxu0
        %v1506 = vadd.f32 %v1422, %v1483
        %v1507 = vadd.f32 %v1423, %v1486
        %v1508 = vadd.f32 %v1424, %v1489
        %v1509 = vadd.f32 %v1425, %v1492
        %v1510 = vadd.f32 %v1426, %v1495
        %v1511 = vadd.f32 %v1427, %v1498
        %v1512 = vadd.f32 %v1428, %v1501
        %v1513 = vadd.f32 %v1429, %v1504
        %v1514 = vld [vmem:[%s397 + $0x1] sm:$0xff]
        %v1515 = vld [vmem:[%s397 + $0x11] sm:$0xff]
        %v1516 = vld [vmem:[%s397 + $0x21] sm:$0xff]
        %v1517 = vld [vmem:[%s397 + $0x31] sm:$0xff]
        %v1518 = vld [vmem:[%s397 + $0x41] sm:$0xff]
        %v1519 = vld [vmem:[%s397 + $0x51] sm:$0xff]
        %v1520 = vld [vmem:[%s397 + $0x61] sm:$0xff]
        %v1521 = vld [vmem:[%s397 + $0x71] sm:$0xff]
        %s1522 = scalar_lea.vmem %s3, 64
        %v1523 = vld [vmem:[%s1522] sm:$0xff]
        %v1524 = vld [vmem:[%s1522 + $0x8] sm:$0xff]
        %v1526 = vsel %vm1186, %v1514, 0
        %v1529 = vsel %vm1186, %v1515, 0
        %v1532 = vsel %vm1186, %v1516, 0
        %v1535 = vsel %vm1186, %v1517, 0
        %v1538 = vsel %vm1186, %v1518, 0
        %v1541 = vsel %vm1186, %v1519, 0
        %v1544 = vsel %vm1186, %v1520, 0
        %v1547 = vsel %vm1186, %v1521, 0
        %1549 = vmatpush.msra.mxu0 0.0
        %1550 = vmatpush.msra.mxu0 0.0
        %1551 = vmatpush.msra.mxu0 0.0
        %1552 = vmatpush.msra.mxu0 0.0
        %1553 = vmatpush.msra.mxu0 0.0
        %1554 = vmatpush.msra.mxu0 0.0
        %1555 = vmatpush.msra.mxu0 0.0
        %1556 = vmatpush.msra.mxu0 0.0
        %1557 = vmatpush.msra.mxu0 0.0
        %1558 = vmatpush.msra.mxu0 0.0
        %1559 = vmatpush.msra.mxu0 0.0
        %1560 = vmatpush.msra.mxu0 0.0
        %1561 = vmatpush.msra.mxu0 0.0
        %1562 = vmatpush.msra.mxu0 0.0
        %1563 = vmatpush.msra.mxu0 %v1524
        %1564 = vmatpush.msra.mxu0 %v1523
        %1565 = vmatmul.f32.gmra.mxu0 %v1526
        %v1566 = vpop.f32.mrf.mxu0
        %v1567 = vadd.f32 0.0, %v1566
        %1568 = vmatmul.f32.gmra.mxu0 %v1529
        %v1569 = vpop.f32.mrf.mxu0
        %v1570 = vadd.f32 0.0, %v1569
        %1571 = vmatmul.f32.gmra.mxu0 %v1532
        %v1572 = vpop.f32.mrf.mxu0
        %v1573 = vadd.f32 0.0, %v1572
        %1574 = vmatmul.f32.gmra.mxu0 %v1535
        %v1575 = vpop.f32.mrf.mxu0
        %v1576 = vadd.f32 0.0, %v1575
        %1577 = vmatmul.f32.gmra.mxu0 %v1538
        %v1578 = vpop.f32.mrf.mxu0
        %v1579 = vadd.f32 0.0, %v1578
        %1580 = vmatmul.f32.gmra.mxu0 %v1541
        %v1581 = vpop.f32.mrf.mxu0
        %v1582 = vadd.f32 0.0, %v1581
        %1583 = vmatmul.f32.gmra.mxu0 %v1544
        %v1584 = vpop.f32.mrf.mxu0
        %v1585 = vadd.f32 0.0, %v1584
        %1586 = vmatmul.f32.gmra.mxu0 %v1547
        %v1587 = vpop.f32.mrf.mxu0
        %v1588 = vadd.f32 0.0, %v1587
        %1589 = vdwg.mxu0
        %v1590 = vadd.f32 %v1506, %v1567
        %v1591 = vadd.f32 %v1507, %v1570
        %v1592 = vadd.f32 %v1508, %v1573
        %v1593 = vadd.f32 %v1509, %v1576
        %v1594 = vadd.f32 %v1510, %v1579
        %v1595 = vadd.f32 %v1511, %v1582
        %v1596 = vadd.f32 %v1512, %v1585
        %v1597 = vadd.f32 %v1513, %v1588
        %v1598 = vld [vmem:[%s397 + $0x2] sm:$0xff]
        %v1599 = vld [vmem:[%s397 + $0x12] sm:$0xff]
        %v1600 = vld [vmem:[%s397 + $0x22] sm:$0xff]
        %v1601 = vld [vmem:[%s397 + $0x32] sm:$0xff]
        %v1602 = vld [vmem:[%s397 + $0x42] sm:$0xff]
        %v1603 = vld [vmem:[%s397 + $0x52] sm:$0xff]
        %v1604 = vld [vmem:[%s397 + $0x62] sm:$0xff]
        %v1605 = vld [vmem:[%s397 + $0x72] sm:$0xff]
        %s1606 = scalar_lea.vmem %s3, 80
        %v1607 = vld [vmem:[%s1606] sm:$0xff]
        %v1608 = vld [vmem:[%s1606 + $0x8] sm:$0xff]
        %v1610 = vsel %vm1186, %v1598, 0
        %v1613 = vsel %vm1186, %v1599, 0
        %v1616 = vsel %vm1186, %v1600, 0
        %v1619 = vsel %vm1186, %v1601, 0
        %v1622 = vsel %vm1186, %v1602, 0
        %v1625 = vsel %vm1186, %v1603, 0
        %v1628 = vsel %vm1186, %v1604, 0
        %v1631 = vsel %vm1186, %v1605, 0
        %1633 = vmatpush.msra.mxu0 0.0
        %1634 = vmatpush.msra.mxu0 0.0
        %1635 = vmatpush.msra.mxu0 0.0
        %1636 = vmatpush.msra.mxu0 0.0
        %1637 = vmatpush.msra.mxu0 0.0
        %1638 = vmatpush.msra.mxu0 0.0
        %1639 = vmatpush.msra.mxu0 0.0
        %1640 = vmatpush.msra.mxu0 0.0
        %1641 = vmatpush.msra.mxu0 0.0
        %1642 = vmatpush.msra.mxu0 0.0
        %1643 = vmatpush.msra.mxu0 0.0
        %1644 = vmatpush.msra.mxu0 0.0
        %1645 = vmatpush.msra.mxu0 0.0
        %1646 = vmatpush.msra.mxu0 0.0
        %1647 = vmatpush.msra.mxu0 %v1608
        %1648 = vmatpush.msra.mxu0 %v1607
        %1649 = vmatmul.f32.gmra.mxu0 %v1610
        %v1650 = vpop.f32.mrf.mxu0
        %v1651 = vadd.f32 0.0, %v1650
        %1652 = vmatmul.f32.gmra.mxu0 %v1613
        %v1653 = vpop.f32.mrf.mxu0
        %v1654 = vadd.f32 0.0, %v1653
        %1655 = vmatmul.f32.gmra.mxu0 %v1616
        %v1656 = vpop.f32.mrf.mxu0
        %v1657 = vadd.f32 0.0, %v1656
        %1658 = vmatmul.f32.gmra.mxu0 %v1619
        %v1659 = vpop.f32.mrf.mxu0
        %v1660 = vadd.f32 0.0, %v1659
        %1661 = vmatmul.f32.gmra.mxu0 %v1622
        %v1662 = vpop.f32.mrf.mxu0
        %v1663 = vadd.f32 0.0, %v1662
        %1664 = vmatmul.f32.gmra.mxu0 %v1625
        %v1665 = vpop.f32.mrf.mxu0
        %v1666 = vadd.f32 0.0, %v1665
        %1667 = vmatmul.f32.gmra.mxu0 %v1628
        %v1668 = vpop.f32.mrf.mxu0
        %v1669 = vadd.f32 0.0, %v1668
        %1670 = vmatmul.f32.gmra.mxu0 %v1631
        %v1671 = vpop.f32.mrf.mxu0
        %v1672 = vadd.f32 0.0, %v1671
        %1673 = vdwg.mxu0
        %v1674 = vadd.f32 %v1590, %v1651
        %v1675 = vadd.f32 %v1591, %v1654
        %v1676 = vadd.f32 %v1592, %v1657
        %v1677 = vadd.f32 %v1593, %v1660
        %v1678 = vadd.f32 %v1594, %v1663
        %v1679 = vadd.f32 %v1595, %v1666
        %v1680 = vadd.f32 %v1596, %v1669
        %v1681 = vadd.f32 %v1597, %v1672
        %v1682 = vld [vmem:[%s907] sm:$0xff]
        %v1683 = vld [vmem:[%s907 + $0x10] sm:$0xff]
        %v1684 = vld [vmem:[%s907 + $0x20] sm:$0xff]
        %v1685 = vld [vmem:[%s907 + $0x30] sm:$0xff]
        %v1686 = vld [vmem:[%s907 + $0x40] sm:$0xff]
        %v1687 = vld [vmem:[%s907 + $0x50] sm:$0xff]
        %v1688 = vld [vmem:[%s907 + $0x60] sm:$0xff]
        %v1689 = vld [vmem:[%s907 + $0x70] sm:$0xff]
        %s1690 = scalar_lea.vmem %s3, 96
        %v1691 = vld [vmem:[%s1690] sm:$0xff]
        %v1692 = vld [vmem:[%s1690 + $0x8] sm:$0xff]
        %v1694 = vsel %vm1186, %v1682, 0
        %v1697 = vsel %vm1186, %v1683, 0
        %v1700 = vsel %vm1186, %v1684, 0
        %v1703 = vsel %vm1186, %v1685, 0
        %v1706 = vsel %vm1186, %v1686, 0
        %v1709 = vsel %vm1186, %v1687, 0
        %v1712 = vsel %vm1186, %v1688, 0
        %v1715 = vsel %vm1186, %v1689, 0
        %1717 = vmatpush.msra.mxu0 0.0
        %1718 = vmatpush.msra.mxu0 0.0
        %1719 = vmatpush.msra.mxu0 0.0
        %1720 = vmatpush.msra.mxu0 0.0
        %1721 = vmatpush.msra.mxu0 0.0
        %1722 = vmatpush.msra.mxu0 0.0
        %1723 = vmatpush.msra.mxu0 0.0
        %1724 = vmatpush.msra.mxu0 0.0
        %1725 = vmatpush.msra.mxu0 0.0
        %1726 = vmatpush.msra.mxu0 0.0
        %1727 = vmatpush.msra.mxu0 0.0
        %1728 = vmatpush.msra.mxu0 0.0
        %1729 = vmatpush.msra.mxu0 0.0
        %1730 = vmatpush.msra.mxu0 0.0
        %1731 = vmatpush.msra.mxu0 %v1692
        %1732 = vmatpush.msra.mxu0 %v1691
        %1733 = vmatmul.f32.gmra.mxu0 %v1694
        %v1734 = vpop.f32.mrf.mxu0
        %v1735 = vadd.f32 0.0, %v1734
        %1736 = vmatmul.f32.gmra.mxu0 %v1697
        %v1737 = vpop.f32.mrf.mxu0
        %v1738 = vadd.f32 0.0, %v1737
        %1739 = vmatmul.f32.gmra.mxu0 %v1700
        %v1740 = vpop.f32.mrf.mxu0
        %v1741 = vadd.f32 0.0, %v1740
        %1742 = vmatmul.f32.gmra.mxu0 %v1703
        %v1743 = vpop.f32.mrf.mxu0
        %v1744 = vadd.f32 0.0, %v1743
        %1745 = vmatmul.f32.gmra.mxu0 %v1706
        %v1746 = vpop.f32.mrf.mxu0
        %v1747 = vadd.f32 0.0, %v1746
        %1748 = vmatmul.f32.gmra.mxu0 %v1709
        %v1749 = vpop.f32.mrf.mxu0
        %v1750 = vadd.f32 0.0, %v1749
        %1751 = vmatmul.f32.gmra.mxu0 %v1712
        %v1752 = vpop.f32.mrf.mxu0
        %v1753 = vadd.f32 0.0, %v1752
        %1754 = vmatmul.f32.gmra.mxu0 %v1715
        %v1755 = vpop.f32.mrf.mxu0
        %v1756 = vadd.f32 0.0, %v1755
        %1757 = vdwg.mxu0
        %v1758 = vadd.f32 %v1674, %v1735
        %v1759 = vadd.f32 %v1675, %v1738
        %v1760 = vadd.f32 %v1676, %v1741
        %v1761 = vadd.f32 %v1677, %v1744
        %v1762 = vadd.f32 %v1678, %v1747
        %v1763 = vadd.f32 %v1679, %v1750
        %v1764 = vadd.f32 %v1680, %v1753
        %v1765 = vadd.f32 %v1681, %v1756
        %v1766 = vld [vmem:[%s907 + $0x1] sm:$0xff]
        %v1767 = vld [vmem:[%s907 + $0x11] sm:$0xff]
        %v1768 = vld [vmem:[%s907 + $0x21] sm:$0xff]
        %v1769 = vld [vmem:[%s907 + $0x31] sm:$0xff]
        %v1770 = vld [vmem:[%s907 + $0x41] sm:$0xff]
        %v1771 = vld [vmem:[%s907 + $0x51] sm:$0xff]
        %v1772 = vld [vmem:[%s907 + $0x61] sm:$0xff]
        %v1773 = vld [vmem:[%s907 + $0x71] sm:$0xff]
        %s1774 = scalar_lea.vmem %s3, 112
        %v1775 = vld [vmem:[%s1774] sm:$0xff]
        %v1776 = vld [vmem:[%s1774 + $0x8] sm:$0xff]
        %v1778 = vsel %vm1186, %v1766, 0
        %v1781 = vsel %vm1186, %v1767, 0
        %v1784 = vsel %vm1186, %v1768, 0
        %v1787 = vsel %vm1186, %v1769, 0
        %v1790 = vsel %vm1186, %v1770, 0
        %v1793 = vsel %vm1186, %v1771, 0
        %v1796 = vsel %vm1186, %v1772, 0
        %v1799 = vsel %vm1186, %v1773, 0
        %1801 = vmatpush.msra.mxu0 0.0
        %1802 = vmatpush.msra.mxu0 0.0
        %1803 = vmatpush.msra.mxu0 0.0
        %1804 = vmatpush.msra.mxu0 0.0
        %1805 = vmatpush.msra.mxu0 0.0
        %1806 = vmatpush.msra.mxu0 0.0
        %1807 = vmatpush.msra.mxu0 0.0
        %1808 = vmatpush.msra.mxu0 0.0
        %1809 = vmatpush.msra.mxu0 0.0
        %1810 = vmatpush.msra.mxu0 0.0
        %1811 = vmatpush.msra.mxu0 0.0
        %1812 = vmatpush.msra.mxu0 0.0
        %1813 = vmatpush.msra.mxu0 0.0
        %1814 = vmatpush.msra.mxu0 0.0
        %1815 = vmatpush.msra.mxu0 %v1776
        %1816 = vmatpush.msra.mxu0 %v1775
        %1817 = vmatmul.f32.gmra.mxu0 %v1778
        %v1818 = vpop.f32.mrf.mxu0
        %v1819 = vadd.f32 0.0, %v1818
        %1820 = vmatmul.f32.gmra.mxu0 %v1781
        %v1821 = vpop.f32.mrf.mxu0
        %v1822 = vadd.f32 0.0, %v1821
        %1823 = vmatmul.f32.gmra.mxu0 %v1784
        %v1824 = vpop.f32.mrf.mxu0
        %v1825 = vadd.f32 0.0, %v1824
        %1826 = vmatmul.f32.gmra.mxu0 %v1787
        %v1827 = vpop.f32.mrf.mxu0
        %v1828 = vadd.f32 0.0, %v1827
        %1829 = vmatmul.f32.gmra.mxu0 %v1790
        %v1830 = vpop.f32.mrf.mxu0
        %v1831 = vadd.f32 0.0, %v1830
        %1832 = vmatmul.f32.gmra.mxu0 %v1793
        %v1833 = vpop.f32.mrf.mxu0
        %v1834 = vadd.f32 0.0, %v1833
        %1835 = vmatmul.f32.gmra.mxu0 %v1796
        %v1836 = vpop.f32.mrf.mxu0
        %v1837 = vadd.f32 0.0, %v1836
        %1838 = vmatmul.f32.gmra.mxu0 %v1799
        %v1839 = vpop.f32.mrf.mxu0
        %v1840 = vadd.f32 0.0, %v1839
        %1841 = vdwg.mxu0
        %v1842 = vadd.f32 %v1758, %v1819
        %v1843 = vadd.f32 %v1759, %v1822
        %v1844 = vadd.f32 %v1760, %v1825
        %v1845 = vadd.f32 %v1761, %v1828
        %v1846 = vadd.f32 %v1762, %v1831
        %v1847 = vadd.f32 %v1763, %v1834
        %v1848 = vadd.f32 %v1764, %v1837
        %v1849 = vadd.f32 %v1765, %v1840
        %v1850 = vld [vmem:[%s907 + $0x2] sm:$0xff]
        %v1851 = vld [vmem:[%s907 + $0x12] sm:$0xff]
        %v1852 = vld [vmem:[%s907 + $0x22] sm:$0xff]
        %v1853 = vld [vmem:[%s907 + $0x32] sm:$0xff]
        %v1854 = vld [vmem:[%s907 + $0x42] sm:$0xff]
        %v1855 = vld [vmem:[%s907 + $0x52] sm:$0xff]
        %v1856 = vld [vmem:[%s907 + $0x62] sm:$0xff]
        %v1857 = vld [vmem:[%s907 + $0x72] sm:$0xff]
        %s1858 = scalar_lea.vmem %s3, 128
        %v1859 = vld [vmem:[%s1858] sm:$0xff]
        %v1860 = vld [vmem:[%s1858 + $0x8] sm:$0xff]
        %v1862 = vsel %vm1186, %v1850, 0
        %v1865 = vsel %vm1186, %v1851, 0
        %v1868 = vsel %vm1186, %v1852, 0
        %v1871 = vsel %vm1186, %v1853, 0
        %v1874 = vsel %vm1186, %v1854, 0
        %v1877 = vsel %vm1186, %v1855, 0
        %v1880 = vsel %vm1186, %v1856, 0
        %v1883 = vsel %vm1186, %v1857, 0
        %1885 = vmatpush.msra.mxu0 0.0
        %1886 = vmatpush.msra.mxu0 0.0
        %1887 = vmatpush.msra.mxu0 0.0
        %1888 = vmatpush.msra.mxu0 0.0
        %1889 = vmatpush.msra.mxu0 0.0
        %1890 = vmatpush.msra.mxu0 0.0
        %1891 = vmatpush.msra.mxu0 0.0
        %1892 = vmatpush.msra.mxu0 0.0
        %1893 = vmatpush.msra.mxu0 0.0
        %1894 = vmatpush.msra.mxu0 0.0
        %1895 = vmatpush.msra.mxu0 0.0
        %1896 = vmatpush.msra.mxu0 0.0
        %1897 = vmatpush.msra.mxu0 0.0
        %1898 = vmatpush.msra.mxu0 0.0
        %1899 = vmatpush.msra.mxu0 %v1860
        %1900 = vmatpush.msra.mxu0 %v1859
        %1901 = vmatmul.f32.gmra.mxu0 %v1862
        %v1902 = vpop.f32.mrf.mxu0
        %v1903 = vadd.f32 0.0, %v1902
        %1904 = vmatmul.f32.gmra.mxu0 %v1865
        %v1905 = vpop.f32.mrf.mxu0
        %v1906 = vadd.f32 0.0, %v1905
        %1907 = vmatmul.f32.gmra.mxu0 %v1868
        %v1908 = vpop.f32.mrf.mxu0
        %v1909 = vadd.f32 0.0, %v1908
        %1910 = vmatmul.f32.gmra.mxu0 %v1871
        %v1911 = vpop.f32.mrf.mxu0
        %v1912 = vadd.f32 0.0, %v1911
        %1913 = vmatmul.f32.gmra.mxu0 %v1874
        %v1914 = vpop.f32.mrf.mxu0
        %v1915 = vadd.f32 0.0, %v1914
        %1916 = vmatmul.f32.gmra.mxu0 %v1877
        %v1917 = vpop.f32.mrf.mxu0
        %v1918 = vadd.f32 0.0, %v1917
        %1919 = vmatmul.f32.gmra.mxu0 %v1880
        %v1920 = vpop.f32.mrf.mxu0
        %v1921 = vadd.f32 0.0, %v1920
        %1922 = vmatmul.f32.gmra.mxu0 %v1883
        %v1923 = vpop.f32.mrf.mxu0
        %v1924 = vadd.f32 0.0, %v1923
        %1925 = vdwg.mxu0
        %v1926 = vadd.f32 %v1842, %v1903
        %v1927 = vadd.f32 %v1843, %v1906
        %v1928 = vadd.f32 %v1844, %v1909
        %v1929 = vadd.f32 %v1845, %v1912
        %v1930 = vadd.f32 %v1846, %v1915
        %v1931 = vadd.f32 %v1847, %v1918
        %v1932 = vadd.f32 %v1848, %v1921
        %v1933 = vadd.f32 %v1849, %v1924
        %v1934 = vld [vmem:[%s4] sm:$0x1]
        %v1936 = vperm.slane %v1934, 0
        %v1938 = vadd.f32 %v1926, %v1936
        %v1939 = vadd.f32 %v1927, %v1936
        %v1940 = vadd.f32 %v1928, %v1936
        %v1941 = vadd.f32 %v1929, %v1936
        %v1942 = vadd.f32 %v1930, %v1936
        %v1943 = vadd.f32 %v1931, %v1936
        %v1944 = vadd.f32 %v1932, %v1936
        %v1945 = vadd.f32 %v1933, %v1936
        %v1946 = vmax.f32 %v1938, 0.0
        %v1947 = vmax.f32 %v1939, 0.0
        %v1948 = vmax.f32 %v1940, 0.0
        %v1949 = vmax.f32 %v1941, 0.0
        %v1950 = vmax.f32 %v1942, 0.0
        %v1951 = vmax.f32 %v1943, 0.0
        %v1952 = vmax.f32 %v1944, 0.0
        %v1953 = vmax.f32 %v1945, 0.0
        %1954 = vst.msk [vmem:[%s397 + $0x1] sm:$0xff] %vm1186, %v1946
        %1955 = vst.msk [vmem:[%s397 + $0x11] sm:$0xff] %vm1186, %v1947
        %1956 = vst.msk [vmem:[%s397 + $0x21] sm:$0xff] %vm1186, %v1948
        %1957 = vst.msk [vmem:[%s397 + $0x31] sm:$0xff] %vm1186, %v1949
        %1958 = vst.msk [vmem:[%s397 + $0x41] sm:$0xff] %vm1186, %v1950
        %1959 = vst.msk [vmem:[%s397 + $0x51] sm:$0xff] %vm1186, %v1951
        %1960 = vst.msk [vmem:[%s397 + $0x61] sm:$0xff] %vm1186, %v1952
        %1961 = vst.msk [vmem:[%s397 + $0x71] sm:$0xff] %vm1186, %v1953
        %v1962 = vld [vmem:[#allocation2] sm:$0xff]
        %v1963 = vld [vmem:[#allocation2 + $0x10] sm:$0xff]
        %v1964 = vld [vmem:[#allocation2 + $0x20] sm:$0xff]
        %v1965 = vld [vmem:[#allocation2 + $0x30] sm:$0xff]
        %v1966 = vld [vmem:[#allocation2 + $0x40] sm:$0xff]
        %v1967 = vld [vmem:[#allocation2 + $0x50] sm:$0xff]
        %v1968 = vld [vmem:[#allocation2 + $0x60] sm:$0xff]
        %v1969 = vld [vmem:[#allocation2 + $0x70] sm:$0xff]
        %v1970 = vld [vmem:[#allocation3] sm:$0xff]
        %v1971 = vld [vmem:[#allocation3 + $0x8] sm:$0xff]
        %v1972 = vld [vmem:[#allocation2 + $0x1] sm:$0xff]
        %v1973 = vld [vmem:[#allocation2 + $0x11] sm:$0xff]
        %v1974 = vld [vmem:[#allocation2 + $0x21] sm:$0xff]
        %v1975 = vld [vmem:[#allocation2 + $0x31] sm:$0xff]
        %v1976 = vld [vmem:[#allocation2 + $0x41] sm:$0xff]
        %v1977 = vld [vmem:[#allocation2 + $0x51] sm:$0xff]
        %v1978 = vld [vmem:[#allocation2 + $0x61] sm:$0xff]
        %v1979 = vld [vmem:[#allocation2 + $0x71] sm:$0xff]
        %s1980 = scalar_lea.vmem [#allocation3], 16
        %v1981 = vld [vmem:[%s1980] sm:$0xff]
        %v1982 = vld [vmem:[%s1980 + $0x8] sm:$0xff]
        %v1984 = vsel %vm1186, %v1972, 0
        %v1987 = vsel %vm1186, %v1973, 0
        %v1990 = vsel %vm1186, %v1974, 0
        %v1993 = vsel %vm1186, %v1975, 0
        %v1996 = vsel %vm1186, %v1976, 0
        %v1999 = vsel %vm1186, %v1977, 0
        %v2002 = vsel %vm1186, %v1978, 0
        %v2005 = vsel %vm1186, %v1979, 0
        %2007 = vmatpush.msra.mxu0 0.0
        %2008 = vmatpush.msra.mxu0 0.0
        %2009 = vmatpush.msra.mxu0 0.0
        %2010 = vmatpush.msra.mxu0 0.0
        %2011 = vmatpush.msra.mxu0 0.0
        %2012 = vmatpush.msra.mxu0 0.0
        %2013 = vmatpush.msra.mxu0 0.0
        %2014 = vmatpush.msra.mxu0 0.0
        %2015 = vmatpush.msra.mxu0 0.0
        %2016 = vmatpush.msra.mxu0 0.0
        %2017 = vmatpush.msra.mxu0 0.0
        %2018 = vmatpush.msra.mxu0 0.0
        %2019 = vmatpush.msra.mxu0 0.0
        %2020 = vmatpush.msra.mxu0 0.0
        %2021 = vmatpush.msra.mxu0 %v1982
        %2022 = vmatpush.msra.mxu0 %v1981
        %2023 = vmatmul.f32.gmra.mxu0 %v1984
        %v2024 = vpop.f32.mrf.mxu0
        %v2025 = vadd.f32 0.0, %v2024
        %2026 = vmatmul.f32.gmra.mxu0 %v1987
        %v2027 = vpop.f32.mrf.mxu0
        %v2028 = vadd.f32 0.0, %v2027
        %2029 = vmatmul.f32.gmra.mxu0 %v1990
        %v2030 = vpop.f32.mrf.mxu0
        %v2031 = vadd.f32 0.0, %v2030
        %2032 = vmatmul.f32.gmra.mxu0 %v1993
        %v2033 = vpop.f32.mrf.mxu0
        %v2034 = vadd.f32 0.0, %v2033
        %2035 = vmatmul.f32.gmra.mxu0 %v1996
        %v2036 = vpop.f32.mrf.mxu0
        %v2037 = vadd.f32 0.0, %v2036
        %2038 = vmatmul.f32.gmra.mxu0 %v1999
        %v2039 = vpop.f32.mrf.mxu0
        %v2040 = vadd.f32 0.0, %v2039
        %2041 = vmatmul.f32.gmra.mxu0 %v2002
        %v2042 = vpop.f32.mrf.mxu0
        %v2043 = vadd.f32 0.0, %v2042
        %2044 = vmatmul.f32.gmra.mxu0 %v2005
        %v2045 = vpop.f32.mrf.mxu0
        %v2046 = vadd.f32 0.0, %v2045
        %2047 = vdwg.mxu0
        %v2049 = vsel %vm1186, %v1962, 0
        %v2052 = vsel %vm1186, %v1963, 0
        %v2055 = vsel %vm1186, %v1964, 0
        %v2058 = vsel %vm1186, %v1965, 0
        %v2061 = vsel %vm1186, %v1966, 0
        %v2064 = vsel %vm1186, %v1967, 0
        %v2067 = vsel %vm1186, %v1968, 0
        %v2070 = vsel %vm1186, %v1969, 0
        %2072 = vmatpush.msra.mxu0 0.0
        %2073 = vmatpush.msra.mxu0 0.0
        %2074 = vmatpush.msra.mxu0 0.0
        %2075 = vmatpush.msra.mxu0 0.0
        %2076 = vmatpush.msra.mxu0 0.0
        %2077 = vmatpush.msra.mxu0 0.0
        %2078 = vmatpush.msra.mxu0 0.0
        %2079 = vmatpush.msra.mxu0 0.0
        %2080 = vmatpush.msra.mxu0 0.0
        %2081 = vmatpush.msra.mxu0 0.0
        %2082 = vmatpush.msra.mxu0 0.0
        %2083 = vmatpush.msra.mxu0 0.0
        %2084 = vmatpush.msra.mxu0 0.0
        %2085 = vmatpush.msra.mxu0 0.0
        %2086 = vmatpush.msra.mxu0 %v1971
        %2087 = vmatpush.msra.mxu0 %v1970
        %2088 = vmatmul.f32.gmra.mxu0 %v2049
        %v2089 = vpop.f32.mrf.mxu0
        %v2090 = vadd.f32 %v2025, %v2089
        %2091 = vmatmul.f32.gmra.mxu0 %v2052
        %v2092 = vpop.f32.mrf.mxu0
        %v2093 = vadd.f32 %v2028, %v2092
        %2094 = vmatmul.f32.gmra.mxu0 %v2055
        %v2095 = vpop.f32.mrf.mxu0
        %v2096 = vadd.f32 %v2031, %v2095
        %2097 = vmatmul.f32.gmra.mxu0 %v2058
        %v2098 = vpop.f32.mrf.mxu0
        %v2099 = vadd.f32 %v2034, %v2098
        %2100 = vmatmul.f32.gmra.mxu0 %v2061
        %v2101 = vpop.f32.mrf.mxu0
        %v2102 = vadd.f32 %v2037, %v2101
        %2103 = vmatmul.f32.gmra.mxu0 %v2064
        %v2104 = vpop.f32.mrf.mxu0
        %v2105 = vadd.f32 %v2040, %v2104
        %2106 = vmatmul.f32.gmra.mxu0 %v2067
        %v2107 = vpop.f32.mrf.mxu0
        %v2108 = vadd.f32 %v2043, %v2107
        %2109 = vmatmul.f32.gmra.mxu0 %v2070
        %v2110 = vpop.f32.mrf.mxu0
        %v2111 = vadd.f32 %v2046, %v2110
        %2112 = vdwg.mxu0
        %v2113 = vld [vmem:[#allocation2 + $0x2] sm:$0xff]
        %v2114 = vld [vmem:[#allocation2 + $0x12] sm:$0xff]
        %v2115 = vld [vmem:[#allocation2 + $0x22] sm:$0xff]
        %v2116 = vld [vmem:[#allocation2 + $0x32] sm:$0xff]
        %v2117 = vld [vmem:[#allocation2 + $0x42] sm:$0xff]
        %v2118 = vld [vmem:[#allocation2 + $0x52] sm:$0xff]
        %v2119 = vld [vmem:[#allocation2 + $0x62] sm:$0xff]
        %v2120 = vld [vmem:[#allocation2 + $0x72] sm:$0xff]
        %s2121 = scalar_lea.vmem [#allocation3], 32
        %v2122 = vld [vmem:[%s2121] sm:$0xff]
        %v2123 = vld [vmem:[%s2121 + $0x8] sm:$0xff]
        %v2125 = vsel %vm1186, %v2113, 0
        %v2128 = vsel %vm1186, %v2114, 0
        %v2131 = vsel %vm1186, %v2115, 0
        %v2134 = vsel %vm1186, %v2116, 0
        %v2137 = vsel %vm1186, %v2117, 0
        %v2140 = vsel %vm1186, %v2118, 0
        %v2143 = vsel %vm1186, %v2119, 0
        %v2146 = vsel %vm1186, %v2120, 0
        %2148 = vmatpush.msra.mxu0 0.0
        %2149 = vmatpush.msra.mxu0 0.0
        %2150 = vmatpush.msra.mxu0 0.0
        %2151 = vmatpush.msra.mxu0 0.0
        %2152 = vmatpush.msra.mxu0 0.0
        %2153 = vmatpush.msra.mxu0 0.0
        %2154 = vmatpush.msra.mxu0 0.0
        %2155 = vmatpush.msra.mxu0 0.0
        %2156 = vmatpush.msra.mxu0 0.0
        %2157 = vmatpush.msra.mxu0 0.0
        %2158 = vmatpush.msra.mxu0 0.0
        %2159 = vmatpush.msra.mxu0 0.0
        %2160 = vmatpush.msra.mxu0 0.0
        %2161 = vmatpush.msra.mxu0 0.0
        %2162 = vmatpush.msra.mxu0 %v2123
        %2163 = vmatpush.msra.mxu0 %v2122
        %2164 = vmatmul.f32.gmra.mxu0 %v2125
        %v2165 = vpop.f32.mrf.mxu0
        %v2166 = vadd.f32 0.0, %v2165
        %2167 = vmatmul.f32.gmra.mxu0 %v2128
        %v2168 = vpop.f32.mrf.mxu0
        %v2169 = vadd.f32 0.0, %v2168
        %2170 = vmatmul.f32.gmra.mxu0 %v2131
        %v2171 = vpop.f32.mrf.mxu0
        %v2172 = vadd.f32 0.0, %v2171
        %2173 = vmatmul.f32.gmra.mxu0 %v2134
        %v2174 = vpop.f32.mrf.mxu0
        %v2175 = vadd.f32 0.0, %v2174
        %2176 = vmatmul.f32.gmra.mxu0 %v2137
        %v2177 = vpop.f32.mrf.mxu0
        %v2178 = vadd.f32 0.0, %v2177
        %2179 = vmatmul.f32.gmra.mxu0 %v2140
        %v2180 = vpop.f32.mrf.mxu0
        %v2181 = vadd.f32 0.0, %v2180
        %2182 = vmatmul.f32.gmra.mxu0 %v2143
        %v2183 = vpop.f32.mrf.mxu0
        %v2184 = vadd.f32 0.0, %v2183
        %2185 = vmatmul.f32.gmra.mxu0 %v2146
        %v2186 = vpop.f32.mrf.mxu0
        %v2187 = vadd.f32 0.0, %v2186
        %2188 = vdwg.mxu0
        %v2189 = vadd.f32 %v2090, %v2166
        %v2190 = vadd.f32 %v2093, %v2169
        %v2191 = vadd.f32 %v2096, %v2172
        %v2192 = vadd.f32 %v2099, %v2175
        %v2193 = vadd.f32 %v2102, %v2178
        %v2194 = vadd.f32 %v2105, %v2181
        %v2195 = vadd.f32 %v2108, %v2184
        %v2196 = vadd.f32 %v2111, %v2187
        %v2197 = vld [vmem:[%s397] sm:$0xff]
        %v2198 = vld [vmem:[%s397 + $0x10] sm:$0xff]
        %v2199 = vld [vmem:[%s397 + $0x20] sm:$0xff]
        %v2200 = vld [vmem:[%s397 + $0x30] sm:$0xff]
        %v2201 = vld [vmem:[%s397 + $0x40] sm:$0xff]
        %v2202 = vld [vmem:[%s397 + $0x50] sm:$0xff]
        %v2203 = vld [vmem:[%s397 + $0x60] sm:$0xff]
        %v2204 = vld [vmem:[%s397 + $0x70] sm:$0xff]
        %s2205 = scalar_lea.vmem [#allocation3], 48
        %v2206 = vld [vmem:[%s2205] sm:$0xff]
        %v2207 = vld [vmem:[%s2205 + $0x8] sm:$0xff]
        %v2209 = vsel %vm1186, %v2197, 0
        %v2212 = vsel %vm1186, %v2198, 0
        %v2215 = vsel %vm1186, %v2199, 0
        %v2218 = vsel %vm1186, %v2200, 0
        %v2221 = vsel %vm1186, %v2201, 0
        %v2224 = vsel %vm1186, %v2202, 0
        %v2227 = vsel %vm1186, %v2203, 0
        %v2230 = vsel %vm1186, %v2204, 0
        %2232 = vmatpush.msra.mxu0 0.0
        %2233 = vmatpush.msra.mxu0 0.0
        %2234 = vmatpush.msra.mxu0 0.0
        %2235 = vmatpush.msra.mxu0 0.0
        %2236 = vmatpush.msra.mxu0 0.0
        %2237 = vmatpush.msra.mxu0 0.0
        %2238 = vmatpush.msra.mxu0 0.0
        %2239 = vmatpush.msra.mxu0 0.0
        %2240 = vmatpush.msra.mxu0 0.0
        %2241 = vmatpush.msra.mxu0 0.0
        %2242 = vmatpush.msra.mxu0 0.0
        %2243 = vmatpush.msra.mxu0 0.0
        %2244 = vmatpush.msra.mxu0 0.0
        %2245 = vmatpush.msra.mxu0 0.0
        %2246 = vmatpush.msra.mxu0 %v2207
        %2247 = vmatpush.msra.mxu0 %v2206
        %2248 = vmatmul.f32.gmra.mxu0 %v2209
        %v2249 = vpop.f32.mrf.mxu0
        %v2250 = vadd.f32 0.0, %v2249
        %2251 = vmatmul.f32.gmra.mxu0 %v2212
        %v2252 = vpop.f32.mrf.mxu0
        %v2253 = vadd.f32 0.0, %v2252
        %2254 = vmatmul.f32.gmra.mxu0 %v2215
        %v2255 = vpop.f32.mrf.mxu0
        %v2256 = vadd.f32 0.0, %v2255
        %2257 = vmatmul.f32.gmra.mxu0 %v2218
        %v2258 = vpop.f32.mrf.mxu0
        %v2259 = vadd.f32 0.0, %v2258
        %2260 = vmatmul.f32.gmra.mxu0 %v2221
        %v2261 = vpop.f32.mrf.mxu0
        %v2262 = vadd.f32 0.0, %v2261
        %2263 = vmatmul.f32.gmra.mxu0 %v2224
        %v2264 = vpop.f32.mrf.mxu0
        %v2265 = vadd.f32 0.0, %v2264
        %2266 = vmatmul.f32.gmra.mxu0 %v2227
        %v2267 = vpop.f32.mrf.mxu0
        %v2268 = vadd.f32 0.0, %v2267
        %2269 = vmatmul.f32.gmra.mxu0 %v2230
        %v2270 = vpop.f32.mrf.mxu0
        %v2271 = vadd.f32 0.0, %v2270
        %2272 = vdwg.mxu0
        %v2273 = vadd.f32 %v2189, %v2250
        %v2274 = vadd.f32 %v2190, %v2253
        %v2275 = vadd.f32 %v2191, %v2256
        %v2276 = vadd.f32 %v2192, %v2259
        %v2277 = vadd.f32 %v2193, %v2262
        %v2278 = vadd.f32 %v2194, %v2265
        %v2279 = vadd.f32 %v2195, %v2268
        %v2280 = vadd.f32 %v2196, %v2271
        %v2281 = vld [vmem:[%s397 + $0x1] sm:$0xff]
        %v2282 = vld [vmem:[%s397 + $0x11] sm:$0xff]
        %v2283 = vld [vmem:[%s397 + $0x21] sm:$0xff]
        %v2284 = vld [vmem:[%s397 + $0x31] sm:$0xff]
        %v2285 = vld [vmem:[%s397 + $0x41] sm:$0xff]
        %v2286 = vld [vmem:[%s397 + $0x51] sm:$0xff]
        %v2287 = vld [vmem:[%s397 + $0x61] sm:$0xff]
        %v2288 = vld [vmem:[%s397 + $0x71] sm:$0xff]
        %s2289 = scalar_lea.vmem [#allocation3], 64
        %v2290 = vld [vmem:[%s2289] sm:$0xff]
        %v2291 = vld [vmem:[%s2289 + $0x8] sm:$0xff]
        %v2293 = vsel %vm1186, %v2281, 0
        %v2296 = vsel %vm1186, %v2282, 0
        %v2299 = vsel %vm1186, %v2283, 0
        %v2302 = vsel %vm1186, %v2284, 0
        %v2305 = vsel %vm1186, %v2285, 0
        %v2308 = vsel %vm1186, %v2286, 0
        %v2311 = vsel %vm1186, %v2287, 0
        %v2314 = vsel %vm1186, %v2288, 0
        %2316 = vmatpush.msra.mxu0 0.0
        %2317 = vmatpush.msra.mxu0 0.0
        %2318 = vmatpush.msra.mxu0 0.0
        %2319 = vmatpush.msra.mxu0 0.0
        %2320 = vmatpush.msra.mxu0 0.0
        %2321 = vmatpush.msra.mxu0 0.0
        %2322 = vmatpush.msra.mxu0 0.0
        %2323 = vmatpush.msra.mxu0 0.0
        %2324 = vmatpush.msra.mxu0 0.0
        %2325 = vmatpush.msra.mxu0 0.0
        %2326 = vmatpush.msra.mxu0 0.0
        %2327 = vmatpush.msra.mxu0 0.0
        %2328 = vmatpush.msra.mxu0 0.0
        %2329 = vmatpush.msra.mxu0 0.0
        %2330 = vmatpush.msra.mxu0 %v2291
        %2331 = vmatpush.msra.mxu0 %v2290
        %2332 = vmatmul.f32.gmra.mxu0 %v2293
        %v2333 = vpop.f32.mrf.mxu0
        %v2334 = vadd.f32 0.0, %v2333
        %2335 = vmatmul.f32.gmra.mxu0 %v2296
        %v2336 = vpop.f32.mrf.mxu0
        %v2337 = vadd.f32 0.0, %v2336
        %2338 = vmatmul.f32.gmra.mxu0 %v2299
        %v2339 = vpop.f32.mrf.mxu0
        %v2340 = vadd.f32 0.0, %v2339
        %2341 = vmatmul.f32.gmra.mxu0 %v2302
        %v2342 = vpop.f32.mrf.mxu0
        %v2343 = vadd.f32 0.0, %v2342
        %2344 = vmatmul.f32.gmra.mxu0 %v2305
        %v2345 = vpop.f32.mrf.mxu0
        %v2346 = vadd.f32 0.0, %v2345
        %2347 = vmatmul.f32.gmra.mxu0 %v2308
        %v2348 = vpop.f32.mrf.mxu0
        %v2349 = vadd.f32 0.0, %v2348
        %2350 = vmatmul.f32.gmra.mxu0 %v2311
        %v2351 = vpop.f32.mrf.mxu0
        %v2352 = vadd.f32 0.0, %v2351
        %2353 = vmatmul.f32.gmra.mxu0 %v2314
        %v2354 = vpop.f32.mrf.mxu0
        %v2355 = vadd.f32 0.0, %v2354
        %2356 = vdwg.mxu0
        %v2357 = vadd.f32 %v2273, %v2334
        %v2358 = vadd.f32 %v2274, %v2337
        %v2359 = vadd.f32 %v2275, %v2340
        %v2360 = vadd.f32 %v2276, %v2343
        %v2361 = vadd.f32 %v2277, %v2346
        %v2362 = vadd.f32 %v2278, %v2349
        %v2363 = vadd.f32 %v2279, %v2352
        %v2364 = vadd.f32 %v2280, %v2355
        %v2365 = vld [vmem:[%s397 + $0x2] sm:$0xff]
        %v2366 = vld [vmem:[%s397 + $0x12] sm:$0xff]
        %v2367 = vld [vmem:[%s397 + $0x22] sm:$0xff]
        %v2368 = vld [vmem:[%s397 + $0x32] sm:$0xff]
        %v2369 = vld [vmem:[%s397 + $0x42] sm:$0xff]
        %v2370 = vld [vmem:[%s397 + $0x52] sm:$0xff]
        %v2371 = vld [vmem:[%s397 + $0x62] sm:$0xff]
        %v2372 = vld [vmem:[%s397 + $0x72] sm:$0xff]
        %s2373 = scalar_lea.vmem [#allocation3], 80
        %v2374 = vld [vmem:[%s2373] sm:$0xff]
        %v2375 = vld [vmem:[%s2373 + $0x8] sm:$0xff]
        %v2377 = vsel %vm1186, %v2365, 0
        %v2380 = vsel %vm1186, %v2366, 0
        %v2383 = vsel %vm1186, %v2367, 0
        %v2386 = vsel %vm1186, %v2368, 0
        %v2389 = vsel %vm1186, %v2369, 0
        %v2392 = vsel %vm1186, %v2370, 0
        %v2395 = vsel %vm1186, %v2371, 0
        %v2398 = vsel %vm1186, %v2372, 0
        %2400 = vmatpush.msra.mxu0 0.0
        %2401 = vmatpush.msra.mxu0 0.0
        %2402 = vmatpush.msra.mxu0 0.0
        %2403 = vmatpush.msra.mxu0 0.0
        %2404 = vmatpush.msra.mxu0 0.0
        %2405 = vmatpush.msra.mxu0 0.0
        %2406 = vmatpush.msra.mxu0 0.0
        %2407 = vmatpush.msra.mxu0 0.0
        %2408 = vmatpush.msra.mxu0 0.0
        %2409 = vmatpush.msra.mxu0 0.0
        %2410 = vmatpush.msra.mxu0 0.0
        %2411 = vmatpush.msra.mxu0 0.0
        %2412 = vmatpush.msra.mxu0 0.0
        %2413 = vmatpush.msra.mxu0 0.0
        %2414 = vmatpush.msra.mxu0 %v2375
        %2415 = vmatpush.msra.mxu0 %v2374
        %2416 = vmatmul.f32.gmra.mxu0 %v2377
        %v2417 = vpop.f32.mrf.mxu0
        %v2418 = vadd.f32 0.0, %v2417
        %2419 = vmatmul.f32.gmra.mxu0 %v2380
        %v2420 = vpop.f32.mrf.mxu0
        %v2421 = vadd.f32 0.0, %v2420
        %2422 = vmatmul.f32.gmra.mxu0 %v2383
        %v2423 = vpop.f32.mrf.mxu0
        %v2424 = vadd.f32 0.0, %v2423
        %2425 = vmatmul.f32.gmra.mxu0 %v2386
        %v2426 = vpop.f32.mrf.mxu0
        %v2427 = vadd.f32 0.0, %v2426
        %2428 = vmatmul.f32.gmra.mxu0 %v2389
        %v2429 = vpop.f32.mrf.mxu0
        %v2430 = vadd.f32 0.0, %v2429
        %2431 = vmatmul.f32.gmra.mxu0 %v2392
        %v2432 = vpop.f32.mrf.mxu0
        %v2433 = vadd.f32 0.0, %v2432
        %2434 = vmatmul.f32.gmra.mxu0 %v2395
        %v2435 = vpop.f32.mrf.mxu0
        %v2436 = vadd.f32 0.0, %v2435
        %2437 = vmatmul.f32.gmra.mxu0 %v2398
        %v2438 = vpop.f32.mrf.mxu0
        %v2439 = vadd.f32 0.0, %v2438
        %2440 = vdwg.mxu0
        %v2441 = vadd.f32 %v2357, %v2418
        %v2442 = vadd.f32 %v2358, %v2421
        %v2443 = vadd.f32 %v2359, %v2424
        %v2444 = vadd.f32 %v2360, %v2427
        %v2445 = vadd.f32 %v2361, %v2430
        %v2446 = vadd.f32 %v2362, %v2433
        %v2447 = vadd.f32 %v2363, %v2436
        %v2448 = vadd.f32 %v2364, %v2439
        %v2449 = vld [vmem:[%s907] sm:$0xff]
        %v2450 = vld [vmem:[%s907 + $0x10] sm:$0xff]
        %v2451 = vld [vmem:[%s907 + $0x20] sm:$0xff]
        %v2452 = vld [vmem:[%s907 + $0x30] sm:$0xff]
        %v2453 = vld [vmem:[%s907 + $0x40] sm:$0xff]
        %v2454 = vld [vmem:[%s907 + $0x50] sm:$0xff]
        %v2455 = vld [vmem:[%s907 + $0x60] sm:$0xff]
        %v2456 = vld [vmem:[%s907 + $0x70] sm:$0xff]
        %s2457 = scalar_lea.vmem [#allocation3], 96
        %v2458 = vld [vmem:[%s2457] sm:$0xff]
        %v2459 = vld [vmem:[%s2457 + $0x8] sm:$0xff]
        %v2461 = vsel %vm1186, %v2449, 0
        %v2464 = vsel %vm1186, %v2450, 0
        %v2467 = vsel %vm1186, %v2451, 0
        %v2470 = vsel %vm1186, %v2452, 0
        %v2473 = vsel %vm1186, %v2453, 0
        %v2476 = vsel %vm1186, %v2454, 0
        %v2479 = vsel %vm1186, %v2455, 0
        %v2482 = vsel %vm1186, %v2456, 0
        %2484 = vmatpush.msra.mxu0 0.0
        %2485 = vmatpush.msra.mxu0 0.0
        %2486 = vmatpush.msra.mxu0 0.0
        %2487 = vmatpush.msra.mxu0 0.0
        %2488 = vmatpush.msra.mxu0 0.0
        %2489 = vmatpush.msra.mxu0 0.0
        %2490 = vmatpush.msra.mxu0 0.0
        %2491 = vmatpush.msra.mxu0 0.0
        %2492 = vmatpush.msra.mxu0 0.0
        %2493 = vmatpush.msra.mxu0 0.0
        %2494 = vmatpush.msra.mxu0 0.0
        %2495 = vmatpush.msra.mxu0 0.0
        %2496 = vmatpush.msra.mxu0 0.0
        %2497 = vmatpush.msra.mxu0 0.0
        %2498 = vmatpush.msra.mxu0 %v2459
        %2499 = vmatpush.msra.mxu0 %v2458
        %2500 = vmatmul.f32.gmra.mxu0 %v2461
        %v2501 = vpop.f32.mrf.mxu0
        %v2502 = vadd.f32 0.0, %v2501
        %2503 = vmatmul.f32.gmra.mxu0 %v2464
        %v2504 = vpop.f32.mrf.mxu0
        %v2505 = vadd.f32 0.0, %v2504
        %2506 = vmatmul.f32.gmra.mxu0 %v2467
        %v2507 = vpop.f32.mrf.mxu0
        %v2508 = vadd.f32 0.0, %v2507
        %2509 = vmatmul.f32.gmra.mxu0 %v2470
        %v2510 = vpop.f32.mrf.mxu0
        %v2511 = vadd.f32 0.0, %v2510
        %2512 = vmatmul.f32.gmra.mxu0 %v2473
        %v2513 = vpop.f32.mrf.mxu0
        %v2514 = vadd.f32 0.0, %v2513
        %2515 = vmatmul.f32.gmra.mxu0 %v2476
        %v2516 = vpop.f32.mrf.mxu0
        %v2517 = vadd.f32 0.0, %v2516
        %2518 = vmatmul.f32.gmra.mxu0 %v2479
        %v2519 = vpop.f32.mrf.mxu0
        %v2520 = vadd.f32 0.0, %v2519
        %2521 = vmatmul.f32.gmra.mxu0 %v2482
        %v2522 = vpop.f32.mrf.mxu0
        %v2523 = vadd.f32 0.0, %v2522
        %2524 = vdwg.mxu0
        %v2525 = vadd.f32 %v2441, %v2502
        %v2526 = vadd.f32 %v2442, %v2505
        %v2527 = vadd.f32 %v2443, %v2508
        %v2528 = vadd.f32 %v2444, %v2511
        %v2529 = vadd.f32 %v2445, %v2514
        %v2530 = vadd.f32 %v2446, %v2517
        %v2531 = vadd.f32 %v2447, %v2520
        %v2532 = vadd.f32 %v2448, %v2523
        %v2533 = vld [vmem:[%s907 + $0x1] sm:$0xff]
        %v2534 = vld [vmem:[%s907 + $0x11] sm:$0xff]
        %v2535 = vld [vmem:[%s907 + $0x21] sm:$0xff]
        %v2536 = vld [vmem:[%s907 + $0x31] sm:$0xff]
        %v2537 = vld [vmem:[%s907 + $0x41] sm:$0xff]
        %v2538 = vld [vmem:[%s907 + $0x51] sm:$0xff]
        %v2539 = vld [vmem:[%s907 + $0x61] sm:$0xff]
        %v2540 = vld [vmem:[%s907 + $0x71] sm:$0xff]
        %s2541 = scalar_lea.vmem [#allocation3], 112
        %v2542 = vld [vmem:[%s2541] sm:$0xff]
        %v2543 = vld [vmem:[%s2541 + $0x8] sm:$0xff]
        %v2545 = vsel %vm1186, %v2533, 0
        %v2548 = vsel %vm1186, %v2534, 0
        %v2551 = vsel %vm1186, %v2535, 0
        %v2554 = vsel %vm1186, %v2536, 0
        %v2557 = vsel %vm1186, %v2537, 0
        %v2560 = vsel %vm1186, %v2538, 0
        %v2563 = vsel %vm1186, %v2539, 0
        %v2566 = vsel %vm1186, %v2540, 0
        %2568 = vmatpush.msra.mxu0 0.0
        %2569 = vmatpush.msra.mxu0 0.0
        %2570 = vmatpush.msra.mxu0 0.0
        %2571 = vmatpush.msra.mxu0 0.0
        %2572 = vmatpush.msra.mxu0 0.0
        %2573 = vmatpush.msra.mxu0 0.0
        %2574 = vmatpush.msra.mxu0 0.0
        %2575 = vmatpush.msra.mxu0 0.0
        %2576 = vmatpush.msra.mxu0 0.0
        %2577 = vmatpush.msra.mxu0 0.0
        %2578 = vmatpush.msra.mxu0 0.0
        %2579 = vmatpush.msra.mxu0 0.0
        %2580 = vmatpush.msra.mxu0 0.0
        %2581 = vmatpush.msra.mxu0 0.0
        %2582 = vmatpush.msra.mxu0 %v2543
        %2583 = vmatpush.msra.mxu0 %v2542
        %2584 = vmatmul.f32.gmra.mxu0 %v2545
        %v2585 = vpop.f32.mrf.mxu0
        %v2586 = vadd.f32 0.0, %v2585
        %2587 = vmatmul.f32.gmra.mxu0 %v2548
        %v2588 = vpop.f32.mrf.mxu0
        %v2589 = vadd.f32 0.0, %v2588
        %2590 = vmatmul.f32.gmra.mxu0 %v2551
        %v2591 = vpop.f32.mrf.mxu0
        %v2592 = vadd.f32 0.0, %v2591
        %2593 = vmatmul.f32.gmra.mxu0 %v2554
        %v2594 = vpop.f32.mrf.mxu0
        %v2595 = vadd.f32 0.0, %v2594
        %2596 = vmatmul.f32.gmra.mxu0 %v2557
        %v2597 = vpop.f32.mrf.mxu0
        %v2598 = vadd.f32 0.0, %v2597
        %2599 = vmatmul.f32.gmra.mxu0 %v2560
        %v2600 = vpop.f32.mrf.mxu0
        %v2601 = vadd.f32 0.0, %v2600
        %2602 = vmatmul.f32.gmra.mxu0 %v2563
        %v2603 = vpop.f32.mrf.mxu0
        %v2604 = vadd.f32 0.0, %v2603
        %2605 = vmatmul.f32.gmra.mxu0 %v2566
        %v2606 = vpop.f32.mrf.mxu0
        %v2607 = vadd.f32 0.0, %v2606
        %2608 = vdwg.mxu0
        %v2609 = vadd.f32 %v2525, %v2586
        %v2610 = vadd.f32 %v2526, %v2589
        %v2611 = vadd.f32 %v2527, %v2592
        %v2612 = vadd.f32 %v2528, %v2595
        %v2613 = vadd.f32 %v2529, %v2598
        %v2614 = vadd.f32 %v2530, %v2601
        %v2615 = vadd.f32 %v2531, %v2604
        %v2616 = vadd.f32 %v2532, %v2607
        %v2617 = vld [vmem:[%s907 + $0x2] sm:$0xff]
        %v2618 = vld [vmem:[%s907 + $0x12] sm:$0xff]
        %v2619 = vld [vmem:[%s907 + $0x22] sm:$0xff]
        %v2620 = vld [vmem:[%s907 + $0x32] sm:$0xff]
        %v2621 = vld [vmem:[%s907 + $0x42] sm:$0xff]
        %v2622 = vld [vmem:[%s907 + $0x52] sm:$0xff]
        %v2623 = vld [vmem:[%s907 + $0x62] sm:$0xff]
        %v2624 = vld [vmem:[%s907 + $0x72] sm:$0xff]
        %s2625 = scalar_lea.vmem [#allocation3], 128
        %v2626 = vld [vmem:[%s2625] sm:$0xff]
        %v2627 = vld [vmem:[%s2625 + $0x8] sm:$0xff]
        %v2629 = vsel %vm1186, %v2617, 0
        %v2632 = vsel %vm1186, %v2618, 0
        %v2635 = vsel %vm1186, %v2619, 0
        %v2638 = vsel %vm1186, %v2620, 0
        %v2641 = vsel %vm1186, %v2621, 0
        %v2644 = vsel %vm1186, %v2622, 0
        %v2647 = vsel %vm1186, %v2623, 0
        %v2650 = vsel %vm1186, %v2624, 0
        %2652 = vmatpush.msra.mxu0 0.0
        %2653 = vmatpush.msra.mxu0 0.0
        %2654 = vmatpush.msra.mxu0 0.0
        %2655 = vmatpush.msra.mxu0 0.0
        %2656 = vmatpush.msra.mxu0 0.0
        %2657 = vmatpush.msra.mxu0 0.0
        %2658 = vmatpush.msra.mxu0 0.0
        %2659 = vmatpush.msra.mxu0 0.0
        %2660 = vmatpush.msra.mxu0 0.0
        %2661 = vmatpush.msra.mxu0 0.0
        %2662 = vmatpush.msra.mxu0 0.0
        %2663 = vmatpush.msra.mxu0 0.0
        %2664 = vmatpush.msra.mxu0 0.0
        %2665 = vmatpush.msra.mxu0 0.0
        %2666 = vmatpush.msra.mxu0 %v2627
        %2667 = vmatpush.msra.mxu0 %v2626
        %2668 = vmatmul.f32.gmra.mxu0 %v2629
        %v2669 = vpop.f32.mrf.mxu0
        %v2670 = vadd.f32 0.0, %v2669
        %2671 = vmatmul.f32.gmra.mxu0 %v2632
        %v2672 = vpop.f32.mrf.mxu0
        %v2673 = vadd.f32 0.0, %v2672
        %2674 = vmatmul.f32.gmra.mxu0 %v2635
        %v2675 = vpop.f32.mrf.mxu0
        %v2676 = vadd.f32 0.0, %v2675
        %2677 = vmatmul.f32.gmra.mxu0 %v2638
        %v2678 = vpop.f32.mrf.mxu0
        %v2679 = vadd.f32 0.0, %v2678
        %2680 = vmatmul.f32.gmra.mxu0 %v2641
        %v2681 = vpop.f32.mrf.mxu0
        %v2682 = vadd.f32 0.0, %v2681
        %2683 = vmatmul.f32.gmra.mxu0 %v2644
        %v2684 = vpop.f32.mrf.mxu0
        %v2685 = vadd.f32 0.0, %v2684
        %2686 = vmatmul.f32.gmra.mxu0 %v2647
        %v2687 = vpop.f32.mrf.mxu0
        %v2688 = vadd.f32 0.0, %v2687
        %2689 = vmatmul.f32.gmra.mxu0 %v2650
        %v2690 = vpop.f32.mrf.mxu0
        %v2691 = vadd.f32 0.0, %v2690
        %2692 = vdwg.mxu0
        %v2693 = vadd.f32 %v2609, %v2670
        %v2694 = vadd.f32 %v2610, %v2673
        %v2695 = vadd.f32 %v2611, %v2676
        %v2696 = vadd.f32 %v2612, %v2679
        %v2697 = vadd.f32 %v2613, %v2682
        %v2698 = vadd.f32 %v2614, %v2685
        %v2699 = vadd.f32 %v2615, %v2688
        %v2700 = vadd.f32 %v2616, %v2691
        %v2701 = vld [vmem:[%s6] sm:$0x1]
        %v2703 = vperm.slane %v2701, 0
        %v2705 = vadd.f32 %v2693, %v2703
        %v2706 = vadd.f32 %v2694, %v2703
        %v2707 = vadd.f32 %v2695, %v2703
        %v2708 = vadd.f32 %v2696, %v2703
        %v2709 = vadd.f32 %v2697, %v2703
        %v2710 = vadd.f32 %v2698, %v2703
        %v2711 = vadd.f32 %v2699, %v2703
        %v2712 = vadd.f32 %v2700, %v2703
        %v2713 = vmax.f32 %v2705, 0.0
        %v2714 = vmax.f32 %v2706, 0.0
        %v2715 = vmax.f32 %v2707, 0.0
        %v2716 = vmax.f32 %v2708, 0.0
        %v2717 = vmax.f32 %v2709, 0.0
        %v2718 = vmax.f32 %v2710, 0.0
        %v2719 = vmax.f32 %v2711, 0.0
        %v2720 = vmax.f32 %v2712, 0.0
        %2721 = vst.msk [vmem:[%s397 + $0x1] sm:$0xff] %vm367, %v2713
        %2722 = vst.msk [vmem:[%s397 + $0x11] sm:$0xff] %vm367, %v2714
        %2723 = vst.msk [vmem:[%s397 + $0x21] sm:$0xff] %vm367, %v2715
        %2724 = vst.msk [vmem:[%s397 + $0x31] sm:$0xff] %vm367, %v2716
        %2725 = vst.msk [vmem:[%s397 + $0x41] sm:$0xff] %vm367, %v2717
        %2726 = vst.msk [vmem:[%s397 + $0x51] sm:$0xff] %vm367, %v2718
        %2727 = vst.msk [vmem:[%s397 + $0x61] sm:$0xff] %vm367, %v2719
        %2728 = vst.msk [vmem:[%s397 + $0x71] sm:$0xff] %vm367, %v2720
        %v2729 = vld [vmem:[#allocation2] sm:$0xff]
        %v2730 = vld [vmem:[#allocation2 + $0x10] sm:$0xff]
        %v2731 = vld [vmem:[#allocation2 + $0x20] sm:$0xff]
        %v2732 = vld [vmem:[#allocation2 + $0x30] sm:$0xff]
        %v2733 = vld [vmem:[#allocation2 + $0x40] sm:$0xff]
        %v2734 = vld [vmem:[#allocation2 + $0x50] sm:$0xff]
        %v2735 = vld [vmem:[#allocation2 + $0x60] sm:$0xff]
        %v2736 = vld [vmem:[#allocation2 + $0x70] sm:$0xff]
        %v2737 = vld [vmem:[#allocation5] sm:$0xff]
        %v2738 = vld [vmem:[#allocation5 + $0x8] sm:$0xff]
        %v2739 = vld [vmem:[#allocation5 + $0x10] sm:$0xff]
        %v2740 = vld [vmem:[#allocation5 + $0x18] sm:$0xff]
        %v2741 = vld [vmem:[#allocation2 + $0x1] sm:$0xff]
        %v2742 = vld [vmem:[#allocation2 + $0x11] sm:$0xff]
        %v2743 = vld [vmem:[#allocation2 + $0x21] sm:$0xff]
        %v2744 = vld [vmem:[#allocation2 + $0x31] sm:$0xff]
        %v2745 = vld [vmem:[#allocation2 + $0x41] sm:$0xff]
        %v2746 = vld [vmem:[#allocation2 + $0x51] sm:$0xff]
        %v2747 = vld [vmem:[#allocation2 + $0x61] sm:$0xff]
        %v2748 = vld [vmem:[#allocation2 + $0x71] sm:$0xff]
        %s2749 = scalar_lea.vmem [#allocation5], 32
        %v2750 = vld [vmem:[%s2749] sm:$0xff]
        %v2751 = vld [vmem:[%s2749 + $0x8] sm:$0xff]
        %v2752 = vld [vmem:[%s2749 + $0x10] sm:$0xff]
        %v2753 = vld [vmem:[%s2749 + $0x18] sm:$0xff]
        %v2755 = vsel %vm367, %v2741, 0
        %v2758 = vsel %vm367, %v2742, 0
        %v2761 = vsel %vm367, %v2743, 0
        %v2764 = vsel %vm367, %v2744, 0
        %v2767 = vsel %vm367, %v2745, 0
        %v2770 = vsel %vm367, %v2746, 0
        %v2773 = vsel %vm367, %v2747, 0
        %v2776 = vsel %vm367, %v2748, 0
        %2778 = vmatpush.msra.mxu0 0.0
        %2779 = vmatpush.msra.mxu0 0.0
        %2780 = vmatpush.msra.mxu0 0.0
        %2781 = vmatpush.msra.mxu0 0.0
        %2782 = vmatpush.msra.mxu0 0.0
        %2783 = vmatpush.msra.mxu0 0.0
        %2784 = vmatpush.msra.mxu0 0.0
        %2785 = vmatpush.msra.mxu0 0.0
        %2786 = vmatpush.msra.mxu0 0.0
        %2787 = vmatpush.msra.mxu0 0.0
        %2788 = vmatpush.msra.mxu0 0.0
        %2789 = vmatpush.msra.mxu0 0.0
        %2790 = vmatpush.msra.mxu0 %v2753
        %2791 = vmatpush.msra.mxu0 %v2752
        %2792 = vmatpush.msra.mxu0 %v2751
        %2793 = vmatpush.msra.mxu0 %v2750
        %2794 = vmatmul.f32.gmra.mxu0 %v2755
        %v2795 = vpop.f32.mrf.mxu0
        %v2796 = vadd.f32 0.0, %v2795
        %2797 = vmatmul.f32.gmra.mxu0 %v2758
        %v2798 = vpop.f32.mrf.mxu0
        %v2799 = vadd.f32 0.0, %v2798
        %2800 = vmatmul.f32.gmra.mxu0 %v2761
        %v2801 = vpop.f32.mrf.mxu0
        %v2802 = vadd.f32 0.0, %v2801
        %2803 = vmatmul.f32.gmra.mxu0 %v2764
        %v2804 = vpop.f32.mrf.mxu0
        %v2805 = vadd.f32 0.0, %v2804
        %2806 = vmatmul.f32.gmra.mxu0 %v2767
        %v2807 = vpop.f32.mrf.mxu0
        %v2808 = vadd.f32 0.0, %v2807
        %2809 = vmatmul.f32.gmra.mxu0 %v2770
        %v2810 = vpop.f32.mrf.mxu0
        %v2811 = vadd.f32 0.0, %v2810
        %2812 = vmatmul.f32.gmra.mxu0 %v2773
        %v2813 = vpop.f32.mrf.mxu0
        %v2814 = vadd.f32 0.0, %v2813
        %2815 = vmatmul.f32.gmra.mxu0 %v2776
        %v2816 = vpop.f32.mrf.mxu0
        %v2817 = vadd.f32 0.0, %v2816
        %2818 = vdwg.mxu0
        %v2820 = vsel %vm367, %v2729, 0
        %v2823 = vsel %vm367, %v2730, 0
        %v2826 = vsel %vm367, %v2731, 0
        %v2829 = vsel %vm367, %v2732, 0
        %v2832 = vsel %vm367, %v2733, 0
        %v2835 = vsel %vm367, %v2734, 0
        %v2838 = vsel %vm367, %v2735, 0
        %v2841 = vsel %vm367, %v2736, 0
        %2843 = vmatpush.msra.mxu0 0.0
        %2844 = vmatpush.msra.mxu0 0.0
        %2845 = vmatpush.msra.mxu0 0.0
        %2846 = vmatpush.msra.mxu0 0.0
        %2847 = vmatpush.msra.mxu0 0.0
        %2848 = vmatpush.msra.mxu0 0.0
        %2849 = vmatpush.msra.mxu0 0.0
        %2850 = vmatpush.msra.mxu0 0.0
        %2851 = vmatpush.msra.mxu0 0.0
        %2852 = vmatpush.msra.mxu0 0.0
        %2853 = vmatpush.msra.mxu0 0.0
        %2854 = vmatpush.msra.mxu0 0.0
        %2855 = vmatpush.msra.mxu0 %v2740
        %2856 = vmatpush.msra.mxu0 %v2739
        %2857 = vmatpush.msra.mxu0 %v2738
        %2858 = vmatpush.msra.mxu0 %v2737
        %2859 = vmatmul.f32.gmra.mxu0 %v2820
        %v2860 = vpop.f32.mrf.mxu0
        %v2861 = vadd.f32 %v2796, %v2860
        %2862 = vmatmul.f32.gmra.mxu0 %v2823
        %v2863 = vpop.f32.mrf.mxu0
        %v2864 = vadd.f32 %v2799, %v2863
        %2865 = vmatmul.f32.gmra.mxu0 %v2826
        %v2866 = vpop.f32.mrf.mxu0
        %v2867 = vadd.f32 %v2802, %v2866
        %2868 = vmatmul.f32.gmra.mxu0 %v2829
        %v2869 = vpop.f32.mrf.mxu0
        %v2870 = vadd.f32 %v2805, %v2869
        %2871 = vmatmul.f32.gmra.mxu0 %v2832
        %v2872 = vpop.f32.mrf.mxu0
        %v2873 = vadd.f32 %v2808, %v2872
        %2874 = vmatmul.f32.gmra.mxu0 %v2835
        %v2875 = vpop.f32.mrf.mxu0
        %v2876 = vadd.f32 %v2811, %v2875
        %2877 = vmatmul.f32.gmra.mxu0 %v2838
        %v2878 = vpop.f32.mrf.mxu0
        %v2879 = vadd.f32 %v2814, %v2878
        %2880 = vmatmul.f32.gmra.mxu0 %v2841
        %v2881 = vpop.f32.mrf.mxu0
        %v2882 = vadd.f32 %v2817, %v2881
        %2883 = vdwg.mxu0
        %v2884 = vld [vmem:[#allocation2 + $0x2] sm:$0xff]
        %v2885 = vld [vmem:[#allocation2 + $0x12] sm:$0xff]
        %v2886 = vld [vmem:[#allocation2 + $0x22] sm:$0xff]
        %v2887 = vld [vmem:[#allocation2 + $0x32] sm:$0xff]
        %v2888 = vld [vmem:[#allocation2 + $0x42] sm:$0xff]
        %v2889 = vld [vmem:[#allocation2 + $0x52] sm:$0xff]
        %v2890 = vld [vmem:[#allocation2 + $0x62] sm:$0xff]
        %v2891 = vld [vmem:[#allocation2 + $0x72] sm:$0xff]
        %s2892 = scalar_lea.vmem [#allocation5], 64
        %v2893 = vld [vmem:[%s2892] sm:$0xff]
        %v2894 = vld [vmem:[%s2892 + $0x8] sm:$0xff]
        %v2895 = vld [vmem:[%s2892 + $0x10] sm:$0xff]
        %v2896 = vld [vmem:[%s2892 + $0x18] sm:$0xff]
        %v2898 = vsel %vm367, %v2884, 0
        %v2901 = vsel %vm367, %v2885, 0
        %v2904 = vsel %vm367, %v2886, 0
        %v2907 = vsel %vm367, %v2887, 0
        %v2910 = vsel %vm367, %v2888, 0
        %v2913 = vsel %vm367, %v2889, 0
        %v2916 = vsel %vm367, %v2890, 0
        %v2919 = vsel %vm367, %v2891, 0
        %2921 = vmatpush.msra.mxu0 0.0
        %2922 = vmatpush.msra.mxu0 0.0
        %2923 = vmatpush.msra.mxu0 0.0
        %2924 = vmatpush.msra.mxu0 0.0
        %2925 = vmatpush.msra.mxu0 0.0
        %2926 = vmatpush.msra.mxu0 0.0
        %2927 = vmatpush.msra.mxu0 0.0
        %2928 = vmatpush.msra.mxu0 0.0
        %2929 = vmatpush.msra.mxu0 0.0
        %2930 = vmatpush.msra.mxu0 0.0
        %2931 = vmatpush.msra.mxu0 0.0
        %2932 = vmatpush.msra.mxu0 0.0
        %2933 = vmatpush.msra.mxu0 %v2896
        %2934 = vmatpush.msra.mxu0 %v2895
        %2935 = vmatpush.msra.mxu0 %v2894
        %2936 = vmatpush.msra.mxu0 %v2893
        %2937 = vmatmul.f32.gmra.mxu0 %v2898
        %v2938 = vpop.f32.mrf.mxu0
        %v2939 = vadd.f32 0.0, %v2938
        %2940 = vmatmul.f32.gmra.mxu0 %v2901
        %v2941 = vpop.f32.mrf.mxu0
        %v2942 = vadd.f32 0.0, %v2941
        %2943 = vmatmul.f32.gmra.mxu0 %v2904
        %v2944 = vpop.f32.mrf.mxu0
        %v2945 = vadd.f32 0.0, %v2944
        %2946 = vmatmul.f32.gmra.mxu0 %v2907
        %v2947 = vpop.f32.mrf.mxu0
        %v2948 = vadd.f32 0.0, %v2947
        %2949 = vmatmul.f32.gmra.mxu0 %v2910
        %v2950 = vpop.f32.mrf.mxu0
        %v2951 = vadd.f32 0.0, %v2950
        %2952 = vmatmul.f32.gmra.mxu0 %v2913
        %v2953 = vpop.f32.mrf.mxu0
        %v2954 = vadd.f32 0.0, %v2953
        %2955 = vmatmul.f32.gmra.mxu0 %v2916
        %v2956 = vpop.f32.mrf.mxu0
        %v2957 = vadd.f32 0.0, %v2956
        %2958 = vmatmul.f32.gmra.mxu0 %v2919
        %v2959 = vpop.f32.mrf.mxu0
        %v2960 = vadd.f32 0.0, %v2959
        %2961 = vdwg.mxu0
        %v2962 = vadd.f32 %v2861, %v2939
        %v2963 = vadd.f32 %v2864, %v2942
        %v2964 = vadd.f32 %v2867, %v2945
        %v2965 = vadd.f32 %v2870, %v2948
        %v2966 = vadd.f32 %v2873, %v2951
        %v2967 = vadd.f32 %v2876, %v2954
        %v2968 = vadd.f32 %v2879, %v2957
        %v2969 = vadd.f32 %v2882, %v2960
        %v2970 = vld [vmem:[%s397] sm:$0xff]
        %v2971 = vld [vmem:[%s397 + $0x10] sm:$0xff]
        %v2972 = vld [vmem:[%s397 + $0x20] sm:$0xff]
        %v2973 = vld [vmem:[%s397 + $0x30] sm:$0xff]
        %v2974 = vld [vmem:[%s397 + $0x40] sm:$0xff]
        %v2975 = vld [vmem:[%s397 + $0x50] sm:$0xff]
        %v2976 = vld [vmem:[%s397 + $0x60] sm:$0xff]
        %v2977 = vld [vmem:[%s397 + $0x70] sm:$0xff]
        %s2978 = scalar_lea.vmem [#allocation5], 96
        %v2979 = vld [vmem:[%s2978] sm:$0xff]
        %v2980 = vld [vmem:[%s2978 + $0x8] sm:$0xff]
        %v2981 = vld [vmem:[%s2978 + $0x10] sm:$0xff]
        %v2982 = vld [vmem:[%s2978 + $0x18] sm:$0xff]
        %v2984 = vsel %vm367, %v2970, 0
        %v2987 = vsel %vm367, %v2971, 0
        %v2990 = vsel %vm367, %v2972, 0
        %v2993 = vsel %vm367, %v2973, 0
        %v2996 = vsel %vm367, %v2974, 0
        %v2999 = vsel %vm367, %v2975, 0
        %v3002 = vsel %vm367, %v2976, 0
        %v3005 = vsel %vm367, %v2977, 0
        %3007 = vmatpush.msra.mxu0 0.0
        %3008 = vmatpush.msra.mxu0 0.0
        %3009 = vmatpush.msra.mxu0 0.0
        %3010 = vmatpush.msra.mxu0 0.0
        %3011 = vmatpush.msra.mxu0 0.0
        %3012 = vmatpush.msra.mxu0 0.0
        %3013 = vmatpush.msra.mxu0 0.0
        %3014 = vmatpush.msra.mxu0 0.0
        %3015 = vmatpush.msra.mxu0 0.0
        %3016 = vmatpush.msra.mxu0 0.0
        %3017 = vmatpush.msra.mxu0 0.0
        %3018 = vmatpush.msra.mxu0 0.0
        %3019 = vmatpush.msra.mxu0 %v2982
        %3020 = vmatpush.msra.mxu0 %v2981
        %3021 = vmatpush.msra.mxu0 %v2980
        %3022 = vmatpush.msra.mxu0 %v2979
        %3023 = vmatmul.f32.gmra.mxu0 %v2984
        %v3024 = vpop.f32.mrf.mxu0
        %v3025 = vadd.f32 0.0, %v3024
        %3026 = vmatmul.f32.gmra.mxu0 %v2987
        %v3027 = vpop.f32.mrf.mxu0
        %v3028 = vadd.f32 0.0, %v3027
        %3029 = vmatmul.f32.gmra.mxu0 %v2990
        %v3030 = vpop.f32.mrf.mxu0
        %v3031 = vadd.f32 0.0, %v3030
        %3032 = vmatmul.f32.gmra.mxu0 %v2993
        %v3033 = vpop.f32.mrf.mxu0
        %v3034 = vadd.f32 0.0, %v3033
        %3035 = vmatmul.f32.gmra.mxu0 %v2996
        %v3036 = vpop.f32.mrf.mxu0
        %v3037 = vadd.f32 0.0, %v3036
        %3038 = vmatmul.f32.gmra.mxu0 %v2999
        %v3039 = vpop.f32.mrf.mxu0
        %v3040 = vadd.f32 0.0, %v3039
        %3041 = vmatmul.f32.gmra.mxu0 %v3002
        %v3042 = vpop.f32.mrf.mxu0
        %v3043 = vadd.f32 0.0, %v3042
        %3044 = vmatmul.f32.gmra.mxu0 %v3005
        %v3045 = vpop.f32.mrf.mxu0
        %v3046 = vadd.f32 0.0, %v3045
        %3047 = vdwg.mxu0
        %v3048 = vadd.f32 %v2962, %v3025
        %v3049 = vadd.f32 %v2963, %v3028
        %v3050 = vadd.f32 %v2964, %v3031
        %v3051 = vadd.f32 %v2965, %v3034
        %v3052 = vadd.f32 %v2966, %v3037
        %v3053 = vadd.f32 %v2967, %v3040
        %v3054 = vadd.f32 %v2968, %v3043
        %v3055 = vadd.f32 %v2969, %v3046
        %v3056 = vld [vmem:[%s397 + $0x1] sm:$0xff]
        %v3057 = vld [vmem:[%s397 + $0x11] sm:$0xff]
        %v3058 = vld [vmem:[%s397 + $0x21] sm:$0xff]
        %v3059 = vld [vmem:[%s397 + $0x31] sm:$0xff]
        %v3060 = vld [vmem:[%s397 + $0x41] sm:$0xff]
        %v3061 = vld [vmem:[%s397 + $0x51] sm:$0xff]
        %v3062 = vld [vmem:[%s397 + $0x61] sm:$0xff]
        %v3063 = vld [vmem:[%s397 + $0x71] sm:$0xff]
        %s3064 = scalar_lea.vmem [#allocation5], 128
        %v3065 = vld [vmem:[%s3064] sm:$0xff]
        %v3066 = vld [vmem:[%s3064 + $0x8] sm:$0xff]
        %v3067 = vld [vmem:[%s3064 + $0x10] sm:$0xff]
        %v3068 = vld [vmem:[%s3064 + $0x18] sm:$0xff]
        %v3070 = vsel %vm367, %v3056, 0
        %v3073 = vsel %vm367, %v3057, 0
        %v3076 = vsel %vm367, %v3058, 0
        %v3079 = vsel %vm367, %v3059, 0
        %v3082 = vsel %vm367, %v3060, 0
        %v3085 = vsel %vm367, %v3061, 0
        %v3088 = vsel %vm367, %v3062, 0
        %v3091 = vsel %vm367, %v3063, 0
        %3093 = vmatpush.msra.mxu0 0.0
        %3094 = vmatpush.msra.mxu0 0.0
        %3095 = vmatpush.msra.mxu0 0.0
        %3096 = vmatpush.msra.mxu0 0.0
        %3097 = vmatpush.msra.mxu0 0.0
        %3098 = vmatpush.msra.mxu0 0.0
        %3099 = vmatpush.msra.mxu0 0.0
        %3100 = vmatpush.msra.mxu0 0.0
        %3101 = vmatpush.msra.mxu0 0.0
        %3102 = vmatpush.msra.mxu0 0.0
        %3103 = vmatpush.msra.mxu0 0.0
        %3104 = vmatpush.msra.mxu0 0.0
        %3105 = vmatpush.msra.mxu0 %v3068
        %3106 = vmatpush.msra.mxu0 %v3067
        %3107 = vmatpush.msra.mxu0 %v3066
        %3108 = vmatpush.msra.mxu0 %v3065
        %3109 = vmatmul.f32.gmra.mxu0 %v3070
        %v3110 = vpop.f32.mrf.mxu0
        %v3111 = vadd.f32 0.0, %v3110
        %3112 = vmatmul.f32.gmra.mxu0 %v3073
        %v3113 = vpop.f32.mrf.mxu0
        %v3114 = vadd.f32 0.0, %v3113
        %3115 = vmatmul.f32.gmra.mxu0 %v3076
        %v3116 = vpop.f32.mrf.mxu0
        %v3117 = vadd.f32 0.0, %v3116
        %3118 = vmatmul.f32.gmra.mxu0 %v3079
        %v3119 = vpop.f32.mrf.mxu0
        %v3120 = vadd.f32 0.0, %v3119
        %3121 = vmatmul.f32.gmra.mxu0 %v3082
        %v3122 = vpop.f32.mrf.mxu0
        %v3123 = vadd.f32 0.0, %v3122
        %3124 = vmatmul.f32.gmra.mxu0 %v3085
        %v3125 = vpop.f32.mrf.mxu0
        %v3126 = vadd.f32 0.0, %v3125
        %3127 = vmatmul.f32.gmra.mxu0 %v3088
        %v3128 = vpop.f32.mrf.mxu0
        %v3129 = vadd.f32 0.0, %v3128
        %3130 = vmatmul.f32.gmra.mxu0 %v3091
        %v3131 = vpop.f32.mrf.mxu0
        %v3132 = vadd.f32 0.0, %v3131
        %3133 = vdwg.mxu0
        %v3134 = vadd.f32 %v3048, %v3111
        %v3135 = vadd.f32 %v3049, %v3114
        %v3136 = vadd.f32 %v3050, %v3117
        %v3137 = vadd.f32 %v3051, %v3120
        %v3138 = vadd.f32 %v3052, %v3123
        %v3139 = vadd.f32 %v3053, %v3126
        %v3140 = vadd.f32 %v3054, %v3129
        %v3141 = vadd.f32 %v3055, %v3132
        %v3142 = vld [vmem:[%s397 + $0x2] sm:$0xff]
        %v3143 = vld [vmem:[%s397 + $0x12] sm:$0xff]
        %v3144 = vld [vmem:[%s397 + $0x22] sm:$0xff]
        %v3145 = vld [vmem:[%s397 + $0x32] sm:$0xff]
        %v3146 = vld [vmem:[%s397 + $0x42] sm:$0xff]
        %v3147 = vld [vmem:[%s397 + $0x52] sm:$0xff]
        %v3148 = vld [vmem:[%s397 + $0x62] sm:$0xff]
        %v3149 = vld [vmem:[%s397 + $0x72] sm:$0xff]
        %s3150 = scalar_lea.vmem [#allocation5], 160
        %v3151 = vld [vmem:[%s3150] sm:$0xff]
        %v3152 = vld [vmem:[%s3150 + $0x8] sm:$0xff]
        %v3153 = vld [vmem:[%s3150 + $0x10] sm:$0xff]
        %v3154 = vld [vmem:[%s3150 + $0x18] sm:$0xff]
        %v3156 = vsel %vm367, %v3142, 0
        %v3159 = vsel %vm367, %v3143, 0
        %v3162 = vsel %vm367, %v3144, 0
        %v3165 = vsel %vm367, %v3145, 0
        %v3168 = vsel %vm367, %v3146, 0
        %v3171 = vsel %vm367, %v3147, 0
        %v3174 = vsel %vm367, %v3148, 0
        %v3177 = vsel %vm367, %v3149, 0
        %3179 = vmatpush.msra.mxu0 0.0
        %3180 = vmatpush.msra.mxu0 0.0
        %3181 = vmatpush.msra.mxu0 0.0
        %3182 = vmatpush.msra.mxu0 0.0
        %3183 = vmatpush.msra.mxu0 0.0
        %3184 = vmatpush.msra.mxu0 0.0
        %3185 = vmatpush.msra.mxu0 0.0
        %3186 = vmatpush.msra.mxu0 0.0
        %3187 = vmatpush.msra.mxu0 0.0
        %3188 = vmatpush.msra.mxu0 0.0
        %3189 = vmatpush.msra.mxu0 0.0
        %3190 = vmatpush.msra.mxu0 0.0
        %3191 = vmatpush.msra.mxu0 %v3154
        %3192 = vmatpush.msra.mxu0 %v3153
        %3193 = vmatpush.msra.mxu0 %v3152
        %3194 = vmatpush.msra.mxu0 %v3151
        %3195 = vmatmul.f32.gmra.mxu0 %v3156
        %v3196 = vpop.f32.mrf.mxu0
        %v3197 = vadd.f32 0.0, %v3196
        %3198 = vmatmul.f32.gmra.mxu0 %v3159
        %v3199 = vpop.f32.mrf.mxu0
        %v3200 = vadd.f32 0.0, %v3199
        %3201 = vmatmul.f32.gmra.mxu0 %v3162
        %v3202 = vpop.f32.mrf.mxu0
        %v3203 = vadd.f32 0.0, %v3202
        %3204 = vmatmul.f32.gmra.mxu0 %v3165
        %v3205 = vpop.f32.mrf.mxu0
        %v3206 = vadd.f32 0.0, %v3205
        %3207 = vmatmul.f32.gmra.mxu0 %v3168
        %v3208 = vpop.f32.mrf.mxu0
        %v3209 = vadd.f32 0.0, %v3208
        %3210 = vmatmul.f32.gmra.mxu0 %v3171
        %v3211 = vpop.f32.mrf.mxu0
        %v3212 = vadd.f32 0.0, %v3211
        %3213 = vmatmul.f32.gmra.mxu0 %v3174
        %v3214 = vpop.f32.mrf.mxu0
        %v3215 = vadd.f32 0.0, %v3214
        %3216 = vmatmul.f32.gmra.mxu0 %v3177
        %v3217 = vpop.f32.mrf.mxu0
        %v3218 = vadd.f32 0.0, %v3217
        %3219 = vdwg.mxu0
        %v3220 = vadd.f32 %v3134, %v3197
        %v3221 = vadd.f32 %v3135, %v3200
        %v3222 = vadd.f32 %v3136, %v3203
        %v3223 = vadd.f32 %v3137, %v3206
        %v3224 = vadd.f32 %v3138, %v3209
        %v3225 = vadd.f32 %v3139, %v3212
        %v3226 = vadd.f32 %v3140, %v3215
        %v3227 = vadd.f32 %v3141, %v3218
        %v3228 = vld [vmem:[%s907] sm:$0xff]
        %v3229 = vld [vmem:[%s907 + $0x10] sm:$0xff]
        %v3230 = vld [vmem:[%s907 + $0x20] sm:$0xff]
        %v3231 = vld [vmem:[%s907 + $0x30] sm:$0xff]
        %v3232 = vld [vmem:[%s907 + $0x40] sm:$0xff]
        %v3233 = vld [vmem:[%s907 + $0x50] sm:$0xff]
        %v3234 = vld [vmem:[%s907 + $0x60] sm:$0xff]
        %v3235 = vld [vmem:[%s907 + $0x70] sm:$0xff]
        %s3236 = scalar_lea.vmem [#allocation5], 192
        %v3237 = vld [vmem:[%s3236] sm:$0xff]
        %v3238 = vld [vmem:[%s3236 + $0x8] sm:$0xff]
        %v3239 = vld [vmem:[%s3236 + $0x10] sm:$0xff]
        %v3240 = vld [vmem:[%s3236 + $0x18] sm:$0xff]
        %v3242 = vsel %vm367, %v3228, 0
        %v3245 = vsel %vm367, %v3229, 0
        %v3248 = vsel %vm367, %v3230, 0
        %v3251 = vsel %vm367, %v3231, 0
        %v3254 = vsel %vm367, %v3232, 0
        %v3257 = vsel %vm367, %v3233, 0
        %v3260 = vsel %vm367, %v3234, 0
        %v3263 = vsel %vm367, %v3235, 0
        %3265 = vmatpush.msra.mxu0 0.0
        %3266 = vmatpush.msra.mxu0 0.0
        %3267 = vmatpush.msra.mxu0 0.0
        %3268 = vmatpush.msra.mxu0 0.0
        %3269 = vmatpush.msra.mxu0 0.0
        %3270 = vmatpush.msra.mxu0 0.0
        %3271 = vmatpush.msra.mxu0 0.0
        %3272 = vmatpush.msra.mxu0 0.0
        %3273 = vmatpush.msra.mxu0 0.0
        %3274 = vmatpush.msra.mxu0 0.0
        %3275 = vmatpush.msra.mxu0 0.0
        %3276 = vmatpush.msra.mxu0 0.0
        %3277 = vmatpush.msra.mxu0 %v3240
        %3278 = vmatpush.msra.mxu0 %v3239
        %3279 = vmatpush.msra.mxu0 %v3238
        %3280 = vmatpush.msra.mxu0 %v3237
        %3281 = vmatmul.f32.gmra.mxu0 %v3242
        %v3282 = vpop.f32.mrf.mxu0
        %v3283 = vadd.f32 0.0, %v3282
        %3284 = vmatmul.f32.gmra.mxu0 %v3245
        %v3285 = vpop.f32.mrf.mxu0
        %v3286 = vadd.f32 0.0, %v3285
        %3287 = vmatmul.f32.gmra.mxu0 %v3248
        %v3288 = vpop.f32.mrf.mxu0
        %v3289 = vadd.f32 0.0, %v3288
        %3290 = vmatmul.f32.gmra.mxu0 %v3251
        %v3291 = vpop.f32.mrf.mxu0
        %v3292 = vadd.f32 0.0, %v3291
        %3293 = vmatmul.f32.gmra.mxu0 %v3254
        %v3294 = vpop.f32.mrf.mxu0
        %v3295 = vadd.f32 0.0, %v3294
        %3296 = vmatmul.f32.gmra.mxu0 %v3257
        %v3297 = vpop.f32.mrf.mxu0
        %v3298 = vadd.f32 0.0, %v3297
        %3299 = vmatmul.f32.gmra.mxu0 %v3260
        %v3300 = vpop.f32.mrf.mxu0
        %v3301 = vadd.f32 0.0, %v3300
        %3302 = vmatmul.f32.gmra.mxu0 %v3263
        %v3303 = vpop.f32.mrf.mxu0
        %v3304 = vadd.f32 0.0, %v3303
        %3305 = vdwg.mxu0
        %v3306 = vadd.f32 %v3220, %v3283
        %v3307 = vadd.f32 %v3221, %v3286
        %v3308 = vadd.f32 %v3222, %v3289
        %v3309 = vadd.f32 %v3223, %v3292
        %v3310 = vadd.f32 %v3224, %v3295
        %v3311 = vadd.f32 %v3225, %v3298
        %v3312 = vadd.f32 %v3226, %v3301
        %v3313 = vadd.f32 %v3227, %v3304
        %v3314 = vld [vmem:[%s907 + $0x1] sm:$0xff]
        %v3315 = vld [vmem:[%s907 + $0x11] sm:$0xff]
        %v3316 = vld [vmem:[%s907 + $0x21] sm:$0xff]
        %v3317 = vld [vmem:[%s907 + $0x31] sm:$0xff]
        %v3318 = vld [vmem:[%s907 + $0x41] sm:$0xff]
        %v3319 = vld [vmem:[%s907 + $0x51] sm:$0xff]
        %v3320 = vld [vmem:[%s907 + $0x61] sm:$0xff]
        %v3321 = vld [vmem:[%s907 + $0x71] sm:$0xff]
        %s3322 = scalar_lea.vmem [#allocation5], 224
        %v3323 = vld [vmem:[%s3322] sm:$0xff]
        %v3324 = vld [vmem:[%s3322 + $0x8] sm:$0xff]
        %v3325 = vld [vmem:[%s3322 + $0x10] sm:$0xff]
        %v3326 = vld [vmem:[%s3322 + $0x18] sm:$0xff]
        %v3328 = vsel %vm367, %v3314, 0
        %v3331 = vsel %vm367, %v3315, 0
        %v3334 = vsel %vm367, %v3316, 0
        %v3337 = vsel %vm367, %v3317, 0
        %v3340 = vsel %vm367, %v3318, 0
        %v3343 = vsel %vm367, %v3319, 0
        %v3346 = vsel %vm367, %v3320, 0
        %v3349 = vsel %vm367, %v3321, 0
        %3351 = vmatpush.msra.mxu0 0.0
        %3352 = vmatpush.msra.mxu0 0.0
        %3353 = vmatpush.msra.mxu0 0.0
        %3354 = vmatpush.msra.mxu0 0.0
        %3355 = vmatpush.msra.mxu0 0.0
        %3356 = vmatpush.msra.mxu0 0.0
        %3357 = vmatpush.msra.mxu0 0.0
        %3358 = vmatpush.msra.mxu0 0.0
        %3359 = vmatpush.msra.mxu0 0.0
        %3360 = vmatpush.msra.mxu0 0.0
        %3361 = vmatpush.msra.mxu0 0.0
        %3362 = vmatpush.msra.mxu0 0.0
        %3363 = vmatpush.msra.mxu0 %v3326
        %3364 = vmatpush.msra.mxu0 %v3325
        %3365 = vmatpush.msra.mxu0 %v3324
        %3366 = vmatpush.msra.mxu0 %v3323
        %3367 = vmatmul.f32.gmra.mxu0 %v3328
        %v3368 = vpop.f32.mrf.mxu0
        %v3369 = vadd.f32 0.0, %v3368
        %3370 = vmatmul.f32.gmra.mxu0 %v3331
        %v3371 = vpop.f32.mrf.mxu0
        %v3372 = vadd.f32 0.0, %v3371
        %3373 = vmatmul.f32.gmra.mxu0 %v3334
        %v3374 = vpop.f32.mrf.mxu0
        %v3375 = vadd.f32 0.0, %v3374
        %3376 = vmatmul.f32.gmra.mxu0 %v3337
        %v3377 = vpop.f32.mrf.mxu0
        %v3378 = vadd.f32 0.0, %v3377
        %3379 = vmatmul.f32.gmra.mxu0 %v3340
        %v3380 = vpop.f32.mrf.mxu0
        %v3381 = vadd.f32 0.0, %v3380
        %3382 = vmatmul.f32.gmra.mxu0 %v3343
        %v3383 = vpop.f32.mrf.mxu0
        %v3384 = vadd.f32 0.0, %v3383
        %3385 = vmatmul.f32.gmra.mxu0 %v3346
        %v3386 = vpop.f32.mrf.mxu0
        %v3387 = vadd.f32 0.0, %v3386
        %3388 = vmatmul.f32.gmra.mxu0 %v3349
        %v3389 = vpop.f32.mrf.mxu0
        %v3390 = vadd.f32 0.0, %v3389
        %3391 = vdwg.mxu0
        %v3392 = vadd.f32 %v3306, %v3369
        %v3393 = vadd.f32 %v3307, %v3372
        %v3394 = vadd.f32 %v3308, %v3375
        %v3395 = vadd.f32 %v3309, %v3378
        %v3396 = vadd.f32 %v3310, %v3381
        %v3397 = vadd.f32 %v3311, %v3384
        %v3398 = vadd.f32 %v3312, %v3387
        %v3399 = vadd.f32 %v3313, %v3390
        %v3400 = vld [vmem:[%s907 + $0x2] sm:$0xff]
        %v3401 = vld [vmem:[%s907 + $0x12] sm:$0xff]
        %v3402 = vld [vmem:[%s907 + $0x22] sm:$0xff]
        %v3403 = vld [vmem:[%s907 + $0x32] sm:$0xff]
        %v3404 = vld [vmem:[%s907 + $0x42] sm:$0xff]
        %v3405 = vld [vmem:[%s907 + $0x52] sm:$0xff]
        %v3406 = vld [vmem:[%s907 + $0x62] sm:$0xff]
        %v3407 = vld [vmem:[%s907 + $0x72] sm:$0xff]
        %s3408 = scalar_lea.vmem [#allocation5], 256
        %v3409 = vld [vmem:[%s3408] sm:$0xff]
        %v3410 = vld [vmem:[%s3408 + $0x8] sm:$0xff]
        %v3411 = vld [vmem:[%s3408 + $0x10] sm:$0xff]
        %v3412 = vld [vmem:[%s3408 + $0x18] sm:$0xff]
        %v3414 = vsel %vm367, %v3400, 0
        %v3417 = vsel %vm367, %v3401, 0
        %v3420 = vsel %vm367, %v3402, 0
        %v3423 = vsel %vm367, %v3403, 0
        %v3426 = vsel %vm367, %v3404, 0
        %v3429 = vsel %vm367, %v3405, 0
        %v3432 = vsel %vm367, %v3406, 0
        %v3435 = vsel %vm367, %v3407, 0
        %3437 = vmatpush.msra.mxu0 0.0
        %3438 = vmatpush.msra.mxu0 0.0
        %3439 = vmatpush.msra.mxu0 0.0
        %3440 = vmatpush.msra.mxu0 0.0
        %3441 = vmatpush.msra.mxu0 0.0
        %3442 = vmatpush.msra.mxu0 0.0
        %3443 = vmatpush.msra.mxu0 0.0
        %3444 = vmatpush.msra.mxu0 0.0
        %3445 = vmatpush.msra.mxu0 0.0
        %3446 = vmatpush.msra.mxu0 0.0
        %3447 = vmatpush.msra.mxu0 0.0
        %3448 = vmatpush.msra.mxu0 0.0
        %3449 = vmatpush.msra.mxu0 %v3412
        %3450 = vmatpush.msra.mxu0 %v3411
        %3451 = vmatpush.msra.mxu0 %v3410
        %3452 = vmatpush.msra.mxu0 %v3409
        %3453 = vmatmul.f32.gmra.mxu0 %v3414
        %v3454 = vpop.f32.mrf.mxu0
        %v3455 = vadd.f32 0.0, %v3454
        %3456 = vmatmul.f32.gmra.mxu0 %v3417
        %v3457 = vpop.f32.mrf.mxu0
        %v3458 = vadd.f32 0.0, %v3457
        %3459 = vmatmul.f32.gmra.mxu0 %v3420
        %v3460 = vpop.f32.mrf.mxu0
        %v3461 = vadd.f32 0.0, %v3460
        %3462 = vmatmul.f32.gmra.mxu0 %v3423
        %v3463 = vpop.f32.mrf.mxu0
        %v3464 = vadd.f32 0.0, %v3463
        %3465 = vmatmul.f32.gmra.mxu0 %v3426
        %v3466 = vpop.f32.mrf.mxu0
        %v3467 = vadd.f32 0.0, %v3466
        %3468 = vmatmul.f32.gmra.mxu0 %v3429
        %v3469 = vpop.f32.mrf.mxu0
        %v3470 = vadd.f32 0.0, %v3469
        %3471 = vmatmul.f32.gmra.mxu0 %v3432
        %v3472 = vpop.f32.mrf.mxu0
        %v3473 = vadd.f32 0.0, %v3472
        %3474 = vmatmul.f32.gmra.mxu0 %v3435
        %v3475 = vpop.f32.mrf.mxu0
        %v3476 = vadd.f32 0.0, %v3475
        %3477 = vdwg.mxu0
        %v3478 = vadd.f32 %v3392, %v3455
        %v3479 = vadd.f32 %v3393, %v3458
        %v3480 = vadd.f32 %v3394, %v3461
        %v3481 = vadd.f32 %v3395, %v3464
        %v3482 = vadd.f32 %v3396, %v3467
        %v3483 = vadd.f32 %v3397, %v3470
        %v3484 = vadd.f32 %v3398, %v3473
        %v3485 = vadd.f32 %v3399, %v3476
        %v3486 = vld [vmem:[%s8] sm:$0x1]
        %v3488 = vperm.slane %v3486, 0
        %v3490 = vadd.f32 %v3478, %v3488
        %v3491 = vadd.f32 %v3479, %v3488
        %v3492 = vadd.f32 %v3480, %v3488
        %v3493 = vadd.f32 %v3481, %v3488
        %v3494 = vadd.f32 %v3482, %v3488
        %v3495 = vadd.f32 %v3483, %v3488
        %v3496 = vadd.f32 %v3484, %v3488
        %v3497 = vadd.f32 %v3485, %v3488
        %v3498 = vmax.f32 %v3490, 0.0
        %v3499 = vmax.f32 %v3491, 0.0
        %v3500 = vmax.f32 %v3492, 0.0
        %v3501 = vmax.f32 %v3493, 0.0
        %v3502 = vmax.f32 %v3494, 0.0
        %v3503 = vmax.f32 %v3495, 0.0
        %v3504 = vmax.f32 %v3496, 0.0
        %v3505 = vmax.f32 %v3497, 0.0
        %3506 = vst.msk [vmem:[%s366] sm:$0xff] %vm367, %v3498
        %3507 = vst.msk [vmem:[%s366 + $0x8] sm:$0xff] %vm367, %v3499
        %3508 = vst.msk [vmem:[%s366 + $0x10] sm:$0xff] %vm367, %v3500
        %3509 = vst.msk [vmem:[%s366 + $0x18] sm:$0xff] %vm367, %v3501
        %3510 = vst.msk [vmem:[%s366 + $0x20] sm:$0xff] %vm367, %v3502
        %3511 = vst.msk [vmem:[%s366 + $0x28] sm:$0xff] %vm367, %v3503
        %3512 = vst.msk [vmem:[%s366 + $0x30] sm:$0xff] %vm367, %v3504
        %3513 = vst.msk [vmem:[%s366 + $0x38] sm:$0xff] %vm367, %v3505
        %p3514 = scmp.lt.s32.totalorder %s22, 1
        %s3515 = scalar_select %p3514, %s22, 1
        %s3516 = smul.addr %s3515, 8
        %s3517 = smul.addr %s3516, 8
        %s3518 = scalar_lea.vmem %s9, %s3517
        // Predicated region
        $region65: #{eadan_forward.2} parent=55 // pred_check
          %p3519 = pneg %p234
        $region66: #{eadan_forward.2} parent=55 // pred_check_branch
          %3521 = sbr.rel (%p3519) target = $region68
        $region67: #{eadan_forward.2} parent=55 // pred_region
          _
        $region68: #{eadan_forward.2} parent=55 // pred_fallthru
          _
      $region56: #{eadan_forward.2} parent=5 // pred_fallthru
        _
      %p3522 = scmp.le.s32.totalorder 2, %s17
      // Predicated region
      $region69: #{eadan_forward.2} parent=5 // pred_check
        %p3523 = pneg %p3522
      $region70: #{eadan_forward.2} parent=5 // pred_check_branch
        %3525 = sbr.rel (%p3523) target = $region72
      $region71: #{eadan_forward.2} parent=5 // pred_region
        %s3526 = ssub.s32 %s17, 2
        // Predicated region
        $region73: #{eadan_forward.2} parent=71 // pred_check
          %p3527 = pneg %p240
        $region74: #{eadan_forward.2} parent=71 // pred_check_branch
          %3529 = sbr.rel (%p3527) target = $region76
        $region75: #{eadan_forward.2} parent=71 // pred_region
          %p3530 = scmp.lt.s32.totalorder %s23, 1
          %s3531 = scalar_select %p3530, %s23, 1
          %s3532 = smul.addr %s3531, 8
          %s3533 = smul.addr %s3532, 8
          %s3534 = scalar_lea.vmem %s9, %s3533
        $region76: #{eadan_forward.2} parent=71 // pred_fallthru
          _
      $region72: #{eadan_forward.2} parent=5 // pred_fallthru
        _
    $region6: #{eadan_forward.2} parent=1 // loop_footer
      %s21 = sadd.s32 1, %s17
    $region7: #{eadan_forward.2} parent=1 // loop_footer_branch
      %16 = sbr.rel target = $region3
    $region8: #{eadan_forward.2} parent=1 // loop_exit
      _
    %3535 = vsyncpa [#allocation4], 1
    %s3536 = scalar_lea.sflag [#allocation4], 1
    %3537 = vsyncpa %s3536, 1
    %3538 = vsyncpa [#allocation6], 1

</llo_original>
